<compile_context>
chip_gen: v7x
topology: tpu7x:2x2x1
jax: 0.10.0
libtpu: 0.0.40
codegen_flags: <defaults>
</compile_context>

<pallas_src>
import math
import functools

import jax
import jax.numpy as jnp
from jax.experimental import pallas as pl
from jax.experimental.pallas import tpu as pltpu


def _sab_kernel(x_ref, wqkv_ref, bqkv_ref, wo_ref, bo_ref, o_ref, pv_ref, *,
                num_heads, dim_v, block_b, seq, lane_dense):
    """One grid step = `block_b` batch elements; full attention + output MLP in-kernel."""
    rows = block_b * seq
    x = x_ref[...]                                         # (rows, dim_in) bf16
    wqkv = wqkv_ref[...]                                   # (dim_in, 3*dim_V) bf16
    bqkv = bqkv_ref[...].astype(jnp.float32)               # (1, 3*dim_V)

    # Fused Q/K/V projection: bf16 MXU operands, f32 accumulation.
    qkv = jnp.dot(x, wqkv, preferred_element_type=jnp.float32) + bqkv    # (rows, 3*dim_V) f32

    # Leading-dim reshapes only (lane dim untouched) -> free.
    q = qkv[:, 0 * dim_v:1 * dim_v].reshape(block_b, seq, dim_v)
    k = qkv[:, 1 * dim_v:2 * dim_v].reshape(block_b, seq, dim_v)   # 1/sqrt(dim_V) pre-folded
    v = qkv[:, 2 * dim_v:3 * dim_v].reshape(block_b, seq, dim_v)

    ds = dim_v // num_heads
    for h in range(num_heads):                             # static, tiny loop (num_heads)
        qh = q[:, :, h * ds:(h + 1) * ds]                  # (block_b, seq, ds)
        kh = k[:, :, h * ds:(h + 1) * ds]
        vh = v[:, :, h * ds:(h + 1) * ds]
        s = jnp.einsum('bqd,bkd->bqk', qh, kh,
                       preferred_element_type=jnp.float32)             # (block_b, seq, seq)
        s = s - jnp.max(s, axis=-1, keepdims=True)
        p = jnp.exp(s)                                                  # EUP
        a = p * pl.reciprocal(jnp.sum(p, axis=-1, keepdims=True), approx=True)  # EUP vrcp
        # Only the A_h V_h product per head; the Q residual is added once below.
        pv_ref[:, :, h * ds:(h + 1) * ds] = jnp.einsum(
            'bqk,bkd->bqd', a, vh, preferred_element_type=jnp.float32)

    o = (q + pv_ref[...]).reshape(rows, dim_v)             # leading-dim merge, f32

    # O = O + relu(fc_o(O)); bf16 MXU operands, f32 accumulation and VPU math.
    hid = jnp.dot(o.astype(wo_ref.dtype), wo_ref[...],
                  preferred_element_type=jnp.float32) + bo_ref[...].astype(jnp.float32)
    o = o + jnp.maximum(hid, 0.0)

    if lane_dense:
        # Fold (rows, dim_V) -> (block_b, seq*dim_V): dense 128-lane stores / dense DMA.
        o_ref[...] = o.reshape(block_b, seq * dim_v).astype(o_ref.dtype)
    else:
        o_ref[...] = o.astype(o_ref.dtype)


def _tpu_topology():
    """Best-effort (VMEM bytes per core, TensorCores per chip) with conservative fallbacks."""
    vmem_bytes = 64 << 20          # v7x per-TC capacity; safe lower bound for v5e/v6e
    num_tc = 1
    try:
        info = pltpu.get_tpu_info()
        vmem_bytes = int(getattr(info, "vmem_capacity_bytes", vmem_bytes))
    except Exception:
        pass
    try:
        kind = jax.devices()[0].device_kind.lower()
        if ("v7" in kind) or ("7x" in kind):
            num_tc = 2             # v7x: 2 TensorCores share one Pallas device
    except Exception:
        pass
    return vmem_bytes, num_tc


def _row_bytes(dim_in, dim_v, seq):
    """Rough per-token VMEM bytes: pipelined blocks + f32 in-kernel intermediates."""
    return (2 * 2 * dim_in          # X block, bf16, double-buffered
            + 2 * 4 * dim_v         # output block, f32, double-buffered
            + 2 * 4 * 3 * dim_v     # qkv projection + q/k/v views (f32)
            + 4 * dim_v             # per-head PV scratch accumulator (f32)
            + 4 * seq               # per-head score/prob temporaries (f32)
            + 4 * 4 * dim_v)        # o / fc_o hidden / relu / folded-store temporaries


def _choose_block_b(B, N, dim_in, dim_v, *, num_tc, vmem_bytes):
    """Largest batch block that fits ~50% of VMEM, keeps the output block layout-clean
    (second-minor dim a multiple of 8 or full), and leaves >= num_tc grid steps when
    possible so ("parallel",) can shard across TensorCores on multi-TC chips (v7x).
    Single-TC chips (v5e/v6e) take a 1-step grid whenever it fits — the grid is a
    sequential loop there, so extra steps are pure per-step overhead."""
    budget = vmem_bytes // 2        # headroom for weights, compiler scratch, slack
    cap_rows = max(N, budget // max(_row_bytes(dim_in, dim_v, N), 1))
    cap_b = max(1, min(B, cap_rows // N))

    def layout_ok(bb):              # lane-dense output block is (bb, N*dim_V)
        return bb == B or bb % 8 == 0

    divisors = [d for d in range(1, B + 1) if B % d == 0 and d <= cap_b]
    for want_steps in (num_tc, 1):  # prefer >= num_tc grid steps, else accept fewer
        cands = [d for d in divisors if (B // d) >= want_steps and layout_ok(d)]
        if cands:
            return max(cands)
    return max(divisors) if divisors else 1   # tiny/prime B: accept a padded block


_LANE_DENSE_SUPPORTED = None        # probed lazily on first call


def sab_forward(x, params, *, num_heads, block_b=None):
    """x: (B, N, dim_in) -> (B, N, dim_V).  params are PyTorch-layout Linear weights."""
    global _LANE_DENSE_SUPPORTED
    B, N, dim_in = x.shape
    dim_v = params["wq"].shape[0]
    scale = 1.0 / math.sqrt(dim_v)

    # One-time packing: fuse + pre-transpose to [in, out]; fold the attention scale into
    # the K projection (K only appears in the scores, so the Q residual stays exact).
    # Weights/activations go to bf16 (native MXU dtype on all generations); biases stay f32.
    w_qkv = jnp.concatenate(
        [params["wq"].T, params["wk"].T * scale, params["wv"].T], axis=1
    ).astype(jnp.bfloat16)                                           # (dim_in, 3*dim_V)
    b_qkv = jnp.concatenate(
        [params["bq"], params["bk"] * scale, params["bv"]], axis=1
    ).astype(jnp.float32)                                            # (1, 3*dim_V)
    w_o = params["wo"].T.astype(jnp.bfloat16)                        # (dim_V, dim_V)
    b_o = params["bo"].astype(jnp.float32)                           # (1, dim_V)

    vmem_bytes, num_tc = _tpu_topology()
    if block_b is None:
        block_b = _choose_block_b(B, N, dim_in, dim_v, num_tc=num_tc, vmem_bytes=vmem_bytes)
    assert B % block_b == 0, "block_b must divide B"
    grid = (B // block_b,)
    rows = block_b * N

    x_flat = x.reshape(B * N, dim_in).astype(jnp.bfloat16)

    # Explicit VMEM limit derived from the working set (v5e's scoped default is 16 MiB).
    weight_bytes = 2 * (w_qkv.size + w_o.size) + 4 * (b_qkv.size + b_o.size)
    vmem_needed = rows * _row_bytes(dim_in, dim_v, N) + 2 * weight_bytes + (4 << 20)
    vmem_limit = int(min(vmem_bytes, max(vmem_needed, 32 << 20)))

    in_specs = [
        pl.BlockSpec((rows, dim_in), lambda i: (i, 0)),        # X rows for this batch block
        pl.BlockSpec((dim_in, 3 * dim_v), lambda i: (0, 0)),   # fused Wqkv (resident)
        pl.BlockSpec((1, 3 * dim_v), lambda i: (0, 0)),        # fused bqkv
        pl.BlockSpec((dim_v, dim_v), lambda i: (0, 0)),        # Wo (resident)
        pl.BlockSpec((1, dim_v), lambda i: (0, 0)),            # bo
    ]
    scratch = [pltpu.VMEM((block_b, N, dim_v), jnp.float32)]   # per-head PV accumulator
    cparams = pltpu.CompilerParams(dimension_semantics=("parallel",),
                                   vmem_limit_bytes=vmem_limit)

    def run(lane_dense):
        kernel = functools.partial(_sab_kernel, num_heads=num_heads, dim_v=dim_v,
                                   block_b=block_b, seq=N, lane_dense=lane_dense)
        if lane_dense:
            out_shape = jax.ShapeDtypeStruct((B, N * dim_v), x.dtype)
            out_spec = pl.BlockSpec((block_b, N * dim_v), lambda i: (i, 0))
        else:
            out_shape = jax.ShapeDtypeStruct((B * N, dim_v), x.dtype)
            out_spec = pl.BlockSpec((rows, dim_v), lambda i: (i, 0))
        out = pl.pallas_call(
            kernel,
            out_shape=out_shape,
            grid_spec=pltpu.PrefetchScalarGridSpec(
                num_scalar_prefetch=0,
                grid=grid,
                in_specs=in_specs,
                out_specs=out_spec,
                scratch_shapes=scratch),
            compiler_params=cparams,
        )(x_flat, w_qkv, b_qkv, w_o, b_o)
        return out.reshape(B, N, dim_v)   # free: row-major metadata reshape outside the kernel

    # Lane-dense store needs an in-kernel (rows, dim_V) -> (block_b, N*dim_V) relayout;
    # probe once and fall back to the known-good row-flat store if Mosaic rejects it.
    if _LANE_DENSE_SUPPORTED is not False:
        try:
            out = run(lane_dense=True)
            _LANE_DENSE_SUPPORTED = True
            return out
        except Exception:
            _LANE_DENSE_SUPPORTED = False
    return run(lane_dense=False)


def sab_reference(x, params, *, num_heads):
    """Pure-JAX (f32) replica of MAB.forward(X, X) with ln=False, for verification."""
    dim_v = params["wq"].shape[0]
    q = x @ params["wq"].T + params["bq"][0]
    k = x @ params["wk"].T + params["bk"][0]
    v = x @ params["wv"].T + params["bv"][0]
    # torch.cat(Q.split(ds, 2), 0): heads stacked along the batch dim (head-major).
    q_ = jnp.concatenate(jnp.split(q, num_heads, axis=2), axis=0)   # (H*B, N, ds)
    k_ = jnp.concatenate(jnp.split(k, num_heads, axis=2), axis=0)
    v_ = jnp.concatenate(jnp.split(v, num_heads, axis=2), axis=0)
    a = jax.nn.softmax(jnp.einsum("bqd,bkd->bqk", q_, k_) / math.sqrt(dim_v), axis=2)
    o_ = q_ + jnp.einsum("bqk,bkd->bqd", a, v_)
    o = jnp.concatenate(jnp.split(o_, num_heads, axis=0), axis=2)   # (B, N, dim_V)
    o = o + jax.nn.relu(o @ params["wo"].T + params["bo"][0])
    return o


if __name__ == "__main__":
    # Small shapes consistent with the module: SAB(dim_in=16, dim_out=32, num_heads=4).
    B, N, dim_in, dim_v, num_heads = 8, 8, 16, 32, 4

    key = jax.random.PRNGKey(0)
    ks = jax.random.split(key, 9)

    def lin_w(k, out_d, in_d):
        bound = 1.0 / math.sqrt(in_d)
        return jax.random.uniform(k, (out_d, in_d), jnp.float32, -bound, bound)

    def lin_b(k, out_d, in_d):
        bound = 1.0 / math.sqrt(in_d)
        return jax.random.uniform(k, (1, out_d), jnp.float32, -bound, bound)

    params = {
        "wq": lin_w(ks[0], dim_v, dim_in), "bq": lin_b(ks[1], dim_v, dim_in),
        "wk": lin_w(ks[2], dim_v, dim_in), "bk": lin_b(ks[3], dim_v, dim_in),
        "wv": lin_w(ks[4], dim_v, dim_in), "bv": lin_b(ks[5], dim_v, dim_in),
        "wo": lin_w(ks[6], dim_v, dim_v),  "bo": lin_b(ks[7], dim_v, dim_v),
    }

    x = jax.random.normal(ks[8], (B, N, dim_in), jnp.float32)

    out = sab_forward(x, params, num_heads=num_heads)
    out = jax.block_until_ready(out)

    ref = sab_reference(x, params, num_heads=num_heads)
    assert out.shape == (B, N, dim_v)
    max_err = float(jnp.max(jnp.abs(out - ref)))
    # Tolerances loosened for bf16 MXU operands + approx reciprocal (per review guidance).
    assert jnp.allclose(out, ref, rtol=3e-2, atol=3e-2), f"mismatch vs reference, max_err={max_err}"

    print("KERNEL_OK")
</pallas_src>

<mosaic_0001>
module attributes {stable_mosaic.version = 11 : i64} {
  func.func @_sab_kernel(%arg0: i32, %arg1: memref<64x16xbf16, #tpu.memory_space<vmem>>, %arg2: memref<16x96xbf16, #tpu.memory_space<vmem>>, %arg3: memref<1x96xf32, #tpu.memory_space<vmem>>, %arg4: memref<32x32xbf16, #tpu.memory_space<vmem>>, %arg5: memref<1x32xf32, #tpu.memory_space<vmem>>, %arg6: memref<8x256xf32, #tpu.memory_space<vmem>>, %arg7: memref<8x8x32xf32, #tpu.memory_space<vmem>>) attributes {dimension_semantics = [#tpu.dimension_semantics<parallel>], iteration_bounds = array<i64: 1>, scalar_prefetch = 0 : i64, scratch_operands = 1 : i64, tpu.core_type = #tpu.core_type<tc>, window_params = [{transform_indices = @transform_0, window_bounds = array<i64: 64, 16>}, {pipeline_mode = #tpu.pipeline_mode<synchronous>, transform_indices = @transform_1, window_bounds = array<i64: 16, 96>}, {pipeline_mode = #tpu.pipeline_mode<synchronous>, transform_indices = @transform_2, window_bounds = array<i64: 1, 96>}, {pipeline_mode = #tpu.pipeline_mode<synchronous>, transform_indices = @transform_3, window_bounds = array<i64: 32, 32>}, {pipeline_mode = #tpu.pipeline_mode<synchronous>, transform_indices = @transform_4, window_bounds = array<i64: 1, 32>}, {transform_indices = @transform_5, window_bounds = array<i64: 8, 256>}]} {
    %c0 = arith.constant 0 : index
    %c0_0 = arith.constant 0 : index
    %0 = vector.load %arg1[%c0, %c0_0] : memref<64x16xbf16, #tpu.memory_space<vmem>>, vector<64x16xbf16>
    %c0_1 = arith.constant 0 : index
    %c0_2 = arith.constant 0 : index
    %1 = vector.load %arg2[%c0_1, %c0_2] : memref<16x96xbf16, #tpu.memory_space<vmem>>, vector<16x96xbf16>
    %c0_3 = arith.constant 0 : index
    %c0_4 = arith.constant 0 : index
    %2 = vector.load %arg3[%c0_3, %c0_4] : memref<1x96xf32, #tpu.memory_space<vmem>>, vector<1x96xf32>
    %cst = arith.constant dense<0.000000e+00> : vector<64x96xf32>
    %3 = tpu.matmul %0, %1, %cst {dimension_numbers = #tpu.dot_dimension_numbers<[1], [0], [0], [1], [0, 0, 1, 1], [], []>} : vector<64x16xbf16>, vector<16x96xbf16>, vector<64x96xf32> -> vector<64x96xf32>
    %4 = vector.broadcast %2 : vector<1x96xf32> to vector<64x96xf32>
    %5 = arith.addf %3, %4 : vector<64x96xf32>
    %6 = vector.extract_strided_slice %5 {offsets = [0, 0], sizes = [64, 32], strides = [1, 1]} : vector<64x96xf32> to vector<64x32xf32>
    %7 = vector.shape_cast %6 : vector<64x32xf32> to vector<8x8x32xf32>
    %8 = vector.extract_strided_slice %5 {offsets = [0, 32], sizes = [64, 32], strides = [1, 1]} : vector<64x96xf32> to vector<64x32xf32>
    %9 = vector.shape_cast %8 : vector<64x32xf32> to vector<8x8x32xf32>
    %10 = vector.extract_strided_slice %5 {offsets = [0, 64], sizes = [64, 32], strides = [1, 1]} : vector<64x96xf32> to vector<64x32xf32>
    %11 = vector.shape_cast %10 : vector<64x32xf32> to vector<8x8x32xf32>
    %12 = vector.extract_strided_slice %7 {offsets = [0, 0, 0], sizes = [8, 8, 8], strides = [1, 1, 1]} : vector<8x8x32xf32> to vector<8x8x8xf32>
    %13 = vector.extract_strided_slice %9 {offsets = [0, 0, 0], sizes = [8, 8, 8], strides = [1, 1, 1]} : vector<8x8x32xf32> to vector<8x8x8xf32>
    %14 = vector.extract_strided_slice %11 {offsets = [0, 0, 0], sizes = [8, 8, 8], strides = [1, 1, 1]} : vector<8x8x32xf32> to vector<8x8x8xf32>
    "tpu.trace_start"() <{level = 10 : i32, message = "bqd,bkd->bqk"}> : () -> ()
    %cst_5 = arith.constant dense<0.000000e+00> : vector<8x8x8xf32>
    %15 = tpu.matmul %12, %13, %cst_5 {dimension_numbers = #tpu.dot_dimension_numbers<[2], [2], [1], [1], [0, 0, 0, 1, 1, 1], [0], [0]>} : vector<8x8x8xf32>, vector<8x8x8xf32>, vector<8x8x8xf32> -> vector<8x8x8xf32>
    "tpu.trace_stop"() : () -> ()
    %cst_6 = arith.constant dense<0xFF800000> : vector<8x8xf32>
    %16 = vector.multi_reduction <maximumf>, %15, %cst_6 [2] : vector<8x8x8xf32> to vector<8x8xf32>
    %17 = vector.shape_cast %16 : vector<8x8xf32> to vector<8x8x1xf32>
    %18 = vector.broadcast %17 : vector<8x8x1xf32> to vector<8x8x8xf32>
    %19 = arith.subf %15, %18 : vector<8x8x8xf32>
    %20 = math.exp %19 : vector<8x8x8xf32>
    %cst_7 = arith.constant dense<0.000000e+00> : vector<8x8xf32>
    %21 = vector.multi_reduction <add>, %20, %cst_7 [2] : vector<8x8x8xf32> to vector<8x8xf32>
    %22 = vector.shape_cast %21 : vector<8x8xf32> to vector<8x8x1xf32>
    %23 = tpu.reciprocal %22 {approx = true} : vector<8x8x1xf32> -> vector<8x8x1xf32>
    %24 = vector.broadcast %23 : vector<8x8x1xf32> to vector<8x8x8xf32>
    %25 = arith.mulf %20, %24 : vector<8x8x8xf32>
    "tpu.trace_start"() <{level = 10 : i32, message = "bqk,bkd->bqd"}> : () -> ()
    %cst_8 = arith.constant dense<0.000000e+00> : vector<8x8x8xf32>
    %26 = tpu.matmul %25, %14, %cst_8 {dimension_numbers = #tpu.dot_dimension_numbers<[2], [1], [1], [2], [0, 0, 0, 1, 1, 2], [0], [0]>} : vector<8x8x8xf32>, vector<8x8x8xf32>, vector<8x8x8xf32> -> vector<8x8x8xf32>
    "tpu.trace_stop"() : () -> ()
    %c0_9 = arith.constant 0 : index
    %c0_10 = arith.constant 0 : index
    %c0_11 = arith.constant 0 : index
    %27 = vector.load %arg7[%c0_9, %c0_10, %c0_11] : memref<8x8x32xf32, #tpu.memory_space<vmem>>, vector<8x8x8xf32>
    tpu.vector_store %arg7[%c0_9, %c0_10, %c0_11], %26 {strides = array<i32>} : memref<8x8x32xf32, #tpu.memory_space<vmem>>, vector<8x8x8xf32>,
    %28 = vector.extract_strided_slice %7 {offsets = [0, 0, 8], sizes = [8, 8, 8], strides = [1, 1, 1]} : vector<8x8x32xf32> to vector<8x8x8xf32>
    %29 = vector.extract_strided_slice %9 {offsets = [0, 0, 8], sizes = [8, 8, 8], strides = [1, 1, 1]} : vector<8x8x32xf32> to vector<8x8x8xf32>
    %30 = vector.extract_strided_slice %11 {offsets = [0, 0, 8], sizes = [8, 8, 8], strides = [1, 1, 1]} : vector<8x8x32xf32> to vector<8x8x8xf32>
    "tpu.trace_start"() <{level = 10 : i32, message = "bqd,bkd->bqk"}> : () -> ()
    %cst_12 = arith.constant dense<0.000000e+00> : vector<8x8x8xf32>
    %31 = tpu.matmul %28, %29, %cst_12 {dimension_numbers = #tpu.dot_dimension_numbers<[2], [2], [1], [1], [0, 0, 0, 1, 1, 1], [0], [0]>} : vector<8x8x8xf32>, vector<8x8x8xf32>, vector<8x8x8xf32> -> vector<8x8x8xf32>
    "tpu.trace_stop"() : () -> ()
    %cst_13 = arith.constant dense<0xFF800000> : vector<8x8xf32>
    %32 = vector.multi_reduction <maximumf>, %31, %cst_13 [2] : vector<8x8x8xf32> to vector<8x8xf32>
    %33 = vector.shape_cast %32 : vector<8x8xf32> to vector<8x8x1xf32>
    %34 = vector.broadcast %33 : vector<8x8x1xf32> to vector<8x8x8xf32>
    %35 = arith.subf %31, %34 : vector<8x8x8xf32>
    %36 = math.exp %35 : vector<8x8x8xf32>
    %cst_14 = arith.constant dense<0.000000e+00> : vector<8x8xf32>
    %37 = vector.multi_reduction <add>, %36, %cst_14 [2] : vector<8x8x8xf32> to vector<8x8xf32>
    %38 = vector.shape_cast %37 : vector<8x8xf32> to vector<8x8x1xf32>
    %39 = tpu.reciprocal %38 {approx = true} : vector<8x8x1xf32> -> vector<8x8x1xf32>
    %40 = vector.broadcast %39 : vector<8x8x1xf32> to vector<8x8x8xf32>
    %41 = arith.mulf %36, %40 : vector<8x8x8xf32>
    "tpu.trace_start"() <{level = 10 : i32, message = "bqk,bkd->bqd"}> : () -> ()
    %cst_15 = arith.constant dense<0.000000e+00> : vector<8x8x8xf32>
    %42 = tpu.matmul %41, %30, %cst_15 {dimension_numbers = #tpu.dot_dimension_numbers<[2], [1], [1], [2], [0, 0, 0, 1, 1, 2], [0], [0]>} : vector<8x8x8xf32>, vector<8x8x8xf32>, vector<8x8x8xf32> -> vector<8x8x8xf32>
    "tpu.trace_stop"() : () -> ()
    %c0_16 = arith.constant 0 : index
    %c0_17 = arith.constant 0 : index
    %c8 = arith.constant 8 : index
    %43 = vector.load %arg7[%c0_16, %c0_17, %c8] : memref<8x8x32xf32, #tpu.memory_space<vmem>>, vector<8x8x8xf32>
    tpu.vector_store %arg7[%c0_16, %c0_17, %c8], %42 {strides = array<i32>} : memref<8x8x32xf32, #tpu.memory_space<vmem>>, vector<8x8x8xf32>,
    %44 = vector.extract_strided_slice %7 {offsets = [0, 0, 16], sizes = [8, 8, 8], strides = [1, 1, 1]} : vector<8x8x32xf32> to vector<8x8x8xf32>
    %45 = vector.extract_strided_slice %9 {offsets = [0, 0, 16], sizes = [8, 8, 8], strides = [1, 1, 1]} : vector<8x8x32xf32> to vector<8x8x8xf32>
    %46 = vector.extract_strided_slice %11 {offsets = [0, 0, 16], sizes = [8, 8, 8], strides = [1, 1, 1]} : vector<8x8x32xf32> to vector<8x8x8xf32>
    "tpu.trace_start"() <{level = 10 : i32, message = "bqd,bkd->bqk"}> : () -> ()
    %cst_18 = arith.constant dense<0.000000e+00> : vector<8x8x8xf32>
    %47 = tpu.matmul %44, %45, %cst_18 {dimension_numbers = #tpu.dot_dimension_numbers<[2], [2], [1], [1], [0, 0, 0, 1, 1, 1], [0], [0]>} : vector<8x8x8xf32>, vector<8x8x8xf32>, vector<8x8x8xf32> -> vector<8x8x8xf32>
    "tpu.trace_stop"() : () -> ()
    %cst_19 = arith.constant dense<0xFF800000> : vector<8x8xf32>
    %48 = vector.multi_reduction <maximumf>, %47, %cst_19 [2] : vector<8x8x8xf32> to vector<8x8xf32>
    %49 = vector.shape_cast %48 : vector<8x8xf32> to vector<8x8x1xf32>
    %50 = vector.broadcast %49 : vector<8x8x1xf32> to vector<8x8x8xf32>
    %51 = arith.subf %47, %50 : vector<8x8x8xf32>
    %52 = math.exp %51 : vector<8x8x8xf32>
    %cst_20 = arith.constant dense<0.000000e+00> : vector<8x8xf32>
    %53 = vector.multi_reduction <add>, %52, %cst_20 [2] : vector<8x8x8xf32> to vector<8x8xf32>
    %54 = vector.shape_cast %53 : vector<8x8xf32> to vector<8x8x1xf32>
    %55 = tpu.reciprocal %54 {approx = true} : vector<8x8x1xf32> -> vector<8x8x1xf32>
    %56 = vector.broadcast %55 : vector<8x8x1xf32> to vector<8x8x8xf32>
    %57 = arith.mulf %52, %56 : vector<8x8x8xf32>
    "tpu.trace_start"() <{level = 10 : i32, message = "bqk,bkd->bqd"}> : () -> ()
    %cst_21 = arith.constant dense<0.000000e+00> : vector<8x8x8xf32>
    %58 = tpu.matmul %57, %46, %cst_21 {dimension_numbers = #tpu.dot_dimension_numbers<[2], [1], [1], [2], [0, 0, 0, 1, 1, 2], [0], [0]>} : vector<8x8x8xf32>, vector<8x8x8xf32>, vector<8x8x8xf32> -> vector<8x8x8xf32>
    "tpu.trace_stop"() : () -> ()
    %c0_22 = arith.constant 0 : index
    %c0_23 = arith.constant 0 : index
    %c16 = arith.constant 16 : index
    %59 = vector.load %arg7[%c0_22, %c0_23, %c16] : memref<8x8x32xf32, #tpu.memory_space<vmem>>, vector<8x8x8xf32>
    tpu.vector_store %arg7[%c0_22, %c0_23, %c16], %58 {strides = array<i32>} : memref<8x8x32xf32, #tpu.memory_space<vmem>>, vector<8x8x8xf32>,
    %60 = vector.extract_strided_slice %7 {offsets = [0, 0, 24], sizes = [8, 8, 8], strides = [1, 1, 1]} : vector<8x8x32xf32> to vector<8x8x8xf32>
    %61 = vector.extract_strided_slice %9 {offsets = [0, 0, 24], sizes = [8, 8, 8], strides = [1, 1, 1]} : vector<8x8x32xf32> to vector<8x8x8xf32>
    %62 = vector.extract_strided_slice %11 {offsets = [0, 0, 24], sizes = [8, 8, 8], strides = [1, 1, 1]} : vector<8x8x32xf32> to vector<8x8x8xf32>
    "tpu.trace_start"() <{level = 10 : i32, message = "bqd,bkd->bqk"}> : () -> ()
    %cst_24 = arith.constant dense<0.000000e+00> : vector<8x8x8xf32>
    %63 = tpu.matmul %60, %61, %cst_24 {dimension_numbers = #tpu.dot_dimension_numbers<[2], [2], [1], [1], [0, 0, 0, 1, 1, 1], [0], [0]>} : vector<8x8x8xf32>, vector<8x8x8xf32>, vector<8x8x8xf32> -> vector<8x8x8xf32>
    "tpu.trace_stop"() : () -> ()
    %cst_25 = arith.constant dense<0xFF800000> : vector<8x8xf32>
    %64 = vector.multi_reduction <maximumf>, %63, %cst_25 [2] : vector<8x8x8xf32> to vector<8x8xf32>
    %65 = vector.shape_cast %64 : vector<8x8xf32> to vector<8x8x1xf32>
    %66 = vector.broadcast %65 : vector<8x8x1xf32> to vector<8x8x8xf32>
    %67 = arith.subf %63, %66 : vector<8x8x8xf32>
    %68 = math.exp %67 : vector<8x8x8xf32>
    %cst_26 = arith.constant dense<0.000000e+00> : vector<8x8xf32>
    %69 = vector.multi_reduction <add>, %68, %cst_26 [2] : vector<8x8x8xf32> to vector<8x8xf32>
    %70 = vector.shape_cast %69 : vector<8x8xf32> to vector<8x8x1xf32>
    %71 = tpu.reciprocal %70 {approx = true} : vector<8x8x1xf32> -> vector<8x8x1xf32>
    %72 = vector.broadcast %71 : vector<8x8x1xf32> to vector<8x8x8xf32>
    %73 = arith.mulf %68, %72 : vector<8x8x8xf32>
    "tpu.trace_start"() <{level = 10 : i32, message = "bqk,bkd->bqd"}> : () -> ()
    %cst_27 = arith.constant dense<0.000000e+00> : vector<8x8x8xf32>
    %74 = tpu.matmul %73, %62, %cst_27 {dimension_numbers = #tpu.dot_dimension_numbers<[2], [1], [1], [2], [0, 0, 0, 1, 1, 2], [0], [0]>} : vector<8x8x8xf32>, vector<8x8x8xf32>, vector<8x8x8xf32> -> vector<8x8x8xf32>
    "tpu.trace_stop"() : () -> ()
    %c0_28 = arith.constant 0 : index
    %c0_29 = arith.constant 0 : index
    %c24 = arith.constant 24 : index
    %75 = vector.load %arg7[%c0_28, %c0_29, %c24] : memref<8x8x32xf32, #tpu.memory_space<vmem>>, vector<8x8x8xf32>
    tpu.vector_store %arg7[%c0_28, %c0_29, %c24], %74 {strides = array<i32>} : memref<8x8x32xf32, #tpu.memory_space<vmem>>, vector<8x8x8xf32>,
    %c0_30 = arith.constant 0 : index
    %c0_31 = arith.constant 0 : index
    %c0_32 = arith.constant 0 : index
    %76 = vector.load %arg7[%c0_30, %c0_31, %c0_32] : memref<8x8x32xf32, #tpu.memory_space<vmem>>, vector<8x8x32xf32>
    %77 = arith.addf %7, %76 : vector<8x8x32xf32>
    %78 = vector.shape_cast %77 : vector<8x8x32xf32> to vector<64x32xf32>
    %79 = arith.truncf %78 : vector<64x32xf32> to vector<64x32xbf16>
    %c0_33 = arith.constant 0 : index
    %c0_34 = arith.constant 0 : index
    %80 = vector.load %arg4[%c0_33, %c0_34] : memref<32x32xbf16, #tpu.memory_space<vmem>>, vector<32x32xbf16>
    %cst_35 = arith.constant dense<0.000000e+00> : vector<64x32xf32>
    %81 = tpu.matmul %79, %80, %cst_35 {dimension_numbers = #tpu.dot_dimension_numbers<[1], [0], [0], [1], [0, 0, 1, 1], [], []>} : vector<64x32xbf16>, vector<32x32xbf16>, vector<64x32xf32> -> vector<64x32xf32>
    %c0_36 = arith.constant 0 : index
    %c0_37 = arith.constant 0 : index
    %82 = vector.load %arg5[%c0_36, %c0_37] : memref<1x32xf32, #tpu.memory_space<vmem>>, vector<1x32xf32>
    %83 = vector.broadcast %82 : vector<1x32xf32> to vector<64x32xf32>
    %84 = arith.addf %81, %83 : vector<64x32xf32>
    %cst_38 = arith.constant 0.000000e+00 : f32
    %85 = vector.broadcast %cst_38 : f32 to vector<64x32xf32>
    %86 = arith.maximumf %84, %85 : vector<64x32xf32>
    %87 = arith.addf %78, %86 : vector<64x32xf32>
    %88 = vector.shape_cast %87 : vector<64x32xf32> to vector<8x256xf32>
    %c0_39 = arith.constant 0 : index
    %c0_40 = arith.constant 0 : index
    %89 = vector.load %arg6[%c0_39, %c0_40] : memref<8x256xf32, #tpu.memory_space<vmem>>, vector<8x256xf32>
    tpu.vector_store %arg6[%c0_39, %c0_40], %88 {strides = array<i32>} : memref<8x256xf32, #tpu.memory_space<vmem>>, vector<8x256xf32>,
    return
  }
  func.func @transform_0(%arg0: i32) -> (i32, i32) {
    %c0_i32 = arith.constant 0 : i32
    %c0_i32_0 = arith.constant 0 : i32
    return %arg0, %c0_i32 : i32, i32
  }
  func.func @transform_1(%arg0: i32) -> (i32, i32) {
    %c0_i32 = arith.constant 0 : i32
    %c0_i32_0 = arith.constant 0 : i32
    %c0_i32_1 = arith.constant 0 : i32
    return %c0_i32, %c0_i32_0 : i32, i32
  }
  func.func @transform_2(%arg0: i32) -> (i32, i32) {
    %c0_i32 = arith.constant 0 : i32
    %c0_i32_0 = arith.constant 0 : i32
    %c0_i32_1 = arith.constant 0 : i32
    return %c0_i32, %c0_i32_0 : i32, i32
  }
  func.func @transform_3(%arg0: i32) -> (i32, i32) {
    %c0_i32 = arith.constant 0 : i32
    %c0_i32_0 = arith.constant 0 : i32
    %c0_i32_1 = arith.constant 0 : i32
    return %c0_i32, %c0_i32_0 : i32, i32
  }
  func.func @transform_4(%arg0: i32) -> (i32, i32) {
    %c0_i32 = arith.constant 0 : i32
    %c0_i32_0 = arith.constant 0 : i32
    %c0_i32_1 = arith.constant 0 : i32
    return %c0_i32, %c0_i32_0 : i32, i32
  }
  func.func @transform_5(%arg0: i32) -> (i32, i32) {
    %c0_i32 = arith.constant 0 : i32
    %c0_i32_0 = arith.constant 0 : i32
    return %arg0, %c0_i32 : i32, i32
  }
}

module attributes {stable_mosaic.version = 11 : i64} {
  func.func @_sab_kernel(%arg0: i32, %arg1: memref<64x16xbf16, #tpu.memory_space<vmem>>, %arg2: memref<16x96xbf16, #tpu.memory_space<vmem>>, %arg3: memref<1x96xf32, #tpu.memory_space<vmem>>, %arg4: memref<32x32xbf16, #tpu.memory_space<vmem>>, %arg5: memref<1x32xf32, #tpu.memory_space<vmem>>, %arg6: memref<64x32xf32, #tpu.memory_space<vmem>>, %arg7: memref<8x8x32xf32, #tpu.memory_space<vmem>>) attributes {dimension_semantics = [#tpu.dimension_semantics<parallel>], iteration_bounds = array<i64: 1>, scalar_prefetch = 0 : i64, scratch_operands = 1 : i64, tpu.core_type = #tpu.core_type<tc>, window_params = [{transform_indices = @transform_0, window_bounds = array<i64: 64, 16>}, {pipeline_mode = #tpu.pipeline_mode<synchronous>, transform_indices = @transform_1, window_bounds = array<i64: 16, 96>}, {pipeline_mode = #tpu.pipeline_mode<synchronous>, transform_indices = @transform_2, window_bounds = array<i64: 1, 96>}, {pipeline_mode = #tpu.pipeline_mode<synchronous>, transform_indices = @transform_3, window_bounds = array<i64: 32, 32>}, {pipeline_mode = #tpu.pipeline_mode<synchronous>, transform_indices = @transform_4, window_bounds = array<i64: 1, 32>}, {transform_indices = @transform_5, window_bounds = array<i64: 64, 32>}]} {
    %c0 = arith.constant 0 : index
    %c0_0 = arith.constant 0 : index
    %0 = vector.load %arg1[%c0, %c0_0] : memref<64x16xbf16, #tpu.memory_space<vmem>>, vector<64x16xbf16>
    %c0_1 = arith.constant 0 : index
    %c0_2 = arith.constant 0 : index
    %1 = vector.load %arg2[%c0_1, %c0_2] : memref<16x96xbf16, #tpu.memory_space<vmem>>, vector<16x96xbf16>
    %c0_3 = arith.constant 0 : index
    %c0_4 = arith.constant 0 : index
    %2 = vector.load %arg3[%c0_3, %c0_4] : memref<1x96xf32, #tpu.memory_space<vmem>>, vector<1x96xf32>
    %cst = arith.constant dense<0.000000e+00> : vector<64x96xf32>
    %3 = tpu.matmul %0, %1, %cst {dimension_numbers = #tpu.dot_dimension_numbers<[1], [0], [0], [1], [0, 0, 1, 1], [], []>} : vector<64x16xbf16>, vector<16x96xbf16>, vector<64x96xf32> -> vector<64x96xf32>
    %4 = vector.broadcast %2 : vector<1x96xf32> to vector<64x96xf32>
    %5 = arith.addf %3, %4 : vector<64x96xf32>
    %6 = vector.extract_strided_slice %5 {offsets = [0, 0], sizes = [64, 32], strides = [1, 1]} : vector<64x96xf32> to vector<64x32xf32>
    %7 = vector.shape_cast %6 : vector<64x32xf32> to vector<8x8x32xf32>
    %8 = vector.extract_strided_slice %5 {offsets = [0, 32], sizes = [64, 32], strides = [1, 1]} : vector<64x96xf32> to vector<64x32xf32>
    %9 = vector.shape_cast %8 : vector<64x32xf32> to vector<8x8x32xf32>
    %10 = vector.extract_strided_slice %5 {offsets = [0, 64], sizes = [64, 32], strides = [1, 1]} : vector<64x96xf32> to vector<64x32xf32>
    %11 = vector.shape_cast %10 : vector<64x32xf32> to vector<8x8x32xf32>
    %12 = vector.extract_strided_slice %7 {offsets = [0, 0, 0], sizes = [8, 8, 8], strides = [1, 1, 1]} : vector<8x8x32xf32> to vector<8x8x8xf32>
    %13 = vector.extract_strided_slice %9 {offsets = [0, 0, 0], sizes = [8, 8, 8], strides = [1, 1, 1]} : vector<8x8x32xf32> to vector<8x8x8xf32>
    %14 = vector.extract_strided_slice %11 {offsets = [0, 0, 0], sizes = [8, 8, 8], strides = [1, 1, 1]} : vector<8x8x32xf32> to vector<8x8x8xf32>
    "tpu.trace_start"() <{level = 10 : i32, message = "bqd,bkd->bqk"}> : () -> ()
    %cst_5 = arith.constant dense<0.000000e+00> : vector<8x8x8xf32>
    %15 = tpu.matmul %12, %13, %cst_5 {dimension_numbers = #tpu.dot_dimension_numbers<[2], [2], [1], [1], [0, 0, 0, 1, 1, 1], [0], [0]>} : vector<8x8x8xf32>, vector<8x8x8xf32>, vector<8x8x8xf32> -> vector<8x8x8xf32>
    "tpu.trace_stop"() : () -> ()
    %cst_6 = arith.constant dense<0xFF800000> : vector<8x8xf32>
    %16 = vector.multi_reduction <maximumf>, %15, %cst_6 [2] : vector<8x8x8xf32> to vector<8x8xf32>
    %17 = vector.shape_cast %16 : vector<8x8xf32> to vector<8x8x1xf32>
    %18 = vector.broadcast %17 : vector<8x8x1xf32> to vector<8x8x8xf32>
    %19 = arith.subf %15, %18 : vector<8x8x8xf32>
    %20 = math.exp %19 : vector<8x8x8xf32>
    %cst_7 = arith.constant dense<0.000000e+00> : vector<8x8xf32>
    %21 = vector.multi_reduction <add>, %20, %cst_7 [2] : vector<8x8x8xf32> to vector<8x8xf32>
    %22 = vector.shape_cast %21 : vector<8x8xf32> to vector<8x8x1xf32>
    %23 = tpu.reciprocal %22 {approx = true} : vector<8x8x1xf32> -> vector<8x8x1xf32>
    %24 = vector.broadcast %23 : vector<8x8x1xf32> to vector<8x8x8xf32>
    %25 = arith.mulf %20, %24 : vector<8x8x8xf32>
    "tpu.trace_start"() <{level = 10 : i32, message = "bqk,bkd->bqd"}> : () -> ()
    %cst_8 = arith.constant dense<0.000000e+00> : vector<8x8x8xf32>
    %26 = tpu.matmul %25, %14, %cst_8 {dimension_numbers = #tpu.dot_dimension_numbers<[2], [1], [1], [2], [0, 0, 0, 1, 1, 2], [0], [0]>} : vector<8x8x8xf32>, vector<8x8x8xf32>, vector<8x8x8xf32> -> vector<8x8x8xf32>
    "tpu.trace_stop"() : () -> ()
    %c0_9 = arith.constant 0 : index
    %c0_10 = arith.constant 0 : index
    %c0_11 = arith.constant 0 : index
    %27 = vector.load %arg7[%c0_9, %c0_10, %c0_11] : memref<8x8x32xf32, #tpu.memory_space<vmem>>, vector<8x8x8xf32>
    tpu.vector_store %arg7[%c0_9, %c0_10, %c0_11], %26 {strides = array<i32>} : memref<8x8x32xf32, #tpu.memory_space<vmem>>, vector<8x8x8xf32>,
    %28 = vector.extract_strided_slice %7 {offsets = [0, 0, 8], sizes = [8, 8, 8], strides = [1, 1, 1]} : vector<8x8x32xf32> to vector<8x8x8xf32>
    %29 = vector.extract_strided_slice %9 {offsets = [0, 0, 8], sizes = [8, 8, 8], strides = [1, 1, 1]} : vector<8x8x32xf32> to vector<8x8x8xf32>
    %30 = vector.extract_strided_slice %11 {offsets = [0, 0, 8], sizes = [8, 8, 8], strides = [1, 1, 1]} : vector<8x8x32xf32> to vector<8x8x8xf32>
    "tpu.trace_start"() <{level = 10 : i32, message = "bqd,bkd->bqk"}> : () -> ()
    %cst_12 = arith.constant dense<0.000000e+00> : vector<8x8x8xf32>
    %31 = tpu.matmul %28, %29, %cst_12 {dimension_numbers = #tpu.dot_dimension_numbers<[2], [2], [1], [1], [0, 0, 0, 1, 1, 1], [0], [0]>} : vector<8x8x8xf32>, vector<8x8x8xf32>, vector<8x8x8xf32> -> vector<8x8x8xf32>
    "tpu.trace_stop"() : () -> ()
    %cst_13 = arith.constant dense<0xFF800000> : vector<8x8xf32>
    %32 = vector.multi_reduction <maximumf>, %31, %cst_13 [2] : vector<8x8x8xf32> to vector<8x8xf32>
    %33 = vector.shape_cast %32 : vector<8x8xf32> to vector<8x8x1xf32>
    %34 = vector.broadcast %33 : vector<8x8x1xf32> to vector<8x8x8xf32>
    %35 = arith.subf %31, %34 : vector<8x8x8xf32>
    %36 = math.exp %35 : vector<8x8x8xf32>
    %cst_14 = arith.constant dense<0.000000e+00> : vector<8x8xf32>
    %37 = vector.multi_reduction <add>, %36, %cst_14 [2] : vector<8x8x8xf32> to vector<8x8xf32>
    %38 = vector.shape_cast %37 : vector<8x8xf32> to vector<8x8x1xf32>
    %39 = tpu.reciprocal %38 {approx = true} : vector<8x8x1xf32> -> vector<8x8x1xf32>
    %40 = vector.broadcast %39 : vector<8x8x1xf32> to vector<8x8x8xf32>
    %41 = arith.mulf %36, %40 : vector<8x8x8xf32>
    "tpu.trace_start"() <{level = 10 : i32, message = "bqk,bkd->bqd"}> : () -> ()
    %cst_15 = arith.constant dense<0.000000e+00> : vector<8x8x8xf32>
    %42 = tpu.matmul %41, %30, %cst_15 {dimension_numbers = #tpu.dot_dimension_numbers<[2], [1], [1], [2], [0, 0, 0, 1, 1, 2], [0], [0]>} : vector<8x8x8xf32>, vector<8x8x8xf32>, vector<8x8x8xf32> -> vector<8x8x8xf32>
    "tpu.trace_stop"() : () -> ()
    %c0_16 = arith.constant 0 : index
    %c0_17 = arith.constant 0 : index
    %c8 = arith.constant 8 : index
    %43 = vector.load %arg7[%c0_16, %c0_17, %c8] : memref<8x8x32xf32, #tpu.memory_space<vmem>>, vector<8x8x8xf32>
    tpu.vector_store %arg7[%c0_16, %c0_17, %c8], %42 {strides = array<i32>} : memref<8x8x32xf32, #tpu.memory_space<vmem>>, vector<8x8x8xf32>,
    %44 = vector.extract_strided_slice %7 {offsets = [0, 0, 16], sizes = [8, 8, 8], strides = [1, 1, 1]} : vector<8x8x32xf32> to vector<8x8x8xf32>
    %45 = vector.extract_strided_slice %9 {offsets = [0, 0, 16], sizes = [8, 8, 8], strides = [1, 1, 1]} : vector<8x8x32xf32> to vector<8x8x8xf32>
    %46 = vector.extract_strided_slice %11 {offsets = [0, 0, 16], sizes = [8, 8, 8], strides = [1, 1, 1]} : vector<8x8x32xf32> to vector<8x8x8xf32>
    "tpu.trace_start"() <{level = 10 : i32, message = "bqd,bkd->bqk"}> : () -> ()
    %cst_18 = arith.constant dense<0.000000e+00> : vector<8x8x8xf32>
    %47 = tpu.matmul %44, %45, %cst_18 {dimension_numbers = #tpu.dot_dimension_numbers<[2], [2], [1], [1], [0, 0, 0, 1, 1, 1], [0], [0]>} : vector<8x8x8xf32>, vector<8x8x8xf32>, vector<8x8x8xf32> -> vector<8x8x8xf32>
    "tpu.trace_stop"() : () -> ()
    %cst_19 = arith.constant dense<0xFF800000> : vector<8x8xf32>
    %48 = vector.multi_reduction <maximumf>, %47, %cst_19 [2] : vector<8x8x8xf32> to vector<8x8xf32>
    %49 = vector.shape_cast %48 : vector<8x8xf32> to vector<8x8x1xf32>
    %50 = vector.broadcast %49 : vector<8x8x1xf32> to vector<8x8x8xf32>
    %51 = arith.subf %47, %50 : vector<8x8x8xf32>
    %52 = math.exp %51 : vector<8x8x8xf32>
    %cst_20 = arith.constant dense<0.000000e+00> : vector<8x8xf32>
    %53 = vector.multi_reduction <add>, %52, %cst_20 [2] : vector<8x8x8xf32> to vector<8x8xf32>
    %54 = vector.shape_cast %53 : vector<8x8xf32> to vector<8x8x1xf32>
    %55 = tpu.reciprocal %54 {approx = true} : vector<8x8x1xf32> -> vector<8x8x1xf32>
    %56 = vector.broadcast %55 : vector<8x8x1xf32> to vector<8x8x8xf32>
    %57 = arith.mulf %52, %56 : vector<8x8x8xf32>
    "tpu.trace_start"() <{level = 10 : i32, message = "bqk,bkd->bqd"}> : () -> ()
    %cst_21 = arith.constant dense<0.000000e+00> : vector<8x8x8xf32>
    %58 = tpu.matmul %57, %46, %cst_21 {dimension_numbers = #tpu.dot_dimension_numbers<[2], [1], [1], [2], [0, 0, 0, 1, 1, 2], [0], [0]>} : vector<8x8x8xf32>, vector<8x8x8xf32>, vector<8x8x8xf32> -> vector<8x8x8xf32>
    "tpu.trace_stop"() : () -> ()
    %c0_22 = arith.constant 0 : index
    %c0_23 = arith.constant 0 : index
    %c16 = arith.constant 16 : index
    %59 = vector.load %arg7[%c0_22, %c0_23, %c16] : memref<8x8x32xf32, #tpu.memory_space<vmem>>, vector<8x8x8xf32>
    tpu.vector_store %arg7[%c0_22, %c0_23, %c16], %58 {strides = array<i32>} : memref<8x8x32xf32, #tpu.memory_space<vmem>>, vector<8x8x8xf32>,
    %60 = vector.extract_strided_slice %7 {offsets = [0, 0, 24], sizes = [8, 8, 8], strides = [1, 1, 1]} : vector<8x8x32xf32> to vector<8x8x8xf32>
    %61 = vector.extract_strided_slice %9 {offsets = [0, 0, 24], sizes = [8, 8, 8], strides = [1, 1, 1]} : vector<8x8x32xf32> to vector<8x8x8xf32>
    %62 = vector.extract_strided_slice %11 {offsets = [0, 0, 24], sizes = [8, 8, 8], strides = [1, 1, 1]} : vector<8x8x32xf32> to vector<8x8x8xf32>
    "tpu.trace_start"() <{level = 10 : i32, message = "bqd,bkd->bqk"}> : () -> ()
    %cst_24 = arith.constant dense<0.000000e+00> : vector<8x8x8xf32>
    %63 = tpu.matmul %60, %61, %cst_24 {dimension_numbers = #tpu.dot_dimension_numbers<[2], [2], [1], [1], [0, 0, 0, 1, 1, 1], [0], [0]>} : vector<8x8x8xf32>, vector<8x8x8xf32>, vector<8x8x8xf32> -> vector<8x8x8xf32>
    "tpu.trace_stop"() : () -> ()
    %cst_25 = arith.constant dense<0xFF800000> : vector<8x8xf32>
    %64 = vector.multi_reduction <maximumf>, %63, %cst_25 [2] : vector<8x8x8xf32> to vector<8x8xf32>
    %65 = vector.shape_cast %64 : vector<8x8xf32> to vector<8x8x1xf32>
    %66 = vector.broadcast %65 : vector<8x8x1xf32> to vector<8x8x8xf32>
    %67 = arith.subf %63, %66 : vector<8x8x8xf32>
    %68 = math.exp %67 : vector<8x8x8xf32>
    %cst_26 = arith.constant dense<0.000000e+00> : vector<8x8xf32>
    %69 = vector.multi_reduction <add>, %68, %cst_26 [2] : vector<8x8x8xf32> to vector<8x8xf32>
    %70 = vector.shape_cast %69 : vector<8x8xf32> to vector<8x8x1xf32>
    %71 = tpu.reciprocal %70 {approx = true} : vector<8x8x1xf32> -> vector<8x8x1xf32>
    %72 = vector.broadcast %71 : vector<8x8x1xf32> to vector<8x8x8xf32>
    %73 = arith.mulf %68, %72 : vector<8x8x8xf32>
    "tpu.trace_start"() <{level = 10 : i32, message = "bqk,bkd->bqd"}> : () -> ()
    %cst_27 = arith.constant dense<0.000000e+00> : vector<8x8x8xf32>
    %74 = tpu.matmul %73, %62, %cst_27 {dimension_numbers = #tpu.dot_dimension_numbers<[2], [1], [1], [2], [0, 0, 0, 1, 1, 2], [0], [0]>} : vector<8x8x8xf32>, vector<8x8x8xf32>, vector<8x8x8xf32> -> vector<8x8x8xf32>
    "tpu.trace_stop"() : () -> ()
    %c0_28 = arith.constant 0 : index
    %c0_29 = arith.constant 0 : index
    %c24 = arith.constant 24 : index
    %75 = vector.load %arg7[%c0_28, %c0_29, %c24] : memref<8x8x32xf32, #tpu.memory_space<vmem>>, vector<8x8x8xf32>
    tpu.vector_store %arg7[%c0_28, %c0_29, %c24], %74 {strides = array<i32>} : memref<8x8x32xf32, #tpu.memory_space<vmem>>, vector<8x8x8xf32>,
    %c0_30 = arith.constant 0 : index
    %c0_31 = arith.constant 0 : index
    %c0_32 = arith.constant 0 : index
    %76 = vector.load %arg7[%c0_30, %c0_31, %c0_32] : memref<8x8x32xf32, #tpu.memory_space<vmem>>, vector<8x8x32xf32>
    %77 = arith.addf %7, %76 : vector<8x8x32xf32>
    %78 = vector.shape_cast %77 : vector<8x8x32xf32> to vector<64x32xf32>
    %79 = arith.truncf %78 : vector<64x32xf32> to vector<64x32xbf16>
    %c0_33 = arith.constant 0 : index
    %c0_34 = arith.constant 0 : index
    %80 = vector.load %arg4[%c0_33, %c0_34] : memref<32x32xbf16, #tpu.memory_space<vmem>>, vector<32x32xbf16>
    %cst_35 = arith.constant dense<0.000000e+00> : vector<64x32xf32>
    %81 = tpu.matmul %79, %80, %cst_35 {dimension_numbers = #tpu.dot_dimension_numbers<[1], [0], [0], [1], [0, 0, 1, 1], [], []>} : vector<64x32xbf16>, vector<32x32xbf16>, vector<64x32xf32> -> vector<64x32xf32>
    %c0_36 = arith.constant 0 : index
    %c0_37 = arith.constant 0 : index
    %82 = vector.load %arg5[%c0_36, %c0_37] : memref<1x32xf32, #tpu.memory_space<vmem>>, vector<1x32xf32>
    %83 = vector.broadcast %82 : vector<1x32xf32> to vector<64x32xf32>
    %84 = arith.addf %81, %83 : vector<64x32xf32>
    %cst_38 = arith.constant 0.000000e+00 : f32
    %85 = vector.broadcast %cst_38 : f32 to vector<64x32xf32>
    %86 = arith.maximumf %84, %85 : vector<64x32xf32>
    %87 = arith.addf %78, %86 : vector<64x32xf32>
    %c0_39 = arith.constant 0 : index
    %c0_40 = arith.constant 0 : index
    %88 = vector.load %arg6[%c0_39, %c0_40] : memref<64x32xf32, #tpu.memory_space<vmem>>, vector<64x32xf32>
    tpu.vector_store %arg6[%c0_39, %c0_40], %87 {strides = array<i32>} : memref<64x32xf32, #tpu.memory_space<vmem>>, vector<64x32xf32>,
    return
  }
  func.func @transform_0(%arg0: i32) -> (i32, i32) {
    %c0_i32 = arith.constant 0 : i32
    %c0_i32_0 = arith.constant 0 : i32
    return %arg0, %c0_i32 : i32, i32
  }
  func.func @transform_1(%arg0: i32) -> (i32, i32) {
    %c0_i32 = arith.constant 0 : i32
    %c0_i32_0 = arith.constant 0 : i32
    %c0_i32_1 = arith.constant 0 : i32
    return %c0_i32, %c0_i32_0 : i32, i32
  }
  func.func @transform_2(%arg0: i32) -> (i32, i32) {
    %c0_i32 = arith.constant 0 : i32
    %c0_i32_0 = arith.constant 0 : i32
    %c0_i32_1 = arith.constant 0 : i32
    return %c0_i32, %c0_i32_0 : i32, i32
  }
  func.func @transform_3(%arg0: i32) -> (i32, i32) {
    %c0_i32 = arith.constant 0 : i32
    %c0_i32_0 = arith.constant 0 : i32
    %c0_i32_1 = arith.constant 0 : i32
    return %c0_i32, %c0_i32_0 : i32, i32
  }
  func.func @transform_4(%arg0: i32) -> (i32, i32) {
    %c0_i32 = arith.constant 0 : i32
    %c0_i32_0 = arith.constant 0 : i32
    %c0_i32_1 = arith.constant 0 : i32
    return %c0_i32, %c0_i32_0 : i32, i32
  }
  func.func @transform_5(%arg0: i32) -> (i32, i32) {
    %c0_i32 = arith.constant 0 : i32
    %c0_i32_0 = arith.constant 0 : i32
    return %arg0, %c0_i32 : i32, i32
  }
}

</mosaic_0001>

<llo_original>
// kernel: tpu_custom_call.1
$region0: #{tpu_custom_call.1}
  #allocation0 [shape = 'u32[]', space=smem, size = 0x4, offset = 0x4, fixed_abs, tag = 'smem constant byte address 0x4 - core index']
  #allocation1 [shape = 'u32[144,128]{1,0:T(1,128)}', space=vmem, size = 0x12000, scoped, tag = 'internal scratch']
  #allocation2 [shape = 'f32[8,8,32]{2,1,0:T(8,128)}', space=vmem, size = 0x8000, scoped, tag = 'scratch operand']
  %s0 = inlined_call_operand.vmem [shape: bf16[64,16], index: 0, kind: input, shape index: {}]
  %s1 = inlined_call_operand.vmem [shape: bf16[16,96], index: 1, kind: input, shape index: {}]
  %s2 = inlined_call_operand.vmem [shape: f32[1,96], index: 2, kind: input, shape index: {}]
  %s3 = inlined_call_operand.vmem [shape: bf16[32,32], index: 3, kind: input, shape index: {}]
  %s4 = inlined_call_operand.vmem [shape: f32[1,32], index: 4, kind: input, shape index: {}]
  %s5 = inlined_call_operand.vmem [shape: f32[64,32], index: 5, kind: output, shape index: {}]
  %s6 = sld [smem:[#allocation0]]
  $region30: #{tpu_custom_call.1} parent=0
    _
  %s8 = ssub.s32 1, %s6
  %s9 = scalar_select 0, %s8, %s6
  // Predicated region
  $region2: #{tpu_custom_call.1} parent=0 // pred_check
    _
  $region3: #{tpu_custom_call.1} parent=0 // pred_check_branch
    %11 = sbr.rel (0) target = $region5
  $region4: #{tpu_custom_call.1} parent=0 // pred_region
    _
  $region5: #{tpu_custom_call.1} parent=0 // pred_fallthru
    _
  // Predicated region
  $region6: #{tpu_custom_call.1} parent=0 // pred_check
    _
  $region7: #{tpu_custom_call.1} parent=0 // pred_check_branch
    %13 = sbr.rel (0) target = $region9
  $region8: #{tpu_custom_call.1} parent=0 // pred_region
    _
  $region9: #{tpu_custom_call.1} parent=0 // pred_fallthru
    _
  // Predicated region
  $region10: #{tpu_custom_call.1} parent=0 // pred_check
    _
  $region11: #{tpu_custom_call.1} parent=0 // pred_check_branch
    %15 = sbr.rel (0) target = $region13
  $region12: #{tpu_custom_call.1} parent=0 // pred_region
    _
  $region13: #{tpu_custom_call.1} parent=0 // pred_fallthru
    _
  // Predicated region
  $region14: #{tpu_custom_call.1} parent=0 // pred_check
    _
  $region15: #{tpu_custom_call.1} parent=0 // pred_check_branch
    %17 = sbr.rel (0) target = $region17
  $region16: #{tpu_custom_call.1} parent=0 // pred_region
    _
  $region17: #{tpu_custom_call.1} parent=0 // pred_fallthru
    _
  // Predicated region
  $region18: #{tpu_custom_call.1} parent=0 // pred_check
    _
  $region19: #{tpu_custom_call.1} parent=0 // pred_check_branch
    %19 = sbr.rel (0) target = $region21
  $region20: #{tpu_custom_call.1} parent=0 // pred_region
    _
  $region21: #{tpu_custom_call.1} parent=0 // pred_fallthru
    _
  %v21 = vld [vmem:[%s0] sm:$0xf]
  %v22 = vld [vmem:[%s0 + $0x4] sm:$0xf]
  %v23 = vld [vmem:[%s0 + $0x8] sm:$0xf]
  %v24 = vld [vmem:[%s0 + $0xc] sm:$0xf]
  %v25 = vld [vmem:[%s0 + $0x10] sm:$0xf]
  %v26 = vld [vmem:[%s0 + $0x14] sm:$0xf]
  %v27 = vld [vmem:[%s0 + $0x18] sm:$0xf]
  %v28 = vld [vmem:[%s0 + $0x1c] sm:$0xf]
  %v29 = vld [vmem:[%s1] sm:$0xf]
  %v30 = vld [vmem:[%s1 + $0x4] sm:$0xf]
  %v31 = vld [vmem:[%s2] sm:$0x1]
  %v33 = vlaneseq
  %v34 = vshrl.u32 %v33, 7
  %v35 = vsub.s32 0, %v34
  %v36 = vrot.slane %v31, %v35
  %v46 = vunpack.c.l.b16 %v21
  %v47 = vunpack.c.l.b16 %v22
  %v48 = vunpack.c.l.b16 %v23
  %v49 = vunpack.c.l.b16 %v24
  %v50 = vunpack.c.l.b16 %v25
  %v51 = vunpack.c.l.b16 %v26
  %v52 = vunpack.c.l.b16 %v27
  %v53 = vunpack.c.l.b16 %v28
  %v54 = vpack.c.b16 %v47, %v46
  %v55 = vpack.c.b16 %v49, %v48
  %v56 = vpack.c.b16 %v51, %v50
  %v57 = vpack.c.b16 %v53, %v52
  %v60 = vunpack.c.l.b16 %v29
  %v61 = vunpack.c.l.b16 %v30
  %v62 = vpack.c.b16 %v61, %v60
  %vm64 = vcmask 130048
  %v66 = vsel %vm64, %v54, 0
  %v69 = vsel %vm64, %v55, 0
  %v72 = vsel %vm64, %v56, 0
  %v75 = vsel %vm64, %v57, 0
  %77 = vmatprep.subr.bf16.mxu0 0
  %78 = vmatpush1.bf16.msra.mxu0 %v62
  %79 = vmatprep.subr.bf16.mxu0 0
  %80 = vmatpush1.bf16.msra.mxu0 0
  %81 = vmatprep.subr.bf16.mxu0 0
  %82 = vmatpush1.bf16.msra.mxu0 0
  %83 = vmatprep.subr.bf16.mxu0 0
  %84 = vmatpush1.bf16.msra.mxu0 0
  %85 = vmatprep.subr.bf16.mxu0 0
  %86 = vmatpush1.bf16.msra.mxu0 0
  %87 = vmatprep.subr.bf16.mxu0 0
  %88 = vmatpush1.bf16.msra.mxu0 0
  %89 = vmatprep.subr.bf16.mxu0 0
  %90 = vmatpush1.bf16.msra.mxu0 0
  %91 = vmatprep.subr.bf16.mxu0 0
  %92 = vmatpush1.bf16.msra.mxu0 0
  %93 = vmatprep.subr.bf16.mxu0 0
  %94 = vmatpush1.bf16.msra.mxu0 0
  %95 = vmatprep.subr.bf16.mxu0 0
  %96 = vmatpush1.bf16.msra.mxu0 0
  %97 = vmatprep.subr.bf16.mxu0 0
  %98 = vmatpush1.bf16.msra.mxu0 0
  %99 = vmatprep.subr.bf16.mxu0 0
  %100 = vmatpush1.bf16.msra.mxu0 0
  %101 = vmatprep.subr.bf16.mxu0 0
  %102 = vmatpush1.bf16.msra.mxu0 0
  %103 = vmatprep.subr.bf16.mxu0 0
  %104 = vmatpush1.bf16.msra.mxu0 0
  %105 = vmatprep.subr.bf16.mxu0 0
  %106 = vmatpush1.bf16.msra.mxu0 0
  %107 = vmatprep.subr.bf16.mxu0 0
  %108 = vmatpush1.bf16.msra.mxu0 0
  %109 = vmatprep.mubr.bf16.mxu0 0
  %110 = vmatmul.mubr.bf16.gmra.mrb[0].mxu0 %v66
  %v111 = vpop.f32.mrb[0].mxu0
  %v112 = vadd.f32 %v36, %v111
  %v113 = vpop.f32.mrb[0].mxu0
  %v114 = vpop.f32.mrb[0].mxu0
  %v115 = vadd.f32 %v36, %v114
  %v116 = vpop.f32.mrb[0].mxu0
  %117 = vmatprep.mubr.bf16.mxu0 0
  %118 = vmatmul.mubr.bf16.gmra.mrb[0].mxu0 %v69
  %v119 = vpop.f32.mrb[0].mxu0
  %v120 = vadd.f32 %v36, %v119
  %v121 = vpop.f32.mrb[0].mxu0
  %v122 = vpop.f32.mrb[0].mxu0
  %v123 = vadd.f32 %v36, %v122
  %v124 = vpop.f32.mrb[0].mxu0
  %125 = vmatprep.mubr.bf16.mxu0 0
  %126 = vmatmul.mubr.bf16.gmra.mrb[0].mxu0 %v72
  %v127 = vpop.f32.mrb[0].mxu0
  %v128 = vadd.f32 %v36, %v127
  %v129 = vpop.f32.mrb[0].mxu0
  %v130 = vpop.f32.mrb[0].mxu0
  %v131 = vadd.f32 %v36, %v130
  %v132 = vpop.f32.mrb[0].mxu0
  %133 = vmatprep.mubr.bf16.mxu0 0
  %134 = vmatmul.mubr.bf16.gmra.mrb[0].mxu0 %v75
  %v135 = vpop.f32.mrb[0].mxu0
  %v136 = vadd.f32 %v36, %v135
  %v137 = vpop.f32.mrb[0].mxu0
  %v138 = vpop.f32.mrb[0].mxu0
  %v139 = vadd.f32 %v36, %v138
  %v140 = vpop.f32.mrb[0].mxu0
  %141 = vdwg.mxu0
  %143 = vrot.lane.b32.xlu0 %v112, 96
  %v144 = vpop.permute.xlu0 %143
  %vm145 = vcmask 64512
  %v146 = vsel %vm145, %v112, 0
  %v148 = vsel %vm145, %v144, 0
  %150 = vmatprep.subr.mxu0 0.0
  %151 = vmatpush1.xpose.msra.mxu0 %v148
  %152 = vmatprep.subr.mxu0 0.0
  %153 = vmatpush1.xpose.msra.mxu0 0.0
  %154 = vmatprep.subr.mxu0 0.0
  %155 = vmatpush1.xpose.msra.mxu0 0.0
  %156 = vmatprep.subr.mxu0 0.0
  %157 = vmatpush1.xpose.msra.mxu0 0.0
  %158 = vmatprep.subr.mxu0 0.0
  %159 = vmatpush1.xpose.msra.mxu0 0.0
  %160 = vmatprep.subr.mxu0 0.0
  %161 = vmatpush1.xpose.msra.mxu0 0.0
  %162 = vmatprep.subr.mxu0 0.0
  %163 = vmatpush1.xpose.msra.mxu0 0.0
  %164 = vmatprep.subr.mxu0 0.0
  %165 = vmatpush1.xpose.msra.mxu0 0.0
  %166 = vmatprep.subr.mxu0 0.0
  %167 = vmatpush1.xpose.msra.mxu0 0.0
  %168 = vmatprep.subr.mxu0 0.0
  %169 = vmatpush1.xpose.msra.mxu0 0.0
  %170 = vmatprep.subr.mxu0 0.0
  %171 = vmatpush1.xpose.msra.mxu0 0.0
  %172 = vmatprep.subr.mxu0 0.0
  %173 = vmatpush1.xpose.msra.mxu0 0.0
  %174 = vmatprep.subr.mxu0 0.0
  %175 = vmatpush1.xpose.msra.mxu0 0.0
  %176 = vmatprep.subr.mxu0 0.0
  %177 = vmatpush1.xpose.msra.mxu0 0.0
  %178 = vmatprep.subr.mxu0 0.0
  %179 = vmatpush1.xpose.msra.mxu0 0.0
  %180 = vmatprep.subr.mxu0 0.0
  %181 = vmatpush1.xpose.msra.mxu0 0.0
  %182 = vmatprep.subr.mxu0 0.0
  %183 = vmatpush1.xpose.msra.mxu0 0.0
  %184 = vmatprep.subr.mxu0 0.0
  %185 = vmatpush1.xpose.msra.mxu0 0.0
  %186 = vmatprep.subr.mxu0 0.0
  %187 = vmatpush1.xpose.msra.mxu0 0.0
  %188 = vmatprep.subr.mxu0 0.0
  %189 = vmatpush1.xpose.msra.mxu0 0.0
  %190 = vmatprep.subr.mxu0 0.0
  %191 = vmatpush1.xpose.msra.mxu0 0.0
  %192 = vmatprep.subr.mxu0 0.0
  %193 = vmatpush1.xpose.msra.mxu0 0.0
  %194 = vmatprep.subr.mxu0 0.0
  %195 = vmatpush1.xpose.msra.mxu0 0.0
  %196 = vmatprep.subr.mxu0 0.0
  %197 = vmatpush1.xpose.msra.mxu0 0.0
  %198 = vmatprep.subr.mxu0 0.0
  %199 = vmatpush1.xpose.msra.mxu0 0.0
  %200 = vmatprep.subr.mxu0 0.0
  %201 = vmatpush1.xpose.msra.mxu0 0.0
  %202 = vmatprep.subr.mxu0 0.0
  %203 = vmatpush1.xpose.msra.mxu0 0.0
  %204 = vmatprep.subr.mxu0 0.0
  %205 = vmatpush1.xpose.msra.mxu0 0.0
  %206 = vmatprep.subr.mxu0 0.0
  %207 = vmatpush1.xpose.msra.mxu0 0.0
  %208 = vmatprep.subr.mxu0 0.0
  %209 = vmatpush1.xpose.msra.mxu0 0.0
  %210 = vmatprep.subr.mxu0 0.0
  %211 = vmatpush1.xpose.msra.mxu0 0.0
  %212 = vmatprep.subr.mxu0 0.0
  %213 = vmatpush1.xpose.msra.mxu0 0.0
  %214 = vmatprep.mubr.f32.mxu0 0.0
  %215 = vmatmul.mubr.f32.gmra.mrb[0].mxu0 %v146
  %v216 = vpop.f32.mrb[0].mxu0
  %v217 = vadd.f32 0.0, %v216
  %v218 = vpop.f32.mrb[0].mxu0
  %219 = vdwg.mxu0
  %221 = vrot.lane.b32.xlu0 %v115, 96
  %v222 = vpop.permute.xlu0 %221
  %v223 = vsel %vm145, %v115, 0
  %v225 = vsel %vm145, %v222, 0
  %227 = vmatprep.subr.mxu0 0.0
  %228 = vmatpush1.xpose.msra.mxu0 %v225
  %229 = vmatprep.subr.mxu0 0.0
  %230 = vmatpush1.xpose.msra.mxu0 0.0
  %231 = vmatprep.subr.mxu0 0.0
  %232 = vmatpush1.xpose.msra.mxu0 0.0
  %233 = vmatprep.subr.mxu0 0.0
  %234 = vmatpush1.xpose.msra.mxu0 0.0
  %235 = vmatprep.subr.mxu0 0.0
  %236 = vmatpush1.xpose.msra.mxu0 0.0
  %237 = vmatprep.subr.mxu0 0.0
  %238 = vmatpush1.xpose.msra.mxu0 0.0
  %239 = vmatprep.subr.mxu0 0.0
  %240 = vmatpush1.xpose.msra.mxu0 0.0
  %241 = vmatprep.subr.mxu0 0.0
  %242 = vmatpush1.xpose.msra.mxu0 0.0
  %243 = vmatprep.subr.mxu0 0.0
  %244 = vmatpush1.xpose.msra.mxu0 0.0
  %245 = vmatprep.subr.mxu0 0.0
  %246 = vmatpush1.xpose.msra.mxu0 0.0
  %247 = vmatprep.subr.mxu0 0.0
  %248 = vmatpush1.xpose.msra.mxu0 0.0
  %249 = vmatprep.subr.mxu0 0.0
  %250 = vmatpush1.xpose.msra.mxu0 0.0
  %251 = vmatprep.subr.mxu0 0.0
  %252 = vmatpush1.xpose.msra.mxu0 0.0
  %253 = vmatprep.subr.mxu0 0.0
  %254 = vmatpush1.xpose.msra.mxu0 0.0
  %255 = vmatprep.subr.mxu0 0.0
  %256 = vmatpush1.xpose.msra.mxu0 0.0
  %257 = vmatprep.subr.mxu0 0.0
  %258 = vmatpush1.xpose.msra.mxu0 0.0
  %259 = vmatprep.subr.mxu0 0.0
  %260 = vmatpush1.xpose.msra.mxu0 0.0
  %261 = vmatprep.subr.mxu0 0.0
  %262 = vmatpush1.xpose.msra.mxu0 0.0
  %263 = vmatprep.subr.mxu0 0.0
  %264 = vmatpush1.xpose.msra.mxu0 0.0
  %265 = vmatprep.subr.mxu0 0.0
  %266 = vmatpush1.xpose.msra.mxu0 0.0
  %267 = vmatprep.subr.mxu0 0.0
  %268 = vmatpush1.xpose.msra.mxu0 0.0
  %269 = vmatprep.subr.mxu0 0.0
  %270 = vmatpush1.xpose.msra.mxu0 0.0
  %271 = vmatprep.subr.mxu0 0.0
  %272 = vmatpush1.xpose.msra.mxu0 0.0
  %273 = vmatprep.subr.mxu0 0.0
  %274 = vmatpush1.xpose.msra.mxu0 0.0
  %275 = vmatprep.subr.mxu0 0.0
  %276 = vmatpush1.xpose.msra.mxu0 0.0
  %277 = vmatprep.subr.mxu0 0.0
  %278 = vmatpush1.xpose.msra.mxu0 0.0
  %279 = vmatprep.subr.mxu0 0.0
  %280 = vmatpush1.xpose.msra.mxu0 0.0
  %281 = vmatprep.subr.mxu0 0.0
  %282 = vmatpush1.xpose.msra.mxu0 0.0
  %283 = vmatprep.subr.mxu0 0.0
  %284 = vmatpush1.xpose.msra.mxu0 0.0
  %285 = vmatprep.subr.mxu0 0.0
  %286 = vmatpush1.xpose.msra.mxu0 0.0
  %287 = vmatprep.subr.mxu0 0.0
  %288 = vmatpush1.xpose.msra.mxu0 0.0
  %289 = vmatprep.subr.mxu0 0.0
  %290 = vmatpush1.xpose.msra.mxu0 0.0
  %291 = vmatprep.mubr.f32.mxu0 0.0
  %292 = vmatmul.mubr.f32.gmra.mrb[0].mxu0 %v223
  %v293 = vpop.f32.mrb[0].mxu0
  %v294 = vadd.f32 0.0, %v293
  %v295 = vpop.f32.mrb[0].mxu0
  %296 = vdwg.mxu0
  %298 = vrot.lane.b32.xlu0 %v120, 96
  %v299 = vpop.permute.xlu0 %298
  %v300 = vsel %vm145, %v120, 0
  %v302 = vsel %vm145, %v299, 0
  %304 = vmatprep.subr.mxu0 0.0
  %305 = vmatpush1.xpose.msra.mxu0 %v302
  %306 = vmatprep.subr.mxu0 0.0
  %307 = vmatpush1.xpose.msra.mxu0 0.0
  %308 = vmatprep.subr.mxu0 0.0
  %309 = vmatpush1.xpose.msra.mxu0 0.0
  %310 = vmatprep.subr.mxu0 0.0
  %311 = vmatpush1.xpose.msra.mxu0 0.0
  %312 = vmatprep.subr.mxu0 0.0
  %313 = vmatpush1.xpose.msra.mxu0 0.0
  %314 = vmatprep.subr.mxu0 0.0
  %315 = vmatpush1.xpose.msra.mxu0 0.0
  %316 = vmatprep.subr.mxu0 0.0
  %317 = vmatpush1.xpose.msra.mxu0 0.0
  %318 = vmatprep.subr.mxu0 0.0
  %319 = vmatpush1.xpose.msra.mxu0 0.0
  %320 = vmatprep.subr.mxu0 0.0
  %321 = vmatpush1.xpose.msra.mxu0 0.0
  %322 = vmatprep.subr.mxu0 0.0
  %323 = vmatpush1.xpose.msra.mxu0 0.0
  %324 = vmatprep.subr.mxu0 0.0
  %325 = vmatpush1.xpose.msra.mxu0 0.0
  %326 = vmatprep.subr.mxu0 0.0
  %327 = vmatpush1.xpose.msra.mxu0 0.0
  %328 = vmatprep.subr.mxu0 0.0
  %329 = vmatpush1.xpose.msra.mxu0 0.0
  %330 = vmatprep.subr.mxu0 0.0
  %331 = vmatpush1.xpose.msra.mxu0 0.0
  %332 = vmatprep.subr.mxu0 0.0
  %333 = vmatpush1.xpose.msra.mxu0 0.0
  %334 = vmatprep.subr.mxu0 0.0
  %335 = vmatpush1.xpose.msra.mxu0 0.0
  %336 = vmatprep.subr.mxu0 0.0
  %337 = vmatpush1.xpose.msra.mxu0 0.0
  %338 = vmatprep.subr.mxu0 0.0
  %339 = vmatpush1.xpose.msra.mxu0 0.0
  %340 = vmatprep.subr.mxu0 0.0
  %341 = vmatpush1.xpose.msra.mxu0 0.0
  %342 = vmatprep.subr.mxu0 0.0
  %343 = vmatpush1.xpose.msra.mxu0 0.0
  %344 = vmatprep.subr.mxu0 0.0
  %345 = vmatpush1.xpose.msra.mxu0 0.0
  %346 = vmatprep.subr.mxu0 0.0
  %347 = vmatpush1.xpose.msra.mxu0 0.0
  %348 = vmatprep.subr.mxu0 0.0
  %349 = vmatpush1.xpose.msra.mxu0 0.0
  %350 = vmatprep.subr.mxu0 0.0
  %351 = vmatpush1.xpose.msra.mxu0 0.0
  %352 = vmatprep.subr.mxu0 0.0
  %353 = vmatpush1.xpose.msra.mxu0 0.0
  %354 = vmatprep.subr.mxu0 0.0
  %355 = vmatpush1.xpose.msra.mxu0 0.0
  %356 = vmatprep.subr.mxu0 0.0
  %357 = vmatpush1.xpose.msra.mxu0 0.0
  %358 = vmatprep.subr.mxu0 0.0
  %359 = vmatpush1.xpose.msra.mxu0 0.0
  %360 = vmatprep.subr.mxu0 0.0
  %361 = vmatpush1.xpose.msra.mxu0 0.0
  %362 = vmatprep.subr.mxu0 0.0
  %363 = vmatpush1.xpose.msra.mxu0 0.0
  %364 = vmatprep.subr.mxu0 0.0
  %365 = vmatpush1.xpose.msra.mxu0 0.0
  %366 = vmatprep.subr.mxu0 0.0
  %367 = vmatpush1.xpose.msra.mxu0 0.0
  %368 = vmatprep.mubr.f32.mxu0 0.0
  %369 = vmatmul.mubr.f32.gmra.mrb[0].mxu0 %v300
  %v370 = vpop.f32.mrb[0].mxu0
  %v371 = vadd.f32 0.0, %v370
  %v372 = vpop.f32.mrb[0].mxu0
  %373 = vdwg.mxu0
  %375 = vrot.lane.b32.xlu0 %v123, 96
  %v376 = vpop.permute.xlu0 %375
  %v377 = vsel %vm145, %v123, 0
  %v379 = vsel %vm145, %v376, 0
  %381 = vmatprep.subr.mxu0 0.0
  %382 = vmatpush1.xpose.msra.mxu0 %v379
  %383 = vmatprep.subr.mxu0 0.0
  %384 = vmatpush1.xpose.msra.mxu0 0.0
  %385 = vmatprep.subr.mxu0 0.0
  %386 = vmatpush1.xpose.msra.mxu0 0.0
  %387 = vmatprep.subr.mxu0 0.0
  %388 = vmatpush1.xpose.msra.mxu0 0.0
  %389 = vmatprep.subr.mxu0 0.0
  %390 = vmatpush1.xpose.msra.mxu0 0.0
  %391 = vmatprep.subr.mxu0 0.0
  %392 = vmatpush1.xpose.msra.mxu0 0.0
  %393 = vmatprep.subr.mxu0 0.0
  %394 = vmatpush1.xpose.msra.mxu0 0.0
  %395 = vmatprep.subr.mxu0 0.0
  %396 = vmatpush1.xpose.msra.mxu0 0.0
  %397 = vmatprep.subr.mxu0 0.0
  %398 = vmatpush1.xpose.msra.mxu0 0.0
  %399 = vmatprep.subr.mxu0 0.0
  %400 = vmatpush1.xpose.msra.mxu0 0.0
  %401 = vmatprep.subr.mxu0 0.0
  %402 = vmatpush1.xpose.msra.mxu0 0.0
  %403 = vmatprep.subr.mxu0 0.0
  %404 = vmatpush1.xpose.msra.mxu0 0.0
  %405 = vmatprep.subr.mxu0 0.0
  %406 = vmatpush1.xpose.msra.mxu0 0.0
  %407 = vmatprep.subr.mxu0 0.0
  %408 = vmatpush1.xpose.msra.mxu0 0.0
  %409 = vmatprep.subr.mxu0 0.0
  %410 = vmatpush1.xpose.msra.mxu0 0.0
  %411 = vmatprep.subr.mxu0 0.0
  %412 = vmatpush1.xpose.msra.mxu0 0.0
  %413 = vmatprep.subr.mxu0 0.0
  %414 = vmatpush1.xpose.msra.mxu0 0.0
  %415 = vmatprep.subr.mxu0 0.0
  %416 = vmatpush1.xpose.msra.mxu0 0.0
  %417 = vmatprep.subr.mxu0 0.0
  %418 = vmatpush1.xpose.msra.mxu0 0.0
  %419 = vmatprep.subr.mxu0 0.0
  %420 = vmatpush1.xpose.msra.mxu0 0.0
  %421 = vmatprep.subr.mxu0 0.0
  %422 = vmatpush1.xpose.msra.mxu0 0.0
  %423 = vmatprep.subr.mxu0 0.0
  %424 = vmatpush1.xpose.msra.mxu0 0.0
  %425 = vmatprep.subr.mxu0 0.0
  %426 = vmatpush1.xpose.msra.mxu0 0.0
  %427 = vmatprep.subr.mxu0 0.0
  %428 = vmatpush1.xpose.msra.mxu0 0.0
  %429 = vmatprep.subr.mxu0 0.0
  %430 = vmatpush1.xpose.msra.mxu0 0.0
  %431 = vmatprep.subr.mxu0 0.0
  %432 = vmatpush1.xpose.msra.mxu0 0.0
  %433 = vmatprep.subr.mxu0 0.0
  %434 = vmatpush1.xpose.msra.mxu0 0.0
  %435 = vmatprep.subr.mxu0 0.0
  %436 = vmatpush1.xpose.msra.mxu0 0.0
  %437 = vmatprep.subr.mxu0 0.0
  %438 = vmatpush1.xpose.msra.mxu0 0.0
  %439 = vmatprep.subr.mxu0 0.0
  %440 = vmatpush1.xpose.msra.mxu0 0.0
  %441 = vmatprep.subr.mxu0 0.0
  %442 = vmatpush1.xpose.msra.mxu0 0.0
  %443 = vmatprep.subr.mxu0 0.0
  %444 = vmatpush1.xpose.msra.mxu0 0.0
  %445 = vmatprep.mubr.f32.mxu0 0.0
  %446 = vmatmul.mubr.f32.gmra.mrb[0].mxu0 %v377
  %v447 = vpop.f32.mrb[0].mxu0
  %v448 = vadd.f32 0.0, %v447
  %v449 = vpop.f32.mrb[0].mxu0
  %450 = vdwg.mxu0
  %452 = vrot.lane.b32.xlu0 %v128, 96
  %v453 = vpop.permute.xlu0 %452
  %v454 = vsel %vm145, %v128, 0
  %v456 = vsel %vm145, %v453, 0
  %458 = vmatprep.subr.mxu0 0.0
  %459 = vmatpush1.xpose.msra.mxu0 %v456
  %460 = vmatprep.subr.mxu0 0.0
  %461 = vmatpush1.xpose.msra.mxu0 0.0
  %462 = vmatprep.subr.mxu0 0.0
  %463 = vmatpush1.xpose.msra.mxu0 0.0
  %464 = vmatprep.subr.mxu0 0.0
  %465 = vmatpush1.xpose.msra.mxu0 0.0
  %466 = vmatprep.subr.mxu0 0.0
  %467 = vmatpush1.xpose.msra.mxu0 0.0
  %468 = vmatprep.subr.mxu0 0.0
  %469 = vmatpush1.xpose.msra.mxu0 0.0
  %470 = vmatprep.subr.mxu0 0.0
  %471 = vmatpush1.xpose.msra.mxu0 0.0
  %472 = vmatprep.subr.mxu0 0.0
  %473 = vmatpush1.xpose.msra.mxu0 0.0
  %474 = vmatprep.subr.mxu0 0.0
  %475 = vmatpush1.xpose.msra.mxu0 0.0
  %476 = vmatprep.subr.mxu0 0.0
  %477 = vmatpush1.xpose.msra.mxu0 0.0
  %478 = vmatprep.subr.mxu0 0.0
  %479 = vmatpush1.xpose.msra.mxu0 0.0
  %480 = vmatprep.subr.mxu0 0.0
  %481 = vmatpush1.xpose.msra.mxu0 0.0
  %482 = vmatprep.subr.mxu0 0.0
  %483 = vmatpush1.xpose.msra.mxu0 0.0
  %484 = vmatprep.subr.mxu0 0.0
  %485 = vmatpush1.xpose.msra.mxu0 0.0
  %486 = vmatprep.subr.mxu0 0.0
  %487 = vmatpush1.xpose.msra.mxu0 0.0
  %488 = vmatprep.subr.mxu0 0.0
  %489 = vmatpush1.xpose.msra.mxu0 0.0
  %490 = vmatprep.subr.mxu0 0.0
  %491 = vmatpush1.xpose.msra.mxu0 0.0
  %492 = vmatprep.subr.mxu0 0.0
  %493 = vmatpush1.xpose.msra.mxu0 0.0
  %494 = vmatprep.subr.mxu0 0.0
  %495 = vmatpush1.xpose.msra.mxu0 0.0
  %496 = vmatprep.subr.mxu0 0.0
  %497 = vmatpush1.xpose.msra.mxu0 0.0
  %498 = vmatprep.subr.mxu0 0.0
  %499 = vmatpush1.xpose.msra.mxu0 0.0
  %500 = vmatprep.subr.mxu0 0.0
  %501 = vmatpush1.xpose.msra.mxu0 0.0
  %502 = vmatprep.subr.mxu0 0.0
  %503 = vmatpush1.xpose.msra.mxu0 0.0
  %504 = vmatprep.subr.mxu0 0.0
  %505 = vmatpush1.xpose.msra.mxu0 0.0
  %506 = vmatprep.subr.mxu0 0.0
  %507 = vmatpush1.xpose.msra.mxu0 0.0
  %508 = vmatprep.subr.mxu0 0.0
  %509 = vmatpush1.xpose.msra.mxu0 0.0
  %510 = vmatprep.subr.mxu0 0.0
  %511 = vmatpush1.xpose.msra.mxu0 0.0
  %512 = vmatprep.subr.mxu0 0.0
  %513 = vmatpush1.xpose.msra.mxu0 0.0
  %514 = vmatprep.subr.mxu0 0.0
  %515 = vmatpush1.xpose.msra.mxu0 0.0
  %516 = vmatprep.subr.mxu0 0.0
  %517 = vmatpush1.xpose.msra.mxu0 0.0
  %518 = vmatprep.subr.mxu0 0.0
  %519 = vmatpush1.xpose.msra.mxu0 0.0
  %520 = vmatprep.subr.mxu0 0.0
  %521 = vmatpush1.xpose.msra.mxu0 0.0
  %522 = vmatprep.mubr.f32.mxu0 0.0
  %523 = vmatmul.mubr.f32.gmra.mrb[0].mxu0 %v454
  %v524 = vpop.f32.mrb[0].mxu0
  %v525 = vadd.f32 0.0, %v524
  %v526 = vpop.f32.mrb[0].mxu0
  %527 = vdwg.mxu0
  %529 = vrot.lane.b32.xlu0 %v131, 96
  %v530 = vpop.permute.xlu0 %529
  %v531 = vsel %vm145, %v131, 0
  %v533 = vsel %vm145, %v530, 0
  %535 = vmatprep.subr.mxu0 0.0
  %536 = vmatpush1.xpose.msra.mxu0 %v533
  %537 = vmatprep.subr.mxu0 0.0
  %538 = vmatpush1.xpose.msra.mxu0 0.0
  %539 = vmatprep.subr.mxu0 0.0
  %540 = vmatpush1.xpose.msra.mxu0 0.0
  %541 = vmatprep.subr.mxu0 0.0
  %542 = vmatpush1.xpose.msra.mxu0 0.0
  %543 = vmatprep.subr.mxu0 0.0
  %544 = vmatpush1.xpose.msra.mxu0 0.0
  %545 = vmatprep.subr.mxu0 0.0
  %546 = vmatpush1.xpose.msra.mxu0 0.0
  %547 = vmatprep.subr.mxu0 0.0
  %548 = vmatpush1.xpose.msra.mxu0 0.0
  %549 = vmatprep.subr.mxu0 0.0
  %550 = vmatpush1.xpose.msra.mxu0 0.0
  %551 = vmatprep.subr.mxu0 0.0
  %552 = vmatpush1.xpose.msra.mxu0 0.0
  %553 = vmatprep.subr.mxu0 0.0
  %554 = vmatpush1.xpose.msra.mxu0 0.0
  %555 = vmatprep.subr.mxu0 0.0
  %556 = vmatpush1.xpose.msra.mxu0 0.0
  %557 = vmatprep.subr.mxu0 0.0
  %558 = vmatpush1.xpose.msra.mxu0 0.0
  %559 = vmatprep.subr.mxu0 0.0
  %560 = vmatpush1.xpose.msra.mxu0 0.0
  %561 = vmatprep.subr.mxu0 0.0
  %562 = vmatpush1.xpose.msra.mxu0 0.0
  %563 = vmatprep.subr.mxu0 0.0
  %564 = vmatpush1.xpose.msra.mxu0 0.0
  %565 = vmatprep.subr.mxu0 0.0
  %566 = vmatpush1.xpose.msra.mxu0 0.0
  %567 = vmatprep.subr.mxu0 0.0
  %568 = vmatpush1.xpose.msra.mxu0 0.0
  %569 = vmatprep.subr.mxu0 0.0
  %570 = vmatpush1.xpose.msra.mxu0 0.0
  %571 = vmatprep.subr.mxu0 0.0
  %572 = vmatpush1.xpose.msra.mxu0 0.0
  %573 = vmatprep.subr.mxu0 0.0
  %574 = vmatpush1.xpose.msra.mxu0 0.0
  %575 = vmatprep.subr.mxu0 0.0
  %576 = vmatpush1.xpose.msra.mxu0 0.0
  %577 = vmatprep.subr.mxu0 0.0
  %578 = vmatpush1.xpose.msra.mxu0 0.0
  %579 = vmatprep.subr.mxu0 0.0
  %580 = vmatpush1.xpose.msra.mxu0 0.0
  %581 = vmatprep.subr.mxu0 0.0
  %582 = vmatpush1.xpose.msra.mxu0 0.0
  %583 = vmatprep.subr.mxu0 0.0
  %584 = vmatpush1.xpose.msra.mxu0 0.0
  %585 = vmatprep.subr.mxu0 0.0
  %586 = vmatpush1.xpose.msra.mxu0 0.0
  %587 = vmatprep.subr.mxu0 0.0
  %588 = vmatpush1.xpose.msra.mxu0 0.0
  %589 = vmatprep.subr.mxu0 0.0
  %590 = vmatpush1.xpose.msra.mxu0 0.0
  %591 = vmatprep.subr.mxu0 0.0
  %592 = vmatpush1.xpose.msra.mxu0 0.0
  %593 = vmatprep.subr.mxu0 0.0
  %594 = vmatpush1.xpose.msra.mxu0 0.0
  %595 = vmatprep.subr.mxu0 0.0
  %596 = vmatpush1.xpose.msra.mxu0 0.0
  %597 = vmatprep.subr.mxu0 0.0
  %598 = vmatpush1.xpose.msra.mxu0 0.0
  %599 = vmatprep.mubr.f32.mxu0 0.0
  %600 = vmatmul.mubr.f32.gmra.mrb[0].mxu0 %v531
  %v601 = vpop.f32.mrb[0].mxu0
  %v602 = vadd.f32 0.0, %v601
  %v603 = vpop.f32.mrb[0].mxu0
  %604 = vdwg.mxu0
  %606 = vrot.lane.b32.xlu0 %v136, 96
  %v607 = vpop.permute.xlu0 %606
  %v608 = vsel %vm145, %v136, 0
  %v610 = vsel %vm145, %v607, 0
  %612 = vmatprep.subr.mxu0 0.0
  %613 = vmatpush1.xpose.msra.mxu0 %v610
  %614 = vmatprep.subr.mxu0 0.0
  %615 = vmatpush1.xpose.msra.mxu0 0.0
  %616 = vmatprep.subr.mxu0 0.0
  %617 = vmatpush1.xpose.msra.mxu0 0.0
  %618 = vmatprep.subr.mxu0 0.0
  %619 = vmatpush1.xpose.msra.mxu0 0.0
  %620 = vmatprep.subr.mxu0 0.0
  %621 = vmatpush1.xpose.msra.mxu0 0.0
  %622 = vmatprep.subr.mxu0 0.0
  %623 = vmatpush1.xpose.msra.mxu0 0.0
  %624 = vmatprep.subr.mxu0 0.0
  %625 = vmatpush1.xpose.msra.mxu0 0.0
  %626 = vmatprep.subr.mxu0 0.0
  %627 = vmatpush1.xpose.msra.mxu0 0.0
  %628 = vmatprep.subr.mxu0 0.0
  %629 = vmatpush1.xpose.msra.mxu0 0.0
  %630 = vmatprep.subr.mxu0 0.0
  %631 = vmatpush1.xpose.msra.mxu0 0.0
  %632 = vmatprep.subr.mxu0 0.0
  %633 = vmatpush1.xpose.msra.mxu0 0.0
  %634 = vmatprep.subr.mxu0 0.0
  %635 = vmatpush1.xpose.msra.mxu0 0.0
  %636 = vmatprep.subr.mxu0 0.0
  %637 = vmatpush1.xpose.msra.mxu0 0.0
  %638 = vmatprep.subr.mxu0 0.0
  %639 = vmatpush1.xpose.msra.mxu0 0.0
  %640 = vmatprep.subr.mxu0 0.0
  %641 = vmatpush1.xpose.msra.mxu0 0.0
  %642 = vmatprep.subr.mxu0 0.0
  %643 = vmatpush1.xpose.msra.mxu0 0.0
  %644 = vmatprep.subr.mxu0 0.0
  %645 = vmatpush1.xpose.msra.mxu0 0.0
  %646 = vmatprep.subr.mxu0 0.0
  %647 = vmatpush1.xpose.msra.mxu0 0.0
  %648 = vmatprep.subr.mxu0 0.0
  %649 = vmatpush1.xpose.msra.mxu0 0.0
  %650 = vmatprep.subr.mxu0 0.0
  %651 = vmatpush1.xpose.msra.mxu0 0.0
  %652 = vmatprep.subr.mxu0 0.0
  %653 = vmatpush1.xpose.msra.mxu0 0.0
  %654 = vmatprep.subr.mxu0 0.0
  %655 = vmatpush1.xpose.msra.mxu0 0.0
  %656 = vmatprep.subr.mxu0 0.0
  %657 = vmatpush1.xpose.msra.mxu0 0.0
  %658 = vmatprep.subr.mxu0 0.0
  %659 = vmatpush1.xpose.msra.mxu0 0.0
  %660 = vmatprep.subr.mxu0 0.0
  %661 = vmatpush1.xpose.msra.mxu0 0.0
  %662 = vmatprep.subr.mxu0 0.0
  %663 = vmatpush1.xpose.msra.mxu0 0.0
  %664 = vmatprep.subr.mxu0 0.0
  %665 = vmatpush1.xpose.msra.mxu0 0.0
  %666 = vmatprep.subr.mxu0 0.0
  %667 = vmatpush1.xpose.msra.mxu0 0.0
  %668 = vmatprep.subr.mxu0 0.0
  %669 = vmatpush1.xpose.msra.mxu0 0.0
  %670 = vmatprep.subr.mxu0 0.0
  %671 = vmatpush1.xpose.msra.mxu0 0.0
  %672 = vmatprep.subr.mxu0 0.0
  %673 = vmatpush1.xpose.msra.mxu0 0.0
  %674 = vmatprep.subr.mxu0 0.0
  %675 = vmatpush1.xpose.msra.mxu0 0.0
  %676 = vmatprep.mubr.f32.mxu0 0.0
  %677 = vmatmul.mubr.f32.gmra.mrb[0].mxu0 %v608
  %v678 = vpop.f32.mrb[0].mxu0
  %v679 = vadd.f32 0.0, %v678
  %v680 = vpop.f32.mrb[0].mxu0
  %681 = vdwg.mxu0
  %683 = vrot.lane.b32.xlu0 %v139, 96
  %v684 = vpop.permute.xlu0 %683
  %v685 = vsel %vm145, %v139, 0
  %v687 = vsel %vm145, %v684, 0
  %689 = vmatprep.subr.mxu0 0.0
  %690 = vmatpush1.xpose.msra.mxu0 %v687
  %691 = vmatprep.subr.mxu0 0.0
  %692 = vmatpush1.xpose.msra.mxu0 0.0
  %693 = vmatprep.subr.mxu0 0.0
  %694 = vmatpush1.xpose.msra.mxu0 0.0
  %695 = vmatprep.subr.mxu0 0.0
  %696 = vmatpush1.xpose.msra.mxu0 0.0
  %697 = vmatprep.subr.mxu0 0.0
  %698 = vmatpush1.xpose.msra.mxu0 0.0
  %699 = vmatprep.subr.mxu0 0.0
  %700 = vmatpush1.xpose.msra.mxu0 0.0
  %701 = vmatprep.subr.mxu0 0.0
  %702 = vmatpush1.xpose.msra.mxu0 0.0
  %703 = vmatprep.subr.mxu0 0.0
  %704 = vmatpush1.xpose.msra.mxu0 0.0
  %705 = vmatprep.subr.mxu0 0.0
  %706 = vmatpush1.xpose.msra.mxu0 0.0
  %707 = vmatprep.subr.mxu0 0.0
  %708 = vmatpush1.xpose.msra.mxu0 0.0
  %709 = vmatprep.subr.mxu0 0.0
  %710 = vmatpush1.xpose.msra.mxu0 0.0
  %711 = vmatprep.subr.mxu0 0.0
  %712 = vmatpush1.xpose.msra.mxu0 0.0
  %713 = vmatprep.subr.mxu0 0.0
  %714 = vmatpush1.xpose.msra.mxu0 0.0
  %715 = vmatprep.subr.mxu0 0.0
  %716 = vmatpush1.xpose.msra.mxu0 0.0
  %717 = vmatprep.subr.mxu0 0.0
  %718 = vmatpush1.xpose.msra.mxu0 0.0
  %719 = vmatprep.subr.mxu0 0.0
  %720 = vmatpush1.xpose.msra.mxu0 0.0
  %721 = vmatprep.subr.mxu0 0.0
  %722 = vmatpush1.xpose.msra.mxu0 0.0
  %723 = vmatprep.subr.mxu0 0.0
  %724 = vmatpush1.xpose.msra.mxu0 0.0
  %725 = vmatprep.subr.mxu0 0.0
  %726 = vmatpush1.xpose.msra.mxu0 0.0
  %727 = vmatprep.subr.mxu0 0.0
  %728 = vmatpush1.xpose.msra.mxu0 0.0
  %729 = vmatprep.subr.mxu0 0.0
  %730 = vmatpush1.xpose.msra.mxu0 0.0
  %731 = vmatprep.subr.mxu0 0.0
  %732 = vmatpush1.xpose.msra.mxu0 0.0
  %733 = vmatprep.subr.mxu0 0.0
  %734 = vmatpush1.xpose.msra.mxu0 0.0
  %735 = vmatprep.subr.mxu0 0.0
  %736 = vmatpush1.xpose.msra.mxu0 0.0
  %737 = vmatprep.subr.mxu0 0.0
  %738 = vmatpush1.xpose.msra.mxu0 0.0
  %739 = vmatprep.subr.mxu0 0.0
  %740 = vmatpush1.xpose.msra.mxu0 0.0
  %741 = vmatprep.subr.mxu0 0.0
  %742 = vmatpush1.xpose.msra.mxu0 0.0
  %743 = vmatprep.subr.mxu0 0.0
  %744 = vmatpush1.xpose.msra.mxu0 0.0
  %745 = vmatprep.subr.mxu0 0.0
  %746 = vmatpush1.xpose.msra.mxu0 0.0
  %747 = vmatprep.subr.mxu0 0.0
  %748 = vmatpush1.xpose.msra.mxu0 0.0
  %749 = vmatprep.subr.mxu0 0.0
  %750 = vmatpush1.xpose.msra.mxu0 0.0
  %751 = vmatprep.subr.mxu0 0.0
  %752 = vmatpush1.xpose.msra.mxu0 0.0
  %753 = vmatprep.mubr.f32.mxu0 0.0
  %754 = vmatmul.mubr.f32.gmra.mrb[0].mxu0 %v685
  %v755 = vpop.f32.mrb[0].mxu0
  %v756 = vadd.f32 0.0, %v755
  %v757 = vpop.f32.mrb[0].mxu0
  %758 = vdwg.mxu0
  %v759 = vsel %vm145, %v217, -inf
  %760 = vmax.xlane.f32.xlu0 %v759
  %v761 = vpop.xlane.xlu0 %760
  %v762 = vsel %vm145, %v294, -inf
  %763 = vmax.xlane.f32.xlu0 %v762
  %v764 = vpop.xlane.xlu0 %763
  %v765 = vsel %vm145, %v371, -inf
  %766 = vmax.xlane.f32.xlu0 %v765
  %v767 = vpop.xlane.xlu0 %766
  %v768 = vsel %vm145, %v448, -inf
  %769 = vmax.xlane.f32.xlu0 %v768
  %v770 = vpop.xlane.xlu0 %769
  %v771 = vsel %vm145, %v525, -inf
  %772 = vmax.xlane.f32.xlu0 %v771
  %v773 = vpop.xlane.xlu0 %772
  %v774 = vsel %vm145, %v602, -inf
  %775 = vmax.xlane.f32.xlu0 %v774
  %v776 = vpop.xlane.xlu0 %775
  %v777 = vsel %vm145, %v679, -inf
  %778 = vmax.xlane.f32.xlu0 %v777
  %v779 = vpop.xlane.xlu0 %778
  %v780 = vsel %vm145, %v756, -inf
  %781 = vmax.xlane.f32.xlu0 %v780
  %v782 = vpop.xlane.xlu0 %781
  %v783 = vsub.f32 %v217, %v761
  %v784 = vsub.f32 %v294, %v764
  %v785 = vsub.f32 %v371, %v767
  %v786 = vsub.f32 %v448, %v770
  %v787 = vsub.f32 %v525, %v773
  %v788 = vsub.f32 %v602, %v776
  %v789 = vsub.f32 %v679, %v779
  %v790 = vsub.f32 %v756, %v782
  %v791 = vmul.f32 %v783, 1.442695
  %v792 = vpow.pop %v791
  %v793 = vmul.f32 %v784, 1.442695
  %v794 = vpow.pop %v793
  %v795 = vmul.f32 %v785, 1.442695
  %v796 = vpow.pop %v795
  %v797 = vmul.f32 %v786, 1.442695
  %v798 = vpow.pop %v797
  %v799 = vmul.f32 %v787, 1.442695
  %v800 = vpow.pop %v799
  %v801 = vmul.f32 %v788, 1.442695
  %v802 = vpow.pop %v801
  %v803 = vmul.f32 %v789, 1.442695
  %v804 = vpow.pop %v803
  %v805 = vmul.f32 %v790, 1.442695
  %v806 = vpow.pop %v805
  %v807 = vsel %vm145, %v792, 0.0
  %808 = vadd.xlane.f32.xlu0 %v807
  %v809 = vpop.xlane.xlu0 %808
  %v810 = vsel %vm145, %v794, 0.0
  %811 = vadd.xlane.f32.xlu0 %v810
  %v812 = vpop.xlane.xlu0 %811
  %v813 = vsel %vm145, %v796, 0.0
  %814 = vadd.xlane.f32.xlu0 %v813
  %v815 = vpop.xlane.xlu0 %814
  %v816 = vsel %vm145, %v798, 0.0
  %817 = vadd.xlane.f32.xlu0 %v816
  %v818 = vpop.xlane.xlu0 %817
  %v819 = vsel %vm145, %v800, 0.0
  %820 = vadd.xlane.f32.xlu0 %v819
  %v821 = vpop.xlane.xlu0 %820
  %v822 = vsel %vm145, %v802, 0.0
  %823 = vadd.xlane.f32.xlu0 %v822
  %v824 = vpop.xlane.xlu0 %823
  %v825 = vsel %vm145, %v804, 0.0
  %826 = vadd.xlane.f32.xlu0 %v825
  %v827 = vpop.xlane.xlu0 %826
  %v828 = vsel %vm145, %v806, 0.0
  %829 = vadd.xlane.f32.xlu0 %v828
  %v830 = vpop.xlane.xlu0 %829
  %v831 = vrcp.pop %v809
  %v832 = vrcp.pop %v812
  %v833 = vrcp.pop %v815
  %v834 = vrcp.pop %v818
  %v835 = vrcp.pop %v821
  %v836 = vrcp.pop %v824
  %v837 = vrcp.pop %v827
  %v838 = vrcp.pop %v830
  %v839 = vmul.f32 %v792, %v831
  %v840 = vmul.f32 %v794, %v832
  %v841 = vmul.f32 %v796, %v833
  %v842 = vmul.f32 %v798, %v834
  %v843 = vmul.f32 %v800, %v835
  %v844 = vmul.f32 %v802, %v836
  %v845 = vmul.f32 %v804, %v837
  %v846 = vmul.f32 %v806, %v838
  %847 = vrot.lane.b32.xlu0 %v112, 64
  %v848 = vpop.permute.xlu0 %847
  %v851 = vsel %vm145, %v839, 0
  %853 = vmatprep.subr.mxu0 0.0
  %854 = vmatpush1.msra.mxu0 %v848
  %855 = vmatprep.subr.mxu0 0.0
  %856 = vmatpush1.msra.mxu0 0.0
  %857 = vmatprep.subr.mxu0 0.0
  %858 = vmatpush1.msra.mxu0 0.0
  %859 = vmatprep.subr.mxu0 0.0
  %860 = vmatpush1.msra.mxu0 0.0
  %861 = vmatprep.subr.mxu0 0.0
  %862 = vmatpush1.msra.mxu0 0.0
  %863 = vmatprep.subr.mxu0 0.0
  %864 = vmatpush1.msra.mxu0 0.0
  %865 = vmatprep.subr.mxu0 0.0
  %866 = vmatpush1.msra.mxu0 0.0
  %867 = vmatprep.subr.mxu0 0.0
  %868 = vmatpush1.msra.mxu0 0.0
  %869 = vmatprep.subr.mxu0 0.0
  %870 = vmatpush1.msra.mxu0 0.0
  %871 = vmatprep.subr.mxu0 0.0
  %872 = vmatpush1.msra.mxu0 0.0
  %873 = vmatprep.subr.mxu0 0.0
  %874 = vmatpush1.msra.mxu0 0.0
  %875 = vmatprep.subr.mxu0 0.0
  %876 = vmatpush1.msra.mxu0 0.0
  %877 = vmatprep.subr.mxu0 0.0
  %878 = vmatpush1.msra.mxu0 0.0
  %879 = vmatprep.subr.mxu0 0.0
  %880 = vmatpush1.msra.mxu0 0.0
  %881 = vmatprep.subr.mxu0 0.0
  %882 = vmatpush1.msra.mxu0 0.0
  %883 = vmatprep.subr.mxu0 0.0
  %884 = vmatpush1.msra.mxu0 0.0
  %885 = vmatprep.subr.mxu0 0.0
  %886 = vmatpush1.msra.mxu0 0.0
  %887 = vmatprep.subr.mxu0 0.0
  %888 = vmatpush1.msra.mxu0 0.0
  %889 = vmatprep.subr.mxu0 0.0
  %890 = vmatpush1.msra.mxu0 0.0
  %891 = vmatprep.subr.mxu0 0.0
  %892 = vmatpush1.msra.mxu0 0.0
  %893 = vmatprep.subr.mxu0 0.0
  %894 = vmatpush1.msra.mxu0 0.0
  %895 = vmatprep.subr.mxu0 0.0
  %896 = vmatpush1.msra.mxu0 0.0
  %897 = vmatprep.subr.mxu0 0.0
  %898 = vmatpush1.msra.mxu0 0.0
  %899 = vmatprep.subr.mxu0 0.0
  %900 = vmatpush1.msra.mxu0 0.0
  %901 = vmatprep.subr.mxu0 0.0
  %902 = vmatpush1.msra.mxu0 0.0
  %903 = vmatprep.subr.mxu0 0.0
  %904 = vmatpush1.msra.mxu0 0.0
  %905 = vmatprep.subr.mxu0 0.0
  %906 = vmatpush1.msra.mxu0 0.0
  %907 = vmatprep.subr.mxu0 0.0
  %908 = vmatpush1.msra.mxu0 0.0
  %909 = vmatprep.subr.mxu0 0.0
  %910 = vmatpush1.msra.mxu0 0.0
  %911 = vmatprep.subr.mxu0 0.0
  %912 = vmatpush1.msra.mxu0 0.0
  %913 = vmatprep.subr.mxu0 0.0
  %914 = vmatpush1.msra.mxu0 0.0
  %915 = vmatprep.subr.mxu0 0.0
  %916 = vmatpush1.msra.mxu0 0.0
  %917 = vmatprep.mubr.f32.mxu0 0.0
  %918 = vmatmul.mubr.f32.gmra.mrb[0].mxu0 %v851
  %v919 = vpop.f32.mrb[0].mxu0
  %v920 = vadd.f32 0.0, %v919
  %v921 = vpop.f32.mrb[0].mxu0
  %922 = vdwg.mxu0
  %923 = vrot.lane.b32.xlu0 %v115, 64
  %v924 = vpop.permute.xlu0 %923
  %v927 = vsel %vm145, %v840, 0
  %929 = vmatprep.subr.mxu0 0.0
  %930 = vmatpush1.msra.mxu0 %v924
  %931 = vmatprep.subr.mxu0 0.0
  %932 = vmatpush1.msra.mxu0 0.0
  %933 = vmatprep.subr.mxu0 0.0
  %934 = vmatpush1.msra.mxu0 0.0
  %935 = vmatprep.subr.mxu0 0.0
  %936 = vmatpush1.msra.mxu0 0.0
  %937 = vmatprep.subr.mxu0 0.0
  %938 = vmatpush1.msra.mxu0 0.0
  %939 = vmatprep.subr.mxu0 0.0
  %940 = vmatpush1.msra.mxu0 0.0
  %941 = vmatprep.subr.mxu0 0.0
  %942 = vmatpush1.msra.mxu0 0.0
  %943 = vmatprep.subr.mxu0 0.0
  %944 = vmatpush1.msra.mxu0 0.0
  %945 = vmatprep.subr.mxu0 0.0
  %946 = vmatpush1.msra.mxu0 0.0
  %947 = vmatprep.subr.mxu0 0.0
  %948 = vmatpush1.msra.mxu0 0.0
  %949 = vmatprep.subr.mxu0 0.0
  %950 = vmatpush1.msra.mxu0 0.0
  %951 = vmatprep.subr.mxu0 0.0
  %952 = vmatpush1.msra.mxu0 0.0
  %953 = vmatprep.subr.mxu0 0.0
  %954 = vmatpush1.msra.mxu0 0.0
  %955 = vmatprep.subr.mxu0 0.0
  %956 = vmatpush1.msra.mxu0 0.0
  %957 = vmatprep.subr.mxu0 0.0
  %958 = vmatpush1.msra.mxu0 0.0
  %959 = vmatprep.subr.mxu0 0.0
  %960 = vmatpush1.msra.mxu0 0.0
  %961 = vmatprep.subr.mxu0 0.0
  %962 = vmatpush1.msra.mxu0 0.0
  %963 = vmatprep.subr.mxu0 0.0
  %964 = vmatpush1.msra.mxu0 0.0
  %965 = vmatprep.subr.mxu0 0.0
  %966 = vmatpush1.msra.mxu0 0.0
  %967 = vmatprep.subr.mxu0 0.0
  %968 = vmatpush1.msra.mxu0 0.0
  %969 = vmatprep.subr.mxu0 0.0
  %970 = vmatpush1.msra.mxu0 0.0
  %971 = vmatprep.subr.mxu0 0.0
  %972 = vmatpush1.msra.mxu0 0.0
  %973 = vmatprep.subr.mxu0 0.0
  %974 = vmatpush1.msra.mxu0 0.0
  %975 = vmatprep.subr.mxu0 0.0
  %976 = vmatpush1.msra.mxu0 0.0
  %977 = vmatprep.subr.mxu0 0.0
  %978 = vmatpush1.msra.mxu0 0.0
  %979 = vmatprep.subr.mxu0 0.0
  %980 = vmatpush1.msra.mxu0 0.0
  %981 = vmatprep.subr.mxu0 0.0
  %982 = vmatpush1.msra.mxu0 0.0
  %983 = vmatprep.subr.mxu0 0.0
  %984 = vmatpush1.msra.mxu0 0.0
  %985 = vmatprep.subr.mxu0 0.0
  %986 = vmatpush1.msra.mxu0 0.0
  %987 = vmatprep.subr.mxu0 0.0
  %988 = vmatpush1.msra.mxu0 0.0
  %989 = vmatprep.subr.mxu0 0.0
  %990 = vmatpush1.msra.mxu0 0.0
  %991 = vmatprep.subr.mxu0 0.0
  %992 = vmatpush1.msra.mxu0 0.0
  %993 = vmatprep.mubr.f32.mxu0 0.0
  %994 = vmatmul.mubr.f32.gmra.mrb[0].mxu0 %v927
  %v995 = vpop.f32.mrb[0].mxu0
  %v996 = vadd.f32 0.0, %v995
  %v997 = vpop.f32.mrb[0].mxu0
  %998 = vdwg.mxu0
  %999 = vrot.lane.b32.xlu0 %v120, 64
  %v1000 = vpop.permute.xlu0 %999
  %v1003 = vsel %vm145, %v841, 0
  %1005 = vmatprep.subr.mxu0 0.0
  %1006 = vmatpush1.msra.mxu0 %v1000
  %1007 = vmatprep.subr.mxu0 0.0
  %1008 = vmatpush1.msra.mxu0 0.0
  %1009 = vmatprep.subr.mxu0 0.0
  %1010 = vmatpush1.msra.mxu0 0.0
  %1011 = vmatprep.subr.mxu0 0.0
  %1012 = vmatpush1.msra.mxu0 0.0
  %1013 = vmatprep.subr.mxu0 0.0
  %1014 = vmatpush1.msra.mxu0 0.0
  %1015 = vmatprep.subr.mxu0 0.0
  %1016 = vmatpush1.msra.mxu0 0.0
  %1017 = vmatprep.subr.mxu0 0.0
  %1018 = vmatpush1.msra.mxu0 0.0
  %1019 = vmatprep.subr.mxu0 0.0
  %1020 = vmatpush1.msra.mxu0 0.0
  %1021 = vmatprep.subr.mxu0 0.0
  %1022 = vmatpush1.msra.mxu0 0.0
  %1023 = vmatprep.subr.mxu0 0.0
  %1024 = vmatpush1.msra.mxu0 0.0
  %1025 = vmatprep.subr.mxu0 0.0
  %1026 = vmatpush1.msra.mxu0 0.0
  %1027 = vmatprep.subr.mxu0 0.0
  %1028 = vmatpush1.msra.mxu0 0.0
  %1029 = vmatprep.subr.mxu0 0.0
  %1030 = vmatpush1.msra.mxu0 0.0
  %1031 = vmatprep.subr.mxu0 0.0
  %1032 = vmatpush1.msra.mxu0 0.0
  %1033 = vmatprep.subr.mxu0 0.0
  %1034 = vmatpush1.msra.mxu0 0.0
  %1035 = vmatprep.subr.mxu0 0.0
  %1036 = vmatpush1.msra.mxu0 0.0
  %1037 = vmatprep.subr.mxu0 0.0
  %1038 = vmatpush1.msra.mxu0 0.0
  %1039 = vmatprep.subr.mxu0 0.0
  %1040 = vmatpush1.msra.mxu0 0.0
  %1041 = vmatprep.subr.mxu0 0.0
  %1042 = vmatpush1.msra.mxu0 0.0
  %1043 = vmatprep.subr.mxu0 0.0
  %1044 = vmatpush1.msra.mxu0 0.0
  %1045 = vmatprep.subr.mxu0 0.0
  %1046 = vmatpush1.msra.mxu0 0.0
  %1047 = vmatprep.subr.mxu0 0.0
  %1048 = vmatpush1.msra.mxu0 0.0
  %1049 = vmatprep.subr.mxu0 0.0
  %1050 = vmatpush1.msra.mxu0 0.0
  %1051 = vmatprep.subr.mxu0 0.0
  %1052 = vmatpush1.msra.mxu0 0.0
  %1053 = vmatprep.subr.mxu0 0.0
  %1054 = vmatpush1.msra.mxu0 0.0
  %1055 = vmatprep.subr.mxu0 0.0
  %1056 = vmatpush1.msra.mxu0 0.0
  %1057 = vmatprep.subr.mxu0 0.0
  %1058 = vmatpush1.msra.mxu0 0.0
  %1059 = vmatprep.subr.mxu0 0.0
  %1060 = vmatpush1.msra.mxu0 0.0
  %1061 = vmatprep.subr.mxu0 0.0
  %1062 = vmatpush1.msra.mxu0 0.0
  %1063 = vmatprep.subr.mxu0 0.0
  %1064 = vmatpush1.msra.mxu0 0.0
  %1065 = vmatprep.subr.mxu0 0.0
  %1066 = vmatpush1.msra.mxu0 0.0
  %1067 = vmatprep.subr.mxu0 0.0
  %1068 = vmatpush1.msra.mxu0 0.0
  %1069 = vmatprep.mubr.f32.mxu0 0.0
  %1070 = vmatmul.mubr.f32.gmra.mrb[0].mxu0 %v1003
  %v1071 = vpop.f32.mrb[0].mxu0
  %v1072 = vadd.f32 0.0, %v1071
  %v1073 = vpop.f32.mrb[0].mxu0
  %1074 = vdwg.mxu0
  %1075 = vrot.lane.b32.xlu0 %v123, 64
  %v1076 = vpop.permute.xlu0 %1075
  %v1079 = vsel %vm145, %v842, 0
  %1081 = vmatprep.subr.mxu0 0.0
  %1082 = vmatpush1.msra.mxu0 %v1076
  %1083 = vmatprep.subr.mxu0 0.0
  %1084 = vmatpush1.msra.mxu0 0.0
  %1085 = vmatprep.subr.mxu0 0.0
  %1086 = vmatpush1.msra.mxu0 0.0
  %1087 = vmatprep.subr.mxu0 0.0
  %1088 = vmatpush1.msra.mxu0 0.0
  %1089 = vmatprep.subr.mxu0 0.0
  %1090 = vmatpush1.msra.mxu0 0.0
  %1091 = vmatprep.subr.mxu0 0.0
  %1092 = vmatpush1.msra.mxu0 0.0
  %1093 = vmatprep.subr.mxu0 0.0
  %1094 = vmatpush1.msra.mxu0 0.0
  %1095 = vmatprep.subr.mxu0 0.0
  %1096 = vmatpush1.msra.mxu0 0.0
  %1097 = vmatprep.subr.mxu0 0.0
  %1098 = vmatpush1.msra.mxu0 0.0
  %1099 = vmatprep.subr.mxu0 0.0
  %1100 = vmatpush1.msra.mxu0 0.0
  %1101 = vmatprep.subr.mxu0 0.0
  %1102 = vmatpush1.msra.mxu0 0.0
  %1103 = vmatprep.subr.mxu0 0.0
  %1104 = vmatpush1.msra.mxu0 0.0
  %1105 = vmatprep.subr.mxu0 0.0
  %1106 = vmatpush1.msra.mxu0 0.0
  %1107 = vmatprep.subr.mxu0 0.0
  %1108 = vmatpush1.msra.mxu0 0.0
  %1109 = vmatprep.subr.mxu0 0.0
  %1110 = vmatpush1.msra.mxu0 0.0
  %1111 = vmatprep.subr.mxu0 0.0
  %1112 = vmatpush1.msra.mxu0 0.0
  %1113 = vmatprep.subr.mxu0 0.0
  %1114 = vmatpush1.msra.mxu0 0.0
  %1115 = vmatprep.subr.mxu0 0.0
  %1116 = vmatpush1.msra.mxu0 0.0
  %1117 = vmatprep.subr.mxu0 0.0
  %1118 = vmatpush1.msra.mxu0 0.0
  %1119 = vmatprep.subr.mxu0 0.0
  %1120 = vmatpush1.msra.mxu0 0.0
  %1121 = vmatprep.subr.mxu0 0.0
  %1122 = vmatpush1.msra.mxu0 0.0
  %1123 = vmatprep.subr.mxu0 0.0
  %1124 = vmatpush1.msra.mxu0 0.0
  %1125 = vmatprep.subr.mxu0 0.0
  %1126 = vmatpush1.msra.mxu0 0.0
  %1127 = vmatprep.subr.mxu0 0.0
  %1128 = vmatpush1.msra.mxu0 0.0
  %1129 = vmatprep.subr.mxu0 0.0
  %1130 = vmatpush1.msra.mxu0 0.0
  %1131 = vmatprep.subr.mxu0 0.0
  %1132 = vmatpush1.msra.mxu0 0.0
  %1133 = vmatprep.subr.mxu0 0.0
  %1134 = vmatpush1.msra.mxu0 0.0
  %1135 = vmatprep.subr.mxu0 0.0
  %1136 = vmatpush1.msra.mxu0 0.0
  %1137 = vmatprep.subr.mxu0 0.0
  %1138 = vmatpush1.msra.mxu0 0.0
  %1139 = vmatprep.subr.mxu0 0.0
  %1140 = vmatpush1.msra.mxu0 0.0
  %1141 = vmatprep.subr.mxu0 0.0
  %1142 = vmatpush1.msra.mxu0 0.0
  %1143 = vmatprep.subr.mxu0 0.0
  %1144 = vmatpush1.msra.mxu0 0.0
  %1145 = vmatprep.mubr.f32.mxu0 0.0
  %1146 = vmatmul.mubr.f32.gmra.mrb[0].mxu0 %v1079
  %v1147 = vpop.f32.mrb[0].mxu0
  %v1148 = vadd.f32 0.0, %v1147
  %v1149 = vpop.f32.mrb[0].mxu0
  %1150 = vdwg.mxu0
  %1151 = vrot.lane.b32.xlu0 %v128, 64
  %v1152 = vpop.permute.xlu0 %1151
  %v1155 = vsel %vm145, %v843, 0
  %1157 = vmatprep.subr.mxu0 0.0
  %1158 = vmatpush1.msra.mxu0 %v1152
  %1159 = vmatprep.subr.mxu0 0.0
  %1160 = vmatpush1.msra.mxu0 0.0
  %1161 = vmatprep.subr.mxu0 0.0
  %1162 = vmatpush1.msra.mxu0 0.0
  %1163 = vmatprep.subr.mxu0 0.0
  %1164 = vmatpush1.msra.mxu0 0.0
  %1165 = vmatprep.subr.mxu0 0.0
  %1166 = vmatpush1.msra.mxu0 0.0
  %1167 = vmatprep.subr.mxu0 0.0
  %1168 = vmatpush1.msra.mxu0 0.0
  %1169 = vmatprep.subr.mxu0 0.0
  %1170 = vmatpush1.msra.mxu0 0.0
  %1171 = vmatprep.subr.mxu0 0.0
  %1172 = vmatpush1.msra.mxu0 0.0
  %1173 = vmatprep.subr.mxu0 0.0
  %1174 = vmatpush1.msra.mxu0 0.0
  %1175 = vmatprep.subr.mxu0 0.0
  %1176 = vmatpush1.msra.mxu0 0.0
  %1177 = vmatprep.subr.mxu0 0.0
  %1178 = vmatpush1.msra.mxu0 0.0
  %1179 = vmatprep.subr.mxu0 0.0
  %1180 = vmatpush1.msra.mxu0 0.0
  %1181 = vmatprep.subr.mxu0 0.0
  %1182 = vmatpush1.msra.mxu0 0.0
  %1183 = vmatprep.subr.mxu0 0.0
  %1184 = vmatpush1.msra.mxu0 0.0
  %1185 = vmatprep.subr.mxu0 0.0
  %1186 = vmatpush1.msra.mxu0 0.0
  %1187 = vmatprep.subr.mxu0 0.0
  %1188 = vmatpush1.msra.mxu0 0.0
  %1189 = vmatprep.subr.mxu0 0.0
  %1190 = vmatpush1.msra.mxu0 0.0
  %1191 = vmatprep.subr.mxu0 0.0
  %1192 = vmatpush1.msra.mxu0 0.0
  %1193 = vmatprep.subr.mxu0 0.0
  %1194 = vmatpush1.msra.mxu0 0.0
  %1195 = vmatprep.subr.mxu0 0.0
  %1196 = vmatpush1.msra.mxu0 0.0
  %1197 = vmatprep.subr.mxu0 0.0
  %1198 = vmatpush1.msra.mxu0 0.0
  %1199 = vmatprep.subr.mxu0 0.0
  %1200 = vmatpush1.msra.mxu0 0.0
  %1201 = vmatprep.subr.mxu0 0.0
  %1202 = vmatpush1.msra.mxu0 0.0
  %1203 = vmatprep.subr.mxu0 0.0
  %1204 = vmatpush1.msra.mxu0 0.0
  %1205 = vmatprep.subr.mxu0 0.0
  %1206 = vmatpush1.msra.mxu0 0.0
  %1207 = vmatprep.subr.mxu0 0.0
  %1208 = vmatpush1.msra.mxu0 0.0
  %1209 = vmatprep.subr.mxu0 0.0
  %1210 = vmatpush1.msra.mxu0 0.0
  %1211 = vmatprep.subr.mxu0 0.0
  %1212 = vmatpush1.msra.mxu0 0.0
  %1213 = vmatprep.subr.mxu0 0.0
  %1214 = vmatpush1.msra.mxu0 0.0
  %1215 = vmatprep.subr.mxu0 0.0
  %1216 = vmatpush1.msra.mxu0 0.0
  %1217 = vmatprep.subr.mxu0 0.0
  %1218 = vmatpush1.msra.mxu0 0.0
  %1219 = vmatprep.subr.mxu0 0.0
  %1220 = vmatpush1.msra.mxu0 0.0
  %1221 = vmatprep.mubr.f32.mxu0 0.0
  %1222 = vmatmul.mubr.f32.gmra.mrb[0].mxu0 %v1155
  %v1223 = vpop.f32.mrb[0].mxu0
  %v1224 = vadd.f32 0.0, %v1223
  %v1225 = vpop.f32.mrb[0].mxu0
  %1226 = vdwg.mxu0
  %1227 = vrot.lane.b32.xlu0 %v131, 64
  %v1228 = vpop.permute.xlu0 %1227
  %v1231 = vsel %vm145, %v844, 0
  %1233 = vmatprep.subr.mxu0 0.0
  %1234 = vmatpush1.msra.mxu0 %v1228
  %1235 = vmatprep.subr.mxu0 0.0
  %1236 = vmatpush1.msra.mxu0 0.0
  %1237 = vmatprep.subr.mxu0 0.0
  %1238 = vmatpush1.msra.mxu0 0.0
  %1239 = vmatprep.subr.mxu0 0.0
  %1240 = vmatpush1.msra.mxu0 0.0
  %1241 = vmatprep.subr.mxu0 0.0
  %1242 = vmatpush1.msra.mxu0 0.0
  %1243 = vmatprep.subr.mxu0 0.0
  %1244 = vmatpush1.msra.mxu0 0.0
  %1245 = vmatprep.subr.mxu0 0.0
  %1246 = vmatpush1.msra.mxu0 0.0
  %1247 = vmatprep.subr.mxu0 0.0
  %1248 = vmatpush1.msra.mxu0 0.0
  %1249 = vmatprep.subr.mxu0 0.0
  %1250 = vmatpush1.msra.mxu0 0.0
  %1251 = vmatprep.subr.mxu0 0.0
  %1252 = vmatpush1.msra.mxu0 0.0
  %1253 = vmatprep.subr.mxu0 0.0
  %1254 = vmatpush1.msra.mxu0 0.0
  %1255 = vmatprep.subr.mxu0 0.0
  %1256 = vmatpush1.msra.mxu0 0.0
  %1257 = vmatprep.subr.mxu0 0.0
  %1258 = vmatpush1.msra.mxu0 0.0
  %1259 = vmatprep.subr.mxu0 0.0
  %1260 = vmatpush1.msra.mxu0 0.0
  %1261 = vmatprep.subr.mxu0 0.0
  %1262 = vmatpush1.msra.mxu0 0.0
  %1263 = vmatprep.subr.mxu0 0.0
  %1264 = vmatpush1.msra.mxu0 0.0
  %1265 = vmatprep.subr.mxu0 0.0
  %1266 = vmatpush1.msra.mxu0 0.0
  %1267 = vmatprep.subr.mxu0 0.0
  %1268 = vmatpush1.msra.mxu0 0.0
  %1269 = vmatprep.subr.mxu0 0.0
  %1270 = vmatpush1.msra.mxu0 0.0
  %1271 = vmatprep.subr.mxu0 0.0
  %1272 = vmatpush1.msra.mxu0 0.0
  %1273 = vmatprep.subr.mxu0 0.0
  %1274 = vmatpush1.msra.mxu0 0.0
  %1275 = vmatprep.subr.mxu0 0.0
  %1276 = vmatpush1.msra.mxu0 0.0
  %1277 = vmatprep.subr.mxu0 0.0
  %1278 = vmatpush1.msra.mxu0 0.0
  %1279 = vmatprep.subr.mxu0 0.0
  %1280 = vmatpush1.msra.mxu0 0.0
  %1281 = vmatprep.subr.mxu0 0.0
  %1282 = vmatpush1.msra.mxu0 0.0
  %1283 = vmatprep.subr.mxu0 0.0
  %1284 = vmatpush1.msra.mxu0 0.0
  %1285 = vmatprep.subr.mxu0 0.0
  %1286 = vmatpush1.msra.mxu0 0.0
  %1287 = vmatprep.subr.mxu0 0.0
  %1288 = vmatpush1.msra.mxu0 0.0
  %1289 = vmatprep.subr.mxu0 0.0
  %1290 = vmatpush1.msra.mxu0 0.0
  %1291 = vmatprep.subr.mxu0 0.0
  %1292 = vmatpush1.msra.mxu0 0.0
  %1293 = vmatprep.subr.mxu0 0.0
  %1294 = vmatpush1.msra.mxu0 0.0
  %1295 = vmatprep.subr.mxu0 0.0
  %1296 = vmatpush1.msra.mxu0 0.0
  %1297 = vmatprep.mubr.f32.mxu0 0.0
  %1298 = vmatmul.mubr.f32.gmra.mrb[0].mxu0 %v1231
  %v1299 = vpop.f32.mrb[0].mxu0
  %v1300 = vadd.f32 0.0, %v1299
  %v1301 = vpop.f32.mrb[0].mxu0
  %1302 = vdwg.mxu0
  %1303 = vrot.lane.b32.xlu0 %v136, 64
  %v1304 = vpop.permute.xlu0 %1303
  %v1307 = vsel %vm145, %v845, 0
  %1309 = vmatprep.subr.mxu0 0.0
  %1310 = vmatpush1.msra.mxu0 %v1304
  %1311 = vmatprep.subr.mxu0 0.0
  %1312 = vmatpush1.msra.mxu0 0.0
  %1313 = vmatprep.subr.mxu0 0.0
  %1314 = vmatpush1.msra.mxu0 0.0
  %1315 = vmatprep.subr.mxu0 0.0
  %1316 = vmatpush1.msra.mxu0 0.0
  %1317 = vmatprep.subr.mxu0 0.0
  %1318 = vmatpush1.msra.mxu0 0.0
  %1319 = vmatprep.subr.mxu0 0.0
  %1320 = vmatpush1.msra.mxu0 0.0
  %1321 = vmatprep.subr.mxu0 0.0
  %1322 = vmatpush1.msra.mxu0 0.0
  %1323 = vmatprep.subr.mxu0 0.0
  %1324 = vmatpush1.msra.mxu0 0.0
  %1325 = vmatprep.subr.mxu0 0.0
  %1326 = vmatpush1.msra.mxu0 0.0
  %1327 = vmatprep.subr.mxu0 0.0
  %1328 = vmatpush1.msra.mxu0 0.0
  %1329 = vmatprep.subr.mxu0 0.0
  %1330 = vmatpush1.msra.mxu0 0.0
  %1331 = vmatprep.subr.mxu0 0.0
  %1332 = vmatpush1.msra.mxu0 0.0
  %1333 = vmatprep.subr.mxu0 0.0
  %1334 = vmatpush1.msra.mxu0 0.0
  %1335 = vmatprep.subr.mxu0 0.0
  %1336 = vmatpush1.msra.mxu0 0.0
  %1337 = vmatprep.subr.mxu0 0.0
  %1338 = vmatpush1.msra.mxu0 0.0
  %1339 = vmatprep.subr.mxu0 0.0
  %1340 = vmatpush1.msra.mxu0 0.0
  %1341 = vmatprep.subr.mxu0 0.0
  %1342 = vmatpush1.msra.mxu0 0.0
  %1343 = vmatprep.subr.mxu0 0.0
  %1344 = vmatpush1.msra.mxu0 0.0
  %1345 = vmatprep.subr.mxu0 0.0
  %1346 = vmatpush1.msra.mxu0 0.0
  %1347 = vmatprep.subr.mxu0 0.0
  %1348 = vmatpush1.msra.mxu0 0.0
  %1349 = vmatprep.subr.mxu0 0.0
  %1350 = vmatpush1.msra.mxu0 0.0
  %1351 = vmatprep.subr.mxu0 0.0
  %1352 = vmatpush1.msra.mxu0 0.0
  %1353 = vmatprep.subr.mxu0 0.0
  %1354 = vmatpush1.msra.mxu0 0.0
  %1355 = vmatprep.subr.mxu0 0.0
  %1356 = vmatpush1.msra.mxu0 0.0
  %1357 = vmatprep.subr.mxu0 0.0
  %1358 = vmatpush1.msra.mxu0 0.0
  %1359 = vmatprep.subr.mxu0 0.0
  %1360 = vmatpush1.msra.mxu0 0.0
  %1361 = vmatprep.subr.mxu0 0.0
  %1362 = vmatpush1.msra.mxu0 0.0
  %1363 = vmatprep.subr.mxu0 0.0
  %1364 = vmatpush1.msra.mxu0 0.0
  %1365 = vmatprep.subr.mxu0 0.0
  %1366 = vmatpush1.msra.mxu0 0.0
  %1367 = vmatprep.subr.mxu0 0.0
  %1368 = vmatpush1.msra.mxu0 0.0
  %1369 = vmatprep.subr.mxu0 0.0
  %1370 = vmatpush1.msra.mxu0 0.0
  %1371 = vmatprep.subr.mxu0 0.0
  %1372 = vmatpush1.msra.mxu0 0.0
  %1373 = vmatprep.mubr.f32.mxu0 0.0
  %1374 = vmatmul.mubr.f32.gmra.mrb[0].mxu0 %v1307
  %v1375 = vpop.f32.mrb[0].mxu0
  %v1376 = vadd.f32 0.0, %v1375
  %v1377 = vpop.f32.mrb[0].mxu0
  %1378 = vdwg.mxu0
  %1379 = vrot.lane.b32.xlu0 %v139, 64
  %v1380 = vpop.permute.xlu0 %1379
  %v1383 = vsel %vm145, %v846, 0
  %1385 = vmatprep.subr.mxu0 0.0
  %1386 = vmatpush1.msra.mxu0 %v1380
  %1387 = vmatprep.subr.mxu0 0.0
  %1388 = vmatpush1.msra.mxu0 0.0
  %1389 = vmatprep.subr.mxu0 0.0
  %1390 = vmatpush1.msra.mxu0 0.0
  %1391 = vmatprep.subr.mxu0 0.0
  %1392 = vmatpush1.msra.mxu0 0.0
  %1393 = vmatprep.subr.mxu0 0.0
  %1394 = vmatpush1.msra.mxu0 0.0
  %1395 = vmatprep.subr.mxu0 0.0
  %1396 = vmatpush1.msra.mxu0 0.0
  %1397 = vmatprep.subr.mxu0 0.0
  %1398 = vmatpush1.msra.mxu0 0.0
  %1399 = vmatprep.subr.mxu0 0.0
  %1400 = vmatpush1.msra.mxu0 0.0
  %1401 = vmatprep.subr.mxu0 0.0
  %1402 = vmatpush1.msra.mxu0 0.0
  %1403 = vmatprep.subr.mxu0 0.0
  %1404 = vmatpush1.msra.mxu0 0.0
  %1405 = vmatprep.subr.mxu0 0.0
  %1406 = vmatpush1.msra.mxu0 0.0
  %1407 = vmatprep.subr.mxu0 0.0
  %1408 = vmatpush1.msra.mxu0 0.0
  %1409 = vmatprep.subr.mxu0 0.0
  %1410 = vmatpush1.msra.mxu0 0.0
  %1411 = vmatprep.subr.mxu0 0.0
  %1412 = vmatpush1.msra.mxu0 0.0
  %1413 = vmatprep.subr.mxu0 0.0
  %1414 = vmatpush1.msra.mxu0 0.0
  %1415 = vmatprep.subr.mxu0 0.0
  %1416 = vmatpush1.msra.mxu0 0.0
  %1417 = vmatprep.subr.mxu0 0.0
  %1418 = vmatpush1.msra.mxu0 0.0
  %1419 = vmatprep.subr.mxu0 0.0
  %1420 = vmatpush1.msra.mxu0 0.0
  %1421 = vmatprep.subr.mxu0 0.0
  %1422 = vmatpush1.msra.mxu0 0.0
  %1423 = vmatprep.subr.mxu0 0.0
  %1424 = vmatpush1.msra.mxu0 0.0
  %1425 = vmatprep.subr.mxu0 0.0
  %1426 = vmatpush1.msra.mxu0 0.0
  %1427 = vmatprep.subr.mxu0 0.0
  %1428 = vmatpush1.msra.mxu0 0.0
  %1429 = vmatprep.subr.mxu0 0.0
  %1430 = vmatpush1.msra.mxu0 0.0
  %1431 = vmatprep.subr.mxu0 0.0
  %1432 = vmatpush1.msra.mxu0 0.0
  %1433 = vmatprep.subr.mxu0 0.0
  %1434 = vmatpush1.msra.mxu0 0.0
  %1435 = vmatprep.subr.mxu0 0.0
  %1436 = vmatpush1.msra.mxu0 0.0
  %1437 = vmatprep.subr.mxu0 0.0
  %1438 = vmatpush1.msra.mxu0 0.0
  %1439 = vmatprep.subr.mxu0 0.0
  %1440 = vmatpush1.msra.mxu0 0.0
  %1441 = vmatprep.subr.mxu0 0.0
  %1442 = vmatpush1.msra.mxu0 0.0
  %1443 = vmatprep.subr.mxu0 0.0
  %1444 = vmatpush1.msra.mxu0 0.0
  %1445 = vmatprep.subr.mxu0 0.0
  %1446 = vmatpush1.msra.mxu0 0.0
  %1447 = vmatprep.subr.mxu0 0.0
  %1448 = vmatpush1.msra.mxu0 0.0
  %1449 = vmatprep.mubr.f32.mxu0 0.0
  %1450 = vmatmul.mubr.f32.gmra.mrb[0].mxu0 %v1383
  %v1451 = vpop.f32.mrb[0].mxu0
  %v1452 = vadd.f32 0.0, %v1451
  %v1453 = vpop.f32.mrb[0].mxu0
  %1454 = vdwg.mxu0
  %1455 = vst.msk [vmem:[#allocation2] sm:$0xff] %vm145, %v920
  %1456 = vst.msk [vmem:[#allocation2 + $0x8] sm:$0xff] %vm145, %v996
  %1457 = vst.msk [vmem:[#allocation2 + $0x10] sm:$0xff] %vm145, %v1072
  %1458 = vst.msk [vmem:[#allocation2 + $0x18] sm:$0xff] %vm145, %v1148
  %1459 = vst.msk [vmem:[#allocation2 + $0x20] sm:$0xff] %vm145, %v1224
  %1460 = vst.msk [vmem:[#allocation2 + $0x28] sm:$0xff] %vm145, %v1300
  %1461 = vst.msk [vmem:[#allocation2 + $0x30] sm:$0xff] %vm145, %v1376
  %1462 = vst.msk [vmem:[#allocation2 + $0x38] sm:$0xff] %vm145, %v1452
  %1463 = vrot.lane.b32.xlu0 %v112, 120
  %v1464 = vpop.permute.xlu0 %1463
  %1465 = vrot.lane.b32.xlu0 %v112, 88
  %v1466 = vpop.permute.xlu0 %1465
  %v1467 = vsel %vm145, %v1464, 0
  %v1469 = vsel %vm145, %v1466, 0
  %1471 = vmatprep.subr.mxu0 0.0
  %1472 = vmatpush1.xpose.msra.mxu0 %v1469
  %1473 = vmatprep.subr.mxu0 0.0
  %1474 = vmatpush1.xpose.msra.mxu0 0.0
  %1475 = vmatprep.subr.mxu0 0.0
  %1476 = vmatpush1.xpose.msra.mxu0 0.0
  %1477 = vmatprep.subr.mxu0 0.0
  %1478 = vmatpush1.xpose.msra.mxu0 0.0
  %1479 = vmatprep.subr.mxu0 0.0
  %1480 = vmatpush1.xpose.msra.mxu0 0.0
  %1481 = vmatprep.subr.mxu0 0.0
  %1482 = vmatpush1.xpose.msra.mxu0 0.0
  %1483 = vmatprep.subr.mxu0 0.0
  %1484 = vmatpush1.xpose.msra.mxu0 0.0
  %1485 = vmatprep.subr.mxu0 0.0
  %1486 = vmatpush1.xpose.msra.mxu0 0.0
  %1487 = vmatprep.subr.mxu0 0.0
  %1488 = vmatpush1.xpose.msra.mxu0 0.0
  %1489 = vmatprep.subr.mxu0 0.0
  %1490 = vmatpush1.xpose.msra.mxu0 0.0
  %1491 = vmatprep.subr.mxu0 0.0
  %1492 = vmatpush1.xpose.msra.mxu0 0.0
  %1493 = vmatprep.subr.mxu0 0.0
  %1494 = vmatpush1.xpose.msra.mxu0 0.0
  %1495 = vmatprep.subr.mxu0 0.0
  %1496 = vmatpush1.xpose.msra.mxu0 0.0
  %1497 = vmatprep.subr.mxu0 0.0
  %1498 = vmatpush1.xpose.msra.mxu0 0.0
  %1499 = vmatprep.subr.mxu0 0.0
  %1500 = vmatpush1.xpose.msra.mxu0 0.0
  %1501 = vmatprep.subr.mxu0 0.0
  %1502 = vmatpush1.xpose.msra.mxu0 0.0
  %1503 = vmatprep.subr.mxu0 0.0
  %1504 = vmatpush1.xpose.msra.mxu0 0.0
  %1505 = vmatprep.subr.mxu0 0.0
  %1506 = vmatpush1.xpose.msra.mxu0 0.0
  %1507 = vmatprep.subr.mxu0 0.0
  %1508 = vmatpush1.xpose.msra.mxu0 0.0
  %1509 = vmatprep.subr.mxu0 0.0
  %1510 = vmatpush1.xpose.msra.mxu0 0.0
  %1511 = vmatprep.subr.mxu0 0.0
  %1512 = vmatpush1.xpose.msra.mxu0 0.0
  %1513 = vmatprep.subr.mxu0 0.0
  %1514 = vmatpush1.xpose.msra.mxu0 0.0
  %1515 = vmatprep.subr.mxu0 0.0
  %1516 = vmatpush1.xpose.msra.mxu0 0.0
  %1517 = vmatprep.subr.mxu0 0.0
  %1518 = vmatpush1.xpose.msra.mxu0 0.0
  %1519 = vmatprep.subr.mxu0 0.0
  %1520 = vmatpush1.xpose.msra.mxu0 0.0
  %1521 = vmatprep.subr.mxu0 0.0
  %1522 = vmatpush1.xpose.msra.mxu0 0.0
  %1523 = vmatprep.subr.mxu0 0.0
  %1524 = vmatpush1.xpose.msra.mxu0 0.0
  %1525 = vmatprep.subr.mxu0 0.0
  %1526 = vmatpush1.xpose.msra.mxu0 0.0
  %1527 = vmatprep.subr.mxu0 0.0
  %1528 = vmatpush1.xpose.msra.mxu0 0.0
  %1529 = vmatprep.subr.mxu0 0.0
  %1530 = vmatpush1.xpose.msra.mxu0 0.0
  %1531 = vmatprep.subr.mxu0 0.0
  %1532 = vmatpush1.xpose.msra.mxu0 0.0
  %1533 = vmatprep.subr.mxu0 0.0
  %1534 = vmatpush1.xpose.msra.mxu0 0.0
  %1535 = vmatprep.mubr.f32.mxu0 0.0
  %1536 = vmatmul.mubr.f32.gmra.mrb[0].mxu0 %v1467
  %v1537 = vpop.f32.mrb[0].mxu0
  %v1538 = vadd.f32 0.0, %v1537
  %v1539 = vpop.f32.mrb[0].mxu0
  %1540 = vdwg.mxu0
  %1541 = vrot.lane.b32.xlu0 %v115, 120
  %v1542 = vpop.permute.xlu0 %1541
  %1543 = vrot.lane.b32.xlu0 %v115, 88
  %v1544 = vpop.permute.xlu0 %1543
  %v1545 = vsel %vm145, %v1542, 0
  %v1547 = vsel %vm145, %v1544, 0
  %1549 = vmatprep.subr.mxu0 0.0
  %1550 = vmatpush1.xpose.msra.mxu0 %v1547
  %1551 = vmatprep.subr.mxu0 0.0
  %1552 = vmatpush1.xpose.msra.mxu0 0.0
  %1553 = vmatprep.subr.mxu0 0.0
  %1554 = vmatpush1.xpose.msra.mxu0 0.0
  %1555 = vmatprep.subr.mxu0 0.0
  %1556 = vmatpush1.xpose.msra.mxu0 0.0
  %1557 = vmatprep.subr.mxu0 0.0
  %1558 = vmatpush1.xpose.msra.mxu0 0.0
  %1559 = vmatprep.subr.mxu0 0.0
  %1560 = vmatpush1.xpose.msra.mxu0 0.0
  %1561 = vmatprep.subr.mxu0 0.0
  %1562 = vmatpush1.xpose.msra.mxu0 0.0
  %1563 = vmatprep.subr.mxu0 0.0
  %1564 = vmatpush1.xpose.msra.mxu0 0.0
  %1565 = vmatprep.subr.mxu0 0.0
  %1566 = vmatpush1.xpose.msra.mxu0 0.0
  %1567 = vmatprep.subr.mxu0 0.0
  %1568 = vmatpush1.xpose.msra.mxu0 0.0
  %1569 = vmatprep.subr.mxu0 0.0
  %1570 = vmatpush1.xpose.msra.mxu0 0.0
  %1571 = vmatprep.subr.mxu0 0.0
  %1572 = vmatpush1.xpose.msra.mxu0 0.0
  %1573 = vmatprep.subr.mxu0 0.0
  %1574 = vmatpush1.xpose.msra.mxu0 0.0
  %1575 = vmatprep.subr.mxu0 0.0
  %1576 = vmatpush1.xpose.msra.mxu0 0.0
  %1577 = vmatprep.subr.mxu0 0.0
  %1578 = vmatpush1.xpose.msra.mxu0 0.0
  %1579 = vmatprep.subr.mxu0 0.0
  %1580 = vmatpush1.xpose.msra.mxu0 0.0
  %1581 = vmatprep.subr.mxu0 0.0
  %1582 = vmatpush1.xpose.msra.mxu0 0.0
  %1583 = vmatprep.subr.mxu0 0.0
  %1584 = vmatpush1.xpose.msra.mxu0 0.0
  %1585 = vmatprep.subr.mxu0 0.0
  %1586 = vmatpush1.xpose.msra.mxu0 0.0
  %1587 = vmatprep.subr.mxu0 0.0
  %1588 = vmatpush1.xpose.msra.mxu0 0.0
  %1589 = vmatprep.subr.mxu0 0.0
  %1590 = vmatpush1.xpose.msra.mxu0 0.0
  %1591 = vmatprep.subr.mxu0 0.0
  %1592 = vmatpush1.xpose.msra.mxu0 0.0
  %1593 = vmatprep.subr.mxu0 0.0
  %1594 = vmatpush1.xpose.msra.mxu0 0.0
  %1595 = vmatprep.subr.mxu0 0.0
  %1596 = vmatpush1.xpose.msra.mxu0 0.0
  %1597 = vmatprep.subr.mxu0 0.0
  %1598 = vmatpush1.xpose.msra.mxu0 0.0
  %1599 = vmatprep.subr.mxu0 0.0
  %1600 = vmatpush1.xpose.msra.mxu0 0.0
  %1601 = vmatprep.subr.mxu0 0.0
  %1602 = vmatpush1.xpose.msra.mxu0 0.0
  %1603 = vmatprep.subr.mxu0 0.0
  %1604 = vmatpush1.xpose.msra.mxu0 0.0
  %1605 = vmatprep.subr.mxu0 0.0
  %1606 = vmatpush1.xpose.msra.mxu0 0.0
  %1607 = vmatprep.subr.mxu0 0.0
  %1608 = vmatpush1.xpose.msra.mxu0 0.0
  %1609 = vmatprep.subr.mxu0 0.0
  %1610 = vmatpush1.xpose.msra.mxu0 0.0
  %1611 = vmatprep.subr.mxu0 0.0
  %1612 = vmatpush1.xpose.msra.mxu0 0.0
  %1613 = vmatprep.mubr.f32.mxu0 0.0
  %1614 = vmatmul.mubr.f32.gmra.mrb[0].mxu0 %v1545
  %v1615 = vpop.f32.mrb[0].mxu0
  %v1616 = vadd.f32 0.0, %v1615
  %v1617 = vpop.f32.mrb[0].mxu0
  %1618 = vdwg.mxu0
  %1619 = vrot.lane.b32.xlu0 %v120, 120
  %v1620 = vpop.permute.xlu0 %1619
  %1621 = vrot.lane.b32.xlu0 %v120, 88
  %v1622 = vpop.permute.xlu0 %1621
  %v1623 = vsel %vm145, %v1620, 0
  %v1625 = vsel %vm145, %v1622, 0
  %1627 = vmatprep.subr.mxu0 0.0
  %1628 = vmatpush1.xpose.msra.mxu0 %v1625
  %1629 = vmatprep.subr.mxu0 0.0
  %1630 = vmatpush1.xpose.msra.mxu0 0.0
  %1631 = vmatprep.subr.mxu0 0.0
  %1632 = vmatpush1.xpose.msra.mxu0 0.0
  %1633 = vmatprep.subr.mxu0 0.0
  %1634 = vmatpush1.xpose.msra.mxu0 0.0
  %1635 = vmatprep.subr.mxu0 0.0
  %1636 = vmatpush1.xpose.msra.mxu0 0.0
  %1637 = vmatprep.subr.mxu0 0.0
  %1638 = vmatpush1.xpose.msra.mxu0 0.0
  %1639 = vmatprep.subr.mxu0 0.0
  %1640 = vmatpush1.xpose.msra.mxu0 0.0
  %1641 = vmatprep.subr.mxu0 0.0
  %1642 = vmatpush1.xpose.msra.mxu0 0.0
  %1643 = vmatprep.subr.mxu0 0.0
  %1644 = vmatpush1.xpose.msra.mxu0 0.0
  %1645 = vmatprep.subr.mxu0 0.0
  %1646 = vmatpush1.xpose.msra.mxu0 0.0
  %1647 = vmatprep.subr.mxu0 0.0
  %1648 = vmatpush1.xpose.msra.mxu0 0.0
  %1649 = vmatprep.subr.mxu0 0.0
  %1650 = vmatpush1.xpose.msra.mxu0 0.0
  %1651 = vmatprep.subr.mxu0 0.0
  %1652 = vmatpush1.xpose.msra.mxu0 0.0
  %1653 = vmatprep.subr.mxu0 0.0
  %1654 = vmatpush1.xpose.msra.mxu0 0.0
  %1655 = vmatprep.subr.mxu0 0.0
  %1656 = vmatpush1.xpose.msra.mxu0 0.0
  %1657 = vmatprep.subr.mxu0 0.0
  %1658 = vmatpush1.xpose.msra.mxu0 0.0
  %1659 = vmatprep.subr.mxu0 0.0
  %1660 = vmatpush1.xpose.msra.mxu0 0.0
  %1661 = vmatprep.subr.mxu0 0.0
  %1662 = vmatpush1.xpose.msra.mxu0 0.0
  %1663 = vmatprep.subr.mxu0 0.0
  %1664 = vmatpush1.xpose.msra.mxu0 0.0
  %1665 = vmatprep.subr.mxu0 0.0
  %1666 = vmatpush1.xpose.msra.mxu0 0.0
  %1667 = vmatprep.subr.mxu0 0.0
  %1668 = vmatpush1.xpose.msra.mxu0 0.0
  %1669 = vmatprep.subr.mxu0 0.0
  %1670 = vmatpush1.xpose.msra.mxu0 0.0
  %1671 = vmatprep.subr.mxu0 0.0
  %1672 = vmatpush1.xpose.msra.mxu0 0.0
  %1673 = vmatprep.subr.mxu0 0.0
  %1674 = vmatpush1.xpose.msra.mxu0 0.0
  %1675 = vmatprep.subr.mxu0 0.0
  %1676 = vmatpush1.xpose.msra.mxu0 0.0
  %1677 = vmatprep.subr.mxu0 0.0
  %1678 = vmatpush1.xpose.msra.mxu0 0.0
  %1679 = vmatprep.subr.mxu0 0.0
  %1680 = vmatpush1.xpose.msra.mxu0 0.0
  %1681 = vmatprep.subr.mxu0 0.0
  %1682 = vmatpush1.xpose.msra.mxu0 0.0
  %1683 = vmatprep.subr.mxu0 0.0
  %1684 = vmatpush1.xpose.msra.mxu0 0.0
  %1685 = vmatprep.subr.mxu0 0.0
  %1686 = vmatpush1.xpose.msra.mxu0 0.0
  %1687 = vmatprep.subr.mxu0 0.0
  %1688 = vmatpush1.xpose.msra.mxu0 0.0
  %1689 = vmatprep.subr.mxu0 0.0
  %1690 = vmatpush1.xpose.msra.mxu0 0.0
  %1691 = vmatprep.mubr.f32.mxu0 0.0
  %1692 = vmatmul.mubr.f32.gmra.mrb[0].mxu0 %v1623
  %v1693 = vpop.f32.mrb[0].mxu0
  %v1694 = vadd.f32 0.0, %v1693
  %v1695 = vpop.f32.mrb[0].mxu0
  %1696 = vdwg.mxu0
  %1697 = vrot.lane.b32.xlu0 %v123, 120
  %v1698 = vpop.permute.xlu0 %1697
  %1699 = vrot.lane.b32.xlu0 %v123, 88
  %v1700 = vpop.permute.xlu0 %1699
  %v1701 = vsel %vm145, %v1698, 0
  %v1703 = vsel %vm145, %v1700, 0
  %1705 = vmatprep.subr.mxu0 0.0
  %1706 = vmatpush1.xpose.msra.mxu0 %v1703
  %1707 = vmatprep.subr.mxu0 0.0
  %1708 = vmatpush1.xpose.msra.mxu0 0.0
  %1709 = vmatprep.subr.mxu0 0.0
  %1710 = vmatpush1.xpose.msra.mxu0 0.0
  %1711 = vmatprep.subr.mxu0 0.0
  %1712 = vmatpush1.xpose.msra.mxu0 0.0
  %1713 = vmatprep.subr.mxu0 0.0
  %1714 = vmatpush1.xpose.msra.mxu0 0.0
  %1715 = vmatprep.subr.mxu0 0.0
  %1716 = vmatpush1.xpose.msra.mxu0 0.0
  %1717 = vmatprep.subr.mxu0 0.0
  %1718 = vmatpush1.xpose.msra.mxu0 0.0
  %1719 = vmatprep.subr.mxu0 0.0
  %1720 = vmatpush1.xpose.msra.mxu0 0.0
  %1721 = vmatprep.subr.mxu0 0.0
  %1722 = vmatpush1.xpose.msra.mxu0 0.0
  %1723 = vmatprep.subr.mxu0 0.0
  %1724 = vmatpush1.xpose.msra.mxu0 0.0
  %1725 = vmatprep.subr.mxu0 0.0
  %1726 = vmatpush1.xpose.msra.mxu0 0.0
  %1727 = vmatprep.subr.mxu0 0.0
  %1728 = vmatpush1.xpose.msra.mxu0 0.0
  %1729 = vmatprep.subr.mxu0 0.0
  %1730 = vmatpush1.xpose.msra.mxu0 0.0
  %1731 = vmatprep.subr.mxu0 0.0
  %1732 = vmatpush1.xpose.msra.mxu0 0.0
  %1733 = vmatprep.subr.mxu0 0.0
  %1734 = vmatpush1.xpose.msra.mxu0 0.0
  %1735 = vmatprep.subr.mxu0 0.0
  %1736 = vmatpush1.xpose.msra.mxu0 0.0
  %1737 = vmatprep.subr.mxu0 0.0
  %1738 = vmatpush1.xpose.msra.mxu0 0.0
  %1739 = vmatprep.subr.mxu0 0.0
  %1740 = vmatpush1.xpose.msra.mxu0 0.0
  %1741 = vmatprep.subr.mxu0 0.0
  %1742 = vmatpush1.xpose.msra.mxu0 0.0
  %1743 = vmatprep.subr.mxu0 0.0
  %1744 = vmatpush1.xpose.msra.mxu0 0.0
  %1745 = vmatprep.subr.mxu0 0.0
  %1746 = vmatpush1.xpose.msra.mxu0 0.0
  %1747 = vmatprep.subr.mxu0 0.0
  %1748 = vmatpush1.xpose.msra.mxu0 0.0
  %1749 = vmatprep.subr.mxu0 0.0
  %1750 = vmatpush1.xpose.msra.mxu0 0.0
  %1751 = vmatprep.subr.mxu0 0.0
  %1752 = vmatpush1.xpose.msra.mxu0 0.0
  %1753 = vmatprep.subr.mxu0 0.0
  %1754 = vmatpush1.xpose.msra.mxu0 0.0
  %1755 = vmatprep.subr.mxu0 0.0
  %1756 = vmatpush1.xpose.msra.mxu0 0.0
  %1757 = vmatprep.subr.mxu0 0.0
  %1758 = vmatpush1.xpose.msra.mxu0 0.0
  %1759 = vmatprep.subr.mxu0 0.0
  %1760 = vmatpush1.xpose.msra.mxu0 0.0
  %1761 = vmatprep.subr.mxu0 0.0
  %1762 = vmatpush1.xpose.msra.mxu0 0.0
  %1763 = vmatprep.subr.mxu0 0.0
  %1764 = vmatpush1.xpose.msra.mxu0 0.0
  %1765 = vmatprep.subr.mxu0 0.0
  %1766 = vmatpush1.xpose.msra.mxu0 0.0
  %1767 = vmatprep.subr.mxu0 0.0
  %1768 = vmatpush1.xpose.msra.mxu0 0.0
  %1769 = vmatprep.mubr.f32.mxu0 0.0
  %1770 = vmatmul.mubr.f32.gmra.mrb[0].mxu0 %v1701
  %v1771 = vpop.f32.mrb[0].mxu0
  %v1772 = vadd.f32 0.0, %v1771
  %v1773 = vpop.f32.mrb[0].mxu0
  %1774 = vdwg.mxu0
  %1775 = vrot.lane.b32.xlu0 %v128, 120
  %v1776 = vpop.permute.xlu0 %1775
  %1777 = vrot.lane.b32.xlu0 %v128, 88
  %v1778 = vpop.permute.xlu0 %1777
  %v1779 = vsel %vm145, %v1776, 0
  %v1781 = vsel %vm145, %v1778, 0
  %1783 = vmatprep.subr.mxu0 0.0
  %1784 = vmatpush1.xpose.msra.mxu0 %v1781
  %1785 = vmatprep.subr.mxu0 0.0
  %1786 = vmatpush1.xpose.msra.mxu0 0.0
  %1787 = vmatprep.subr.mxu0 0.0
  %1788 = vmatpush1.xpose.msra.mxu0 0.0
  %1789 = vmatprep.subr.mxu0 0.0
  %1790 = vmatpush1.xpose.msra.mxu0 0.0
  %1791 = vmatprep.subr.mxu0 0.0
  %1792 = vmatpush1.xpose.msra.mxu0 0.0
  %1793 = vmatprep.subr.mxu0 0.0
  %1794 = vmatpush1.xpose.msra.mxu0 0.0
  %1795 = vmatprep.subr.mxu0 0.0
  %1796 = vmatpush1.xpose.msra.mxu0 0.0
  %1797 = vmatprep.subr.mxu0 0.0
  %1798 = vmatpush1.xpose.msra.mxu0 0.0
  %1799 = vmatprep.subr.mxu0 0.0
  %1800 = vmatpush1.xpose.msra.mxu0 0.0
  %1801 = vmatprep.subr.mxu0 0.0
  %1802 = vmatpush1.xpose.msra.mxu0 0.0
  %1803 = vmatprep.subr.mxu0 0.0
  %1804 = vmatpush1.xpose.msra.mxu0 0.0
  %1805 = vmatprep.subr.mxu0 0.0
  %1806 = vmatpush1.xpose.msra.mxu0 0.0
  %1807 = vmatprep.subr.mxu0 0.0
  %1808 = vmatpush1.xpose.msra.mxu0 0.0
  %1809 = vmatprep.subr.mxu0 0.0
  %1810 = vmatpush1.xpose.msra.mxu0 0.0
  %1811 = vmatprep.subr.mxu0 0.0
  %1812 = vmatpush1.xpose.msra.mxu0 0.0
  %1813 = vmatprep.subr.mxu0 0.0
  %1814 = vmatpush1.xpose.msra.mxu0 0.0
  %1815 = vmatprep.subr.mxu0 0.0
  %1816 = vmatpush1.xpose.msra.mxu0 0.0
  %1817 = vmatprep.subr.mxu0 0.0
  %1818 = vmatpush1.xpose.msra.mxu0 0.0
  %1819 = vmatprep.subr.mxu0 0.0
  %1820 = vmatpush1.xpose.msra.mxu0 0.0
  %1821 = vmatprep.subr.mxu0 0.0
  %1822 = vmatpush1.xpose.msra.mxu0 0.0
  %1823 = vmatprep.subr.mxu0 0.0
  %1824 = vmatpush1.xpose.msra.mxu0 0.0
  %1825 = vmatprep.subr.mxu0 0.0
  %1826 = vmatpush1.xpose.msra.mxu0 0.0
  %1827 = vmatprep.subr.mxu0 0.0
  %1828 = vmatpush1.xpose.msra.mxu0 0.0
  %1829 = vmatprep.subr.mxu0 0.0
  %1830 = vmatpush1.xpose.msra.mxu0 0.0
  %1831 = vmatprep.subr.mxu0 0.0
  %1832 = vmatpush1.xpose.msra.mxu0 0.0
  %1833 = vmatprep.subr.mxu0 0.0
  %1834 = vmatpush1.xpose.msra.mxu0 0.0
  %1835 = vmatprep.subr.mxu0 0.0
  %1836 = vmatpush1.xpose.msra.mxu0 0.0
  %1837 = vmatprep.subr.mxu0 0.0
  %1838 = vmatpush1.xpose.msra.mxu0 0.0
  %1839 = vmatprep.subr.mxu0 0.0
  %1840 = vmatpush1.xpose.msra.mxu0 0.0
  %1841 = vmatprep.subr.mxu0 0.0
  %1842 = vmatpush1.xpose.msra.mxu0 0.0
  %1843 = vmatprep.subr.mxu0 0.0
  %1844 = vmatpush1.xpose.msra.mxu0 0.0
  %1845 = vmatprep.subr.mxu0 0.0
  %1846 = vmatpush1.xpose.msra.mxu0 0.0
  %1847 = vmatprep.mubr.f32.mxu0 0.0
  %1848 = vmatmul.mubr.f32.gmra.mrb[0].mxu0 %v1779
  %v1849 = vpop.f32.mrb[0].mxu0
  %v1850 = vadd.f32 0.0, %v1849
  %v1851 = vpop.f32.mrb[0].mxu0
  %1852 = vdwg.mxu0
  %1853 = vrot.lane.b32.xlu0 %v131, 120
  %v1854 = vpop.permute.xlu0 %1853
  %1855 = vrot.lane.b32.xlu0 %v131, 88
  %v1856 = vpop.permute.xlu0 %1855
  %v1857 = vsel %vm145, %v1854, 0
  %v1859 = vsel %vm145, %v1856, 0
  %1861 = vmatprep.subr.mxu0 0.0
  %1862 = vmatpush1.xpose.msra.mxu0 %v1859
  %1863 = vmatprep.subr.mxu0 0.0
  %1864 = vmatpush1.xpose.msra.mxu0 0.0
  %1865 = vmatprep.subr.mxu0 0.0
  %1866 = vmatpush1.xpose.msra.mxu0 0.0
  %1867 = vmatprep.subr.mxu0 0.0
  %1868 = vmatpush1.xpose.msra.mxu0 0.0
  %1869 = vmatprep.subr.mxu0 0.0
  %1870 = vmatpush1.xpose.msra.mxu0 0.0
  %1871 = vmatprep.subr.mxu0 0.0
  %1872 = vmatpush1.xpose.msra.mxu0 0.0
  %1873 = vmatprep.subr.mxu0 0.0
  %1874 = vmatpush1.xpose.msra.mxu0 0.0
  %1875 = vmatprep.subr.mxu0 0.0
  %1876 = vmatpush1.xpose.msra.mxu0 0.0
  %1877 = vmatprep.subr.mxu0 0.0
  %1878 = vmatpush1.xpose.msra.mxu0 0.0
  %1879 = vmatprep.subr.mxu0 0.0
  %1880 = vmatpush1.xpose.msra.mxu0 0.0
  %1881 = vmatprep.subr.mxu0 0.0
  %1882 = vmatpush1.xpose.msra.mxu0 0.0
  %1883 = vmatprep.subr.mxu0 0.0
  %1884 = vmatpush1.xpose.msra.mxu0 0.0
  %1885 = vmatprep.subr.mxu0 0.0
  %1886 = vmatpush1.xpose.msra.mxu0 0.0
  %1887 = vmatprep.subr.mxu0 0.0
  %1888 = vmatpush1.xpose.msra.mxu0 0.0
  %1889 = vmatprep.subr.mxu0 0.0
  %1890 = vmatpush1.xpose.msra.mxu0 0.0
  %1891 = vmatprep.subr.mxu0 0.0
  %1892 = vmatpush1.xpose.msra.mxu0 0.0
  %1893 = vmatprep.subr.mxu0 0.0
  %1894 = vmatpush1.xpose.msra.mxu0 0.0
  %1895 = vmatprep.subr.mxu0 0.0
  %1896 = vmatpush1.xpose.msra.mxu0 0.0
  %1897 = vmatprep.subr.mxu0 0.0
  %1898 = vmatpush1.xpose.msra.mxu0 0.0
  %1899 = vmatprep.subr.mxu0 0.0
  %1900 = vmatpush1.xpose.msra.mxu0 0.0
  %1901 = vmatprep.subr.mxu0 0.0
  %1902 = vmatpush1.xpose.msra.mxu0 0.0
  %1903 = vmatprep.subr.mxu0 0.0
  %1904 = vmatpush1.xpose.msra.mxu0 0.0
  %1905 = vmatprep.subr.mxu0 0.0
  %1906 = vmatpush1.xpose.msra.mxu0 0.0
  %1907 = vmatprep.subr.mxu0 0.0
  %1908 = vmatpush1.xpose.msra.mxu0 0.0
  %1909 = vmatprep.subr.mxu0 0.0
  %1910 = vmatpush1.xpose.msra.mxu0 0.0
  %1911 = vmatprep.subr.mxu0 0.0
  %1912 = vmatpush1.xpose.msra.mxu0 0.0
  %1913 = vmatprep.subr.mxu0 0.0
  %1914 = vmatpush1.xpose.msra.mxu0 0.0
  %1915 = vmatprep.subr.mxu0 0.0
  %1916 = vmatpush1.xpose.msra.mxu0 0.0
  %1917 = vmatprep.subr.mxu0 0.0
  %1918 = vmatpush1.xpose.msra.mxu0 0.0
  %1919 = vmatprep.subr.mxu0 0.0
  %1920 = vmatpush1.xpose.msra.mxu0 0.0
  %1921 = vmatprep.subr.mxu0 0.0
  %1922 = vmatpush1.xpose.msra.mxu0 0.0
  %1923 = vmatprep.subr.mxu0 0.0
  %1924 = vmatpush1.xpose.msra.mxu0 0.0
  %1925 = vmatprep.mubr.f32.mxu0 0.0
  %1926 = vmatmul.mubr.f32.gmra.mrb[0].mxu0 %v1857
  %v1927 = vpop.f32.mrb[0].mxu0
  %v1928 = vadd.f32 0.0, %v1927
  %v1929 = vpop.f32.mrb[0].mxu0
  %1930 = vdwg.mxu0
  %1931 = vrot.lane.b32.xlu0 %v136, 120
  %v1932 = vpop.permute.xlu0 %1931
  %1933 = vrot.lane.b32.xlu0 %v136, 88
  %v1934 = vpop.permute.xlu0 %1933
  %v1935 = vsel %vm145, %v1932, 0
  %v1937 = vsel %vm145, %v1934, 0
  %1939 = vmatprep.subr.mxu0 0.0
  %1940 = vmatpush1.xpose.msra.mxu0 %v1937
  %1941 = vmatprep.subr.mxu0 0.0
  %1942 = vmatpush1.xpose.msra.mxu0 0.0
  %1943 = vmatprep.subr.mxu0 0.0
  %1944 = vmatpush1.xpose.msra.mxu0 0.0
  %1945 = vmatprep.subr.mxu0 0.0
  %1946 = vmatpush1.xpose.msra.mxu0 0.0
  %1947 = vmatprep.subr.mxu0 0.0
  %1948 = vmatpush1.xpose.msra.mxu0 0.0
  %1949 = vmatprep.subr.mxu0 0.0
  %1950 = vmatpush1.xpose.msra.mxu0 0.0
  %1951 = vmatprep.subr.mxu0 0.0
  %1952 = vmatpush1.xpose.msra.mxu0 0.0
  %1953 = vmatprep.subr.mxu0 0.0
  %1954 = vmatpush1.xpose.msra.mxu0 0.0
  %1955 = vmatprep.subr.mxu0 0.0
  %1956 = vmatpush1.xpose.msra.mxu0 0.0
  %1957 = vmatprep.subr.mxu0 0.0
  %1958 = vmatpush1.xpose.msra.mxu0 0.0
  %1959 = vmatprep.subr.mxu0 0.0
  %1960 = vmatpush1.xpose.msra.mxu0 0.0
  %1961 = vmatprep.subr.mxu0 0.0
  %1962 = vmatpush1.xpose.msra.mxu0 0.0
  %1963 = vmatprep.subr.mxu0 0.0
  %1964 = vmatpush1.xpose.msra.mxu0 0.0
  %1965 = vmatprep.subr.mxu0 0.0
  %1966 = vmatpush1.xpose.msra.mxu0 0.0
  %1967 = vmatprep.subr.mxu0 0.0
  %1968 = vmatpush1.xpose.msra.mxu0 0.0
  %1969 = vmatprep.subr.mxu0 0.0
  %1970 = vmatpush1.xpose.msra.mxu0 0.0
  %1971 = vmatprep.subr.mxu0 0.0
  %1972 = vmatpush1.xpose.msra.mxu0 0.0
  %1973 = vmatprep.subr.mxu0 0.0
  %1974 = vmatpush1.xpose.msra.mxu0 0.0
  %1975 = vmatprep.subr.mxu0 0.0
  %1976 = vmatpush1.xpose.msra.mxu0 0.0
  %1977 = vmatprep.subr.mxu0 0.0
  %1978 = vmatpush1.xpose.msra.mxu0 0.0
  %1979 = vmatprep.subr.mxu0 0.0
  %1980 = vmatpush1.xpose.msra.mxu0 0.0
  %1981 = vmatprep.subr.mxu0 0.0
  %1982 = vmatpush1.xpose.msra.mxu0 0.0
  %1983 = vmatprep.subr.mxu0 0.0
  %1984 = vmatpush1.xpose.msra.mxu0 0.0
  %1985 = vmatprep.subr.mxu0 0.0
  %1986 = vmatpush1.xpose.msra.mxu0 0.0
  %1987 = vmatprep.subr.mxu0 0.0
  %1988 = vmatpush1.xpose.msra.mxu0 0.0
  %1989 = vmatprep.subr.mxu0 0.0
  %1990 = vmatpush1.xpose.msra.mxu0 0.0
  %1991 = vmatprep.subr.mxu0 0.0
  %1992 = vmatpush1.xpose.msra.mxu0 0.0
  %1993 = vmatprep.subr.mxu0 0.0
  %1994 = vmatpush1.xpose.msra.mxu0 0.0
  %1995 = vmatprep.subr.mxu0 0.0
  %1996 = vmatpush1.xpose.msra.mxu0 0.0
  %1997 = vmatprep.subr.mxu0 0.0
  %1998 = vmatpush1.xpose.msra.mxu0 0.0
  %1999 = vmatprep.subr.mxu0 0.0
  %2000 = vmatpush1.xpose.msra.mxu0 0.0
  %2001 = vmatprep.subr.mxu0 0.0
  %2002 = vmatpush1.xpose.msra.mxu0 0.0
  %2003 = vmatprep.mubr.f32.mxu0 0.0
  %2004 = vmatmul.mubr.f32.gmra.mrb[0].mxu0 %v1935
  %v2005 = vpop.f32.mrb[0].mxu0
  %v2006 = vadd.f32 0.0, %v2005
  %v2007 = vpop.f32.mrb[0].mxu0
  %2008 = vdwg.mxu0
  %2009 = vrot.lane.b32.xlu0 %v139, 120
  %v2010 = vpop.permute.xlu0 %2009
  %2011 = vrot.lane.b32.xlu0 %v139, 88
  %v2012 = vpop.permute.xlu0 %2011
  %v2013 = vsel %vm145, %v2010, 0
  %v2015 = vsel %vm145, %v2012, 0
  %2017 = vmatprep.subr.mxu0 0.0
  %2018 = vmatpush1.xpose.msra.mxu0 %v2015
  %2019 = vmatprep.subr.mxu0 0.0
  %2020 = vmatpush1.xpose.msra.mxu0 0.0
  %2021 = vmatprep.subr.mxu0 0.0
  %2022 = vmatpush1.xpose.msra.mxu0 0.0
  %2023 = vmatprep.subr.mxu0 0.0
  %2024 = vmatpush1.xpose.msra.mxu0 0.0
  %2025 = vmatprep.subr.mxu0 0.0
  %2026 = vmatpush1.xpose.msra.mxu0 0.0
  %2027 = vmatprep.subr.mxu0 0.0
  %2028 = vmatpush1.xpose.msra.mxu0 0.0
  %2029 = vmatprep.subr.mxu0 0.0
  %2030 = vmatpush1.xpose.msra.mxu0 0.0
  %2031 = vmatprep.subr.mxu0 0.0
  %2032 = vmatpush1.xpose.msra.mxu0 0.0
  %2033 = vmatprep.subr.mxu0 0.0
  %2034 = vmatpush1.xpose.msra.mxu0 0.0
  %2035 = vmatprep.subr.mxu0 0.0
  %2036 = vmatpush1.xpose.msra.mxu0 0.0
  %2037 = vmatprep.subr.mxu0 0.0
  %2038 = vmatpush1.xpose.msra.mxu0 0.0
  %2039 = vmatprep.subr.mxu0 0.0
  %2040 = vmatpush1.xpose.msra.mxu0 0.0
  %2041 = vmatprep.subr.mxu0 0.0
  %2042 = vmatpush1.xpose.msra.mxu0 0.0
  %2043 = vmatprep.subr.mxu0 0.0
  %2044 = vmatpush1.xpose.msra.mxu0 0.0
  %2045 = vmatprep.subr.mxu0 0.0
  %2046 = vmatpush1.xpose.msra.mxu0 0.0
  %2047 = vmatprep.subr.mxu0 0.0
  %2048 = vmatpush1.xpose.msra.mxu0 0.0
  %2049 = vmatprep.subr.mxu0 0.0
  %2050 = vmatpush1.xpose.msra.mxu0 0.0
  %2051 = vmatprep.subr.mxu0 0.0
  %2052 = vmatpush1.xpose.msra.mxu0 0.0
  %2053 = vmatprep.subr.mxu0 0.0
  %2054 = vmatpush1.xpose.msra.mxu0 0.0
  %2055 = vmatprep.subr.mxu0 0.0
  %2056 = vmatpush1.xpose.msra.mxu0 0.0
  %2057 = vmatprep.subr.mxu0 0.0
  %2058 = vmatpush1.xpose.msra.mxu0 0.0
  %2059 = vmatprep.subr.mxu0 0.0
  %2060 = vmatpush1.xpose.msra.mxu0 0.0
  %2061 = vmatprep.subr.mxu0 0.0
  %2062 = vmatpush1.xpose.msra.mxu0 0.0
  %2063 = vmatprep.subr.mxu0 0.0
  %2064 = vmatpush1.xpose.msra.mxu0 0.0
  %2065 = vmatprep.subr.mxu0 0.0
  %2066 = vmatpush1.xpose.msra.mxu0 0.0
  %2067 = vmatprep.subr.mxu0 0.0
  %2068 = vmatpush1.xpose.msra.mxu0 0.0
  %2069 = vmatprep.subr.mxu0 0.0
  %2070 = vmatpush1.xpose.msra.mxu0 0.0
  %2071 = vmatprep.subr.mxu0 0.0
  %2072 = vmatpush1.xpose.msra.mxu0 0.0
  %2073 = vmatprep.subr.mxu0 0.0
  %2074 = vmatpush1.xpose.msra.mxu0 0.0
  %2075 = vmatprep.subr.mxu0 0.0
  %2076 = vmatpush1.xpose.msra.mxu0 0.0
  %2077 = vmatprep.subr.mxu0 0.0
  %2078 = vmatpush1.xpose.msra.mxu0 0.0
  %2079 = vmatprep.subr.mxu0 0.0
  %2080 = vmatpush1.xpose.msra.mxu0 0.0
  %2081 = vmatprep.mubr.f32.mxu0 0.0
  %2082 = vmatmul.mubr.f32.gmra.mrb[0].mxu0 %v2013
  %v2083 = vpop.f32.mrb[0].mxu0
  %v2084 = vadd.f32 0.0, %v2083
  %v2085 = vpop.f32.mrb[0].mxu0
  %2086 = vdwg.mxu0
  %v2087 = vsel %vm145, %v1538, -inf
  %2088 = vmax.xlane.f32.xlu0 %v2087
  %v2089 = vpop.xlane.xlu0 %2088
  %v2090 = vsel %vm145, %v1616, -inf
  %2091 = vmax.xlane.f32.xlu0 %v2090
  %v2092 = vpop.xlane.xlu0 %2091
  %v2093 = vsel %vm145, %v1694, -inf
  %2094 = vmax.xlane.f32.xlu0 %v2093
  %v2095 = vpop.xlane.xlu0 %2094
  %v2096 = vsel %vm145, %v1772, -inf
  %2097 = vmax.xlane.f32.xlu0 %v2096
  %v2098 = vpop.xlane.xlu0 %2097
  %v2099 = vsel %vm145, %v1850, -inf
  %2100 = vmax.xlane.f32.xlu0 %v2099
  %v2101 = vpop.xlane.xlu0 %2100
  %v2102 = vsel %vm145, %v1928, -inf
  %2103 = vmax.xlane.f32.xlu0 %v2102
  %v2104 = vpop.xlane.xlu0 %2103
  %v2105 = vsel %vm145, %v2006, -inf
  %2106 = vmax.xlane.f32.xlu0 %v2105
  %v2107 = vpop.xlane.xlu0 %2106
  %v2108 = vsel %vm145, %v2084, -inf
  %2109 = vmax.xlane.f32.xlu0 %v2108
  %v2110 = vpop.xlane.xlu0 %2109
  %v2111 = vsub.f32 %v1538, %v2089
  %v2112 = vsub.f32 %v1616, %v2092
  %v2113 = vsub.f32 %v1694, %v2095
  %v2114 = vsub.f32 %v1772, %v2098
  %v2115 = vsub.f32 %v1850, %v2101
  %v2116 = vsub.f32 %v1928, %v2104
  %v2117 = vsub.f32 %v2006, %v2107
  %v2118 = vsub.f32 %v2084, %v2110
  %v2119 = vmul.f32 %v2111, 1.442695
  %v2120 = vpow.pop %v2119
  %v2121 = vmul.f32 %v2112, 1.442695
  %v2122 = vpow.pop %v2121
  %v2123 = vmul.f32 %v2113, 1.442695
  %v2124 = vpow.pop %v2123
  %v2125 = vmul.f32 %v2114, 1.442695
  %v2126 = vpow.pop %v2125
  %v2127 = vmul.f32 %v2115, 1.442695
  %v2128 = vpow.pop %v2127
  %v2129 = vmul.f32 %v2116, 1.442695
  %v2130 = vpow.pop %v2129
  %v2131 = vmul.f32 %v2117, 1.442695
  %v2132 = vpow.pop %v2131
  %v2133 = vmul.f32 %v2118, 1.442695
  %v2134 = vpow.pop %v2133
  %v2135 = vsel %vm145, %v2120, 0.0
  %2136 = vadd.xlane.f32.xlu0 %v2135
  %v2137 = vpop.xlane.xlu0 %2136
  %v2138 = vsel %vm145, %v2122, 0.0
  %2139 = vadd.xlane.f32.xlu0 %v2138
  %v2140 = vpop.xlane.xlu0 %2139
  %v2141 = vsel %vm145, %v2124, 0.0
  %2142 = vadd.xlane.f32.xlu0 %v2141
  %v2143 = vpop.xlane.xlu0 %2142
  %v2144 = vsel %vm145, %v2126, 0.0
  %2145 = vadd.xlane.f32.xlu0 %v2144
  %v2146 = vpop.xlane.xlu0 %2145
  %v2147 = vsel %vm145, %v2128, 0.0
  %2148 = vadd.xlane.f32.xlu0 %v2147
  %v2149 = vpop.xlane.xlu0 %2148
  %v2150 = vsel %vm145, %v2130, 0.0
  %2151 = vadd.xlane.f32.xlu0 %v2150
  %v2152 = vpop.xlane.xlu0 %2151
  %v2153 = vsel %vm145, %v2132, 0.0
  %2154 = vadd.xlane.f32.xlu0 %v2153
  %v2155 = vpop.xlane.xlu0 %2154
  %v2156 = vsel %vm145, %v2134, 0.0
  %2157 = vadd.xlane.f32.xlu0 %v2156
  %v2158 = vpop.xlane.xlu0 %2157
  %v2159 = vrcp.pop %v2137
  %v2160 = vrcp.pop %v2140
  %v2161 = vrcp.pop %v2143
  %v2162 = vrcp.pop %v2146
  %v2163 = vrcp.pop %v2149
  %v2164 = vrcp.pop %v2152
  %v2165 = vrcp.pop %v2155
  %v2166 = vrcp.pop %v2158
  %v2167 = vmul.f32 %v2120, %v2159
  %v2168 = vmul.f32 %v2122, %v2160
  %v2169 = vmul.f32 %v2124, %v2161
  %v2170 = vmul.f32 %v2126, %v2162
  %v2171 = vmul.f32 %v2128, %v2163
  %v2172 = vmul.f32 %v2130, %v2164
  %v2173 = vmul.f32 %v2132, %v2165
  %v2174 = vmul.f32 %v2134, %v2166
  %2175 = vrot.lane.b32.xlu0 %v112, 56
  %v2176 = vpop.permute.xlu0 %2175
  %v2179 = vsel %vm145, %v2167, 0
  %2181 = vmatprep.subr.mxu0 0.0
  %2182 = vmatpush1.msra.mxu0 %v2176
  %2183 = vmatprep.subr.mxu0 0.0
  %2184 = vmatpush1.msra.mxu0 0.0
  %2185 = vmatprep.subr.mxu0 0.0
  %2186 = vmatpush1.msra.mxu0 0.0
  %2187 = vmatprep.subr.mxu0 0.0
  %2188 = vmatpush1.msra.mxu0 0.0
  %2189 = vmatprep.subr.mxu0 0.0
  %2190 = vmatpush1.msra.mxu0 0.0
  %2191 = vmatprep.subr.mxu0 0.0
  %2192 = vmatpush1.msra.mxu0 0.0
  %2193 = vmatprep.subr.mxu0 0.0
  %2194 = vmatpush1.msra.mxu0 0.0
  %2195 = vmatprep.subr.mxu0 0.0
  %2196 = vmatpush1.msra.mxu0 0.0
  %2197 = vmatprep.subr.mxu0 0.0
  %2198 = vmatpush1.msra.mxu0 0.0
  %2199 = vmatprep.subr.mxu0 0.0
  %2200 = vmatpush1.msra.mxu0 0.0
  %2201 = vmatprep.subr.mxu0 0.0
  %2202 = vmatpush1.msra.mxu0 0.0
  %2203 = vmatprep.subr.mxu0 0.0
  %2204 = vmatpush1.msra.mxu0 0.0
  %2205 = vmatprep.subr.mxu0 0.0
  %2206 = vmatpush1.msra.mxu0 0.0
  %2207 = vmatprep.subr.mxu0 0.0
  %2208 = vmatpush1.msra.mxu0 0.0
  %2209 = vmatprep.subr.mxu0 0.0
  %2210 = vmatpush1.msra.mxu0 0.0
  %2211 = vmatprep.subr.mxu0 0.0
  %2212 = vmatpush1.msra.mxu0 0.0
  %2213 = vmatprep.subr.mxu0 0.0
  %2214 = vmatpush1.msra.mxu0 0.0
  %2215 = vmatprep.subr.mxu0 0.0
  %2216 = vmatpush1.msra.mxu0 0.0
  %2217 = vmatprep.subr.mxu0 0.0
  %2218 = vmatpush1.msra.mxu0 0.0
  %2219 = vmatprep.subr.mxu0 0.0
  %2220 = vmatpush1.msra.mxu0 0.0
  %2221 = vmatprep.subr.mxu0 0.0
  %2222 = vmatpush1.msra.mxu0 0.0
  %2223 = vmatprep.subr.mxu0 0.0
  %2224 = vmatpush1.msra.mxu0 0.0
  %2225 = vmatprep.subr.mxu0 0.0
  %2226 = vmatpush1.msra.mxu0 0.0
  %2227 = vmatprep.subr.mxu0 0.0
  %2228 = vmatpush1.msra.mxu0 0.0
  %2229 = vmatprep.subr.mxu0 0.0
  %2230 = vmatpush1.msra.mxu0 0.0
  %2231 = vmatprep.subr.mxu0 0.0
  %2232 = vmatpush1.msra.mxu0 0.0
  %2233 = vmatprep.subr.mxu0 0.0
  %2234 = vmatpush1.msra.mxu0 0.0
  %2235 = vmatprep.subr.mxu0 0.0
  %2236 = vmatpush1.msra.mxu0 0.0
  %2237 = vmatprep.subr.mxu0 0.0
  %2238 = vmatpush1.msra.mxu0 0.0
  %2239 = vmatprep.subr.mxu0 0.0
  %2240 = vmatpush1.msra.mxu0 0.0
  %2241 = vmatprep.subr.mxu0 0.0
  %2242 = vmatpush1.msra.mxu0 0.0
  %2243 = vmatprep.subr.mxu0 0.0
  %2244 = vmatpush1.msra.mxu0 0.0
  %2245 = vmatprep.mubr.f32.mxu0 0.0
  %2246 = vmatmul.mubr.f32.gmra.mrb[0].mxu0 %v2179
  %v2247 = vpop.f32.mrb[0].mxu0
  %v2248 = vadd.f32 0.0, %v2247
  %v2249 = vpop.f32.mrb[0].mxu0
  %2250 = vdwg.mxu0
  %2251 = vrot.lane.b32.xlu0 %v115, 56
  %v2252 = vpop.permute.xlu0 %2251
  %v2255 = vsel %vm145, %v2168, 0
  %2257 = vmatprep.subr.mxu0 0.0
  %2258 = vmatpush1.msra.mxu0 %v2252
  %2259 = vmatprep.subr.mxu0 0.0
  %2260 = vmatpush1.msra.mxu0 0.0
  %2261 = vmatprep.subr.mxu0 0.0
  %2262 = vmatpush1.msra.mxu0 0.0
  %2263 = vmatprep.subr.mxu0 0.0
  %2264 = vmatpush1.msra.mxu0 0.0
  %2265 = vmatprep.subr.mxu0 0.0
  %2266 = vmatpush1.msra.mxu0 0.0
  %2267 = vmatprep.subr.mxu0 0.0
  %2268 = vmatpush1.msra.mxu0 0.0
  %2269 = vmatprep.subr.mxu0 0.0
  %2270 = vmatpush1.msra.mxu0 0.0
  %2271 = vmatprep.subr.mxu0 0.0
  %2272 = vmatpush1.msra.mxu0 0.0
  %2273 = vmatprep.subr.mxu0 0.0
  %2274 = vmatpush1.msra.mxu0 0.0
  %2275 = vmatprep.subr.mxu0 0.0
  %2276 = vmatpush1.msra.mxu0 0.0
  %2277 = vmatprep.subr.mxu0 0.0
  %2278 = vmatpush1.msra.mxu0 0.0
  %2279 = vmatprep.subr.mxu0 0.0
  %2280 = vmatpush1.msra.mxu0 0.0
  %2281 = vmatprep.subr.mxu0 0.0
  %2282 = vmatpush1.msra.mxu0 0.0
  %2283 = vmatprep.subr.mxu0 0.0
  %2284 = vmatpush1.msra.mxu0 0.0
  %2285 = vmatprep.subr.mxu0 0.0
  %2286 = vmatpush1.msra.mxu0 0.0
  %2287 = vmatprep.subr.mxu0 0.0
  %2288 = vmatpush1.msra.mxu0 0.0
  %2289 = vmatprep.subr.mxu0 0.0
  %2290 = vmatpush1.msra.mxu0 0.0
  %2291 = vmatprep.subr.mxu0 0.0
  %2292 = vmatpush1.msra.mxu0 0.0
  %2293 = vmatprep.subr.mxu0 0.0
  %2294 = vmatpush1.msra.mxu0 0.0
  %2295 = vmatprep.subr.mxu0 0.0
  %2296 = vmatpush1.msra.mxu0 0.0
  %2297 = vmatprep.subr.mxu0 0.0
  %2298 = vmatpush1.msra.mxu0 0.0
  %2299 = vmatprep.subr.mxu0 0.0
  %2300 = vmatpush1.msra.mxu0 0.0
  %2301 = vmatprep.subr.mxu0 0.0
  %2302 = vmatpush1.msra.mxu0 0.0
  %2303 = vmatprep.subr.mxu0 0.0
  %2304 = vmatpush1.msra.mxu0 0.0
  %2305 = vmatprep.subr.mxu0 0.0
  %2306 = vmatpush1.msra.mxu0 0.0
  %2307 = vmatprep.subr.mxu0 0.0
  %2308 = vmatpush1.msra.mxu0 0.0
  %2309 = vmatprep.subr.mxu0 0.0
  %2310 = vmatpush1.msra.mxu0 0.0
  %2311 = vmatprep.subr.mxu0 0.0
  %2312 = vmatpush1.msra.mxu0 0.0
  %2313 = vmatprep.subr.mxu0 0.0
  %2314 = vmatpush1.msra.mxu0 0.0
  %2315 = vmatprep.subr.mxu0 0.0
  %2316 = vmatpush1.msra.mxu0 0.0
  %2317 = vmatprep.subr.mxu0 0.0
  %2318 = vmatpush1.msra.mxu0 0.0
  %2319 = vmatprep.subr.mxu0 0.0
  %2320 = vmatpush1.msra.mxu0 0.0
  %2321 = vmatprep.mubr.f32.mxu0 0.0
  %2322 = vmatmul.mubr.f32.gmra.mrb[0].mxu0 %v2255
  %v2323 = vpop.f32.mrb[0].mxu0
  %v2324 = vadd.f32 0.0, %v2323
  %v2325 = vpop.f32.mrb[0].mxu0
  %2326 = vdwg.mxu0
  %2327 = vrot.lane.b32.xlu0 %v120, 56
  %v2328 = vpop.permute.xlu0 %2327
  %v2331 = vsel %vm145, %v2169, 0
  %2333 = vmatprep.subr.mxu0 0.0
  %2334 = vmatpush1.msra.mxu0 %v2328
  %2335 = vmatprep.subr.mxu0 0.0
  %2336 = vmatpush1.msra.mxu0 0.0
  %2337 = vmatprep.subr.mxu0 0.0
  %2338 = vmatpush1.msra.mxu0 0.0
  %2339 = vmatprep.subr.mxu0 0.0
  %2340 = vmatpush1.msra.mxu0 0.0
  %2341 = vmatprep.subr.mxu0 0.0
  %2342 = vmatpush1.msra.mxu0 0.0
  %2343 = vmatprep.subr.mxu0 0.0
  %2344 = vmatpush1.msra.mxu0 0.0
  %2345 = vmatprep.subr.mxu0 0.0
  %2346 = vmatpush1.msra.mxu0 0.0
  %2347 = vmatprep.subr.mxu0 0.0
  %2348 = vmatpush1.msra.mxu0 0.0
  %2349 = vmatprep.subr.mxu0 0.0
  %2350 = vmatpush1.msra.mxu0 0.0
  %2351 = vmatprep.subr.mxu0 0.0
  %2352 = vmatpush1.msra.mxu0 0.0
  %2353 = vmatprep.subr.mxu0 0.0
  %2354 = vmatpush1.msra.mxu0 0.0
  %2355 = vmatprep.subr.mxu0 0.0
  %2356 = vmatpush1.msra.mxu0 0.0
  %2357 = vmatprep.subr.mxu0 0.0
  %2358 = vmatpush1.msra.mxu0 0.0
  %2359 = vmatprep.subr.mxu0 0.0
  %2360 = vmatpush1.msra.mxu0 0.0
  %2361 = vmatprep.subr.mxu0 0.0
  %2362 = vmatpush1.msra.mxu0 0.0
  %2363 = vmatprep.subr.mxu0 0.0
  %2364 = vmatpush1.msra.mxu0 0.0
  %2365 = vmatprep.subr.mxu0 0.0
  %2366 = vmatpush1.msra.mxu0 0.0
  %2367 = vmatprep.subr.mxu0 0.0
  %2368 = vmatpush1.msra.mxu0 0.0
  %2369 = vmatprep.subr.mxu0 0.0
  %2370 = vmatpush1.msra.mxu0 0.0
  %2371 = vmatprep.subr.mxu0 0.0
  %2372 = vmatpush1.msra.mxu0 0.0
  %2373 = vmatprep.subr.mxu0 0.0
  %2374 = vmatpush1.msra.mxu0 0.0
  %2375 = vmatprep.subr.mxu0 0.0
  %2376 = vmatpush1.msra.mxu0 0.0
  %2377 = vmatprep.subr.mxu0 0.0
  %2378 = vmatpush1.msra.mxu0 0.0
  %2379 = vmatprep.subr.mxu0 0.0
  %2380 = vmatpush1.msra.mxu0 0.0
  %2381 = vmatprep.subr.mxu0 0.0
  %2382 = vmatpush1.msra.mxu0 0.0
  %2383 = vmatprep.subr.mxu0 0.0
  %2384 = vmatpush1.msra.mxu0 0.0
  %2385 = vmatprep.subr.mxu0 0.0
  %2386 = vmatpush1.msra.mxu0 0.0
  %2387 = vmatprep.subr.mxu0 0.0
  %2388 = vmatpush1.msra.mxu0 0.0
  %2389 = vmatprep.subr.mxu0 0.0
  %2390 = vmatpush1.msra.mxu0 0.0
  %2391 = vmatprep.subr.mxu0 0.0
  %2392 = vmatpush1.msra.mxu0 0.0
  %2393 = vmatprep.subr.mxu0 0.0
  %2394 = vmatpush1.msra.mxu0 0.0
  %2395 = vmatprep.subr.mxu0 0.0
  %2396 = vmatpush1.msra.mxu0 0.0
  %2397 = vmatprep.mubr.f32.mxu0 0.0
  %2398 = vmatmul.mubr.f32.gmra.mrb[0].mxu0 %v2331
  %v2399 = vpop.f32.mrb[0].mxu0
  %v2400 = vadd.f32 0.0, %v2399
  %v2401 = vpop.f32.mrb[0].mxu0
  %2402 = vdwg.mxu0
  %2403 = vrot.lane.b32.xlu0 %v123, 56
  %v2404 = vpop.permute.xlu0 %2403
  %v2407 = vsel %vm145, %v2170, 0
  %2409 = vmatprep.subr.mxu0 0.0
  %2410 = vmatpush1.msra.mxu0 %v2404
  %2411 = vmatprep.subr.mxu0 0.0
  %2412 = vmatpush1.msra.mxu0 0.0
  %2413 = vmatprep.subr.mxu0 0.0
  %2414 = vmatpush1.msra.mxu0 0.0
  %2415 = vmatprep.subr.mxu0 0.0
  %2416 = vmatpush1.msra.mxu0 0.0
  %2417 = vmatprep.subr.mxu0 0.0
  %2418 = vmatpush1.msra.mxu0 0.0
  %2419 = vmatprep.subr.mxu0 0.0
  %2420 = vmatpush1.msra.mxu0 0.0
  %2421 = vmatprep.subr.mxu0 0.0
  %2422 = vmatpush1.msra.mxu0 0.0
  %2423 = vmatprep.subr.mxu0 0.0
  %2424 = vmatpush1.msra.mxu0 0.0
  %2425 = vmatprep.subr.mxu0 0.0
  %2426 = vmatpush1.msra.mxu0 0.0
  %2427 = vmatprep.subr.mxu0 0.0
  %2428 = vmatpush1.msra.mxu0 0.0
  %2429 = vmatprep.subr.mxu0 0.0
  %2430 = vmatpush1.msra.mxu0 0.0
  %2431 = vmatprep.subr.mxu0 0.0
  %2432 = vmatpush1.msra.mxu0 0.0
  %2433 = vmatprep.subr.mxu0 0.0
  %2434 = vmatpush1.msra.mxu0 0.0
  %2435 = vmatprep.subr.mxu0 0.0
  %2436 = vmatpush1.msra.mxu0 0.0
  %2437 = vmatprep.subr.mxu0 0.0
  %2438 = vmatpush1.msra.mxu0 0.0
  %2439 = vmatprep.subr.mxu0 0.0
  %2440 = vmatpush1.msra.mxu0 0.0
  %2441 = vmatprep.subr.mxu0 0.0
  %2442 = vmatpush1.msra.mxu0 0.0
  %2443 = vmatprep.subr.mxu0 0.0
  %2444 = vmatpush1.msra.mxu0 0.0
  %2445 = vmatprep.subr.mxu0 0.0
  %2446 = vmatpush1.msra.mxu0 0.0
  %2447 = vmatprep.subr.mxu0 0.0
  %2448 = vmatpush1.msra.mxu0 0.0
  %2449 = vmatprep.subr.mxu0 0.0
  %2450 = vmatpush1.msra.mxu0 0.0
  %2451 = vmatprep.subr.mxu0 0.0
  %2452 = vmatpush1.msra.mxu0 0.0
  %2453 = vmatprep.subr.mxu0 0.0
  %2454 = vmatpush1.msra.mxu0 0.0
  %2455 = vmatprep.subr.mxu0 0.0
  %2456 = vmatpush1.msra.mxu0 0.0
  %2457 = vmatprep.subr.mxu0 0.0
  %2458 = vmatpush1.msra.mxu0 0.0
  %2459 = vmatprep.subr.mxu0 0.0
  %2460 = vmatpush1.msra.mxu0 0.0
  %2461 = vmatprep.subr.mxu0 0.0
  %2462 = vmatpush1.msra.mxu0 0.0
  %2463 = vmatprep.subr.mxu0 0.0
  %2464 = vmatpush1.msra.mxu0 0.0
  %2465 = vmatprep.subr.mxu0 0.0
  %2466 = vmatpush1.msra.mxu0 0.0
  %2467 = vmatprep.subr.mxu0 0.0
  %2468 = vmatpush1.msra.mxu0 0.0
  %2469 = vmatprep.subr.mxu0 0.0
  %2470 = vmatpush1.msra.mxu0 0.0
  %2471 = vmatprep.subr.mxu0 0.0
  %2472 = vmatpush1.msra.mxu0 0.0
  %2473 = vmatprep.mubr.f32.mxu0 0.0
  %2474 = vmatmul.mubr.f32.gmra.mrb[0].mxu0 %v2407
  %v2475 = vpop.f32.mrb[0].mxu0
  %v2476 = vadd.f32 0.0, %v2475
  %v2477 = vpop.f32.mrb[0].mxu0
  %2478 = vdwg.mxu0
  %2479 = vrot.lane.b32.xlu0 %v128, 56
  %v2480 = vpop.permute.xlu0 %2479
  %v2483 = vsel %vm145, %v2171, 0
  %2485 = vmatprep.subr.mxu0 0.0
  %2486 = vmatpush1.msra.mxu0 %v2480
  %2487 = vmatprep.subr.mxu0 0.0
  %2488 = vmatpush1.msra.mxu0 0.0
  %2489 = vmatprep.subr.mxu0 0.0
  %2490 = vmatpush1.msra.mxu0 0.0
  %2491 = vmatprep.subr.mxu0 0.0
  %2492 = vmatpush1.msra.mxu0 0.0
  %2493 = vmatprep.subr.mxu0 0.0
  %2494 = vmatpush1.msra.mxu0 0.0
  %2495 = vmatprep.subr.mxu0 0.0
  %2496 = vmatpush1.msra.mxu0 0.0
  %2497 = vmatprep.subr.mxu0 0.0
  %2498 = vmatpush1.msra.mxu0 0.0
  %2499 = vmatprep.subr.mxu0 0.0
  %2500 = vmatpush1.msra.mxu0 0.0
  %2501 = vmatprep.subr.mxu0 0.0
  %2502 = vmatpush1.msra.mxu0 0.0
  %2503 = vmatprep.subr.mxu0 0.0
  %2504 = vmatpush1.msra.mxu0 0.0
  %2505 = vmatprep.subr.mxu0 0.0
  %2506 = vmatpush1.msra.mxu0 0.0
  %2507 = vmatprep.subr.mxu0 0.0
  %2508 = vmatpush1.msra.mxu0 0.0
  %2509 = vmatprep.subr.mxu0 0.0
  %2510 = vmatpush1.msra.mxu0 0.0
  %2511 = vmatprep.subr.mxu0 0.0
  %2512 = vmatpush1.msra.mxu0 0.0
  %2513 = vmatprep.subr.mxu0 0.0
  %2514 = vmatpush1.msra.mxu0 0.0
  %2515 = vmatprep.subr.mxu0 0.0
  %2516 = vmatpush1.msra.mxu0 0.0
  %2517 = vmatprep.subr.mxu0 0.0
  %2518 = vmatpush1.msra.mxu0 0.0
  %2519 = vmatprep.subr.mxu0 0.0
  %2520 = vmatpush1.msra.mxu0 0.0
  %2521 = vmatprep.subr.mxu0 0.0
  %2522 = vmatpush1.msra.mxu0 0.0
  %2523 = vmatprep.subr.mxu0 0.0
  %2524 = vmatpush1.msra.mxu0 0.0
  %2525 = vmatprep.subr.mxu0 0.0
  %2526 = vmatpush1.msra.mxu0 0.0
  %2527 = vmatprep.subr.mxu0 0.0
  %2528 = vmatpush1.msra.mxu0 0.0
  %2529 = vmatprep.subr.mxu0 0.0
  %2530 = vmatpush1.msra.mxu0 0.0
  %2531 = vmatprep.subr.mxu0 0.0
  %2532 = vmatpush1.msra.mxu0 0.0
  %2533 = vmatprep.subr.mxu0 0.0
  %2534 = vmatpush1.msra.mxu0 0.0
  %2535 = vmatprep.subr.mxu0 0.0
  %2536 = vmatpush1.msra.mxu0 0.0
  %2537 = vmatprep.subr.mxu0 0.0
  %2538 = vmatpush1.msra.mxu0 0.0
  %2539 = vmatprep.subr.mxu0 0.0
  %2540 = vmatpush1.msra.mxu0 0.0
  %2541 = vmatprep.subr.mxu0 0.0
  %2542 = vmatpush1.msra.mxu0 0.0
  %2543 = vmatprep.subr.mxu0 0.0
  %2544 = vmatpush1.msra.mxu0 0.0
  %2545 = vmatprep.subr.mxu0 0.0
  %2546 = vmatpush1.msra.mxu0 0.0
  %2547 = vmatprep.subr.mxu0 0.0
  %2548 = vmatpush1.msra.mxu0 0.0
  %2549 = vmatprep.mubr.f32.mxu0 0.0
  %2550 = vmatmul.mubr.f32.gmra.mrb[0].mxu0 %v2483
  %v2551 = vpop.f32.mrb[0].mxu0
  %v2552 = vadd.f32 0.0, %v2551
  %v2553 = vpop.f32.mrb[0].mxu0
  %2554 = vdwg.mxu0
  %2555 = vrot.lane.b32.xlu0 %v131, 56
  %v2556 = vpop.permute.xlu0 %2555
  %v2559 = vsel %vm145, %v2172, 0
  %2561 = vmatprep.subr.mxu0 0.0
  %2562 = vmatpush1.msra.mxu0 %v2556
  %2563 = vmatprep.subr.mxu0 0.0
  %2564 = vmatpush1.msra.mxu0 0.0
  %2565 = vmatprep.subr.mxu0 0.0
  %2566 = vmatpush1.msra.mxu0 0.0
  %2567 = vmatprep.subr.mxu0 0.0
  %2568 = vmatpush1.msra.mxu0 0.0
  %2569 = vmatprep.subr.mxu0 0.0
  %2570 = vmatpush1.msra.mxu0 0.0
  %2571 = vmatprep.subr.mxu0 0.0
  %2572 = vmatpush1.msra.mxu0 0.0
  %2573 = vmatprep.subr.mxu0 0.0
  %2574 = vmatpush1.msra.mxu0 0.0
  %2575 = vmatprep.subr.mxu0 0.0
  %2576 = vmatpush1.msra.mxu0 0.0
  %2577 = vmatprep.subr.mxu0 0.0
  %2578 = vmatpush1.msra.mxu0 0.0
  %2579 = vmatprep.subr.mxu0 0.0
  %2580 = vmatpush1.msra.mxu0 0.0
  %2581 = vmatprep.subr.mxu0 0.0
  %2582 = vmatpush1.msra.mxu0 0.0
  %2583 = vmatprep.subr.mxu0 0.0
  %2584 = vmatpush1.msra.mxu0 0.0
  %2585 = vmatprep.subr.mxu0 0.0
  %2586 = vmatpush1.msra.mxu0 0.0
  %2587 = vmatprep.subr.mxu0 0.0
  %2588 = vmatpush1.msra.mxu0 0.0
  %2589 = vmatprep.subr.mxu0 0.0
  %2590 = vmatpush1.msra.mxu0 0.0
  %2591 = vmatprep.subr.mxu0 0.0
  %2592 = vmatpush1.msra.mxu0 0.0
  %2593 = vmatprep.subr.mxu0 0.0
  %2594 = vmatpush1.msra.mxu0 0.0
  %2595 = vmatprep.subr.mxu0 0.0
  %2596 = vmatpush1.msra.mxu0 0.0
  %2597 = vmatprep.subr.mxu0 0.0
  %2598 = vmatpush1.msra.mxu0 0.0
  %2599 = vmatprep.subr.mxu0 0.0
  %2600 = vmatpush1.msra.mxu0 0.0
  %2601 = vmatprep.subr.mxu0 0.0
  %2602 = vmatpush1.msra.mxu0 0.0
  %2603 = vmatprep.subr.mxu0 0.0
  %2604 = vmatpush1.msra.mxu0 0.0
  %2605 = vmatprep.subr.mxu0 0.0
  %2606 = vmatpush1.msra.mxu0 0.0
  %2607 = vmatprep.subr.mxu0 0.0
  %2608 = vmatpush1.msra.mxu0 0.0
  %2609 = vmatprep.subr.mxu0 0.0
  %2610 = vmatpush1.msra.mxu0 0.0
  %2611 = vmatprep.subr.mxu0 0.0
  %2612 = vmatpush1.msra.mxu0 0.0
  %2613 = vmatprep.subr.mxu0 0.0
  %2614 = vmatpush1.msra.mxu0 0.0
  %2615 = vmatprep.subr.mxu0 0.0
  %2616 = vmatpush1.msra.mxu0 0.0
  %2617 = vmatprep.subr.mxu0 0.0
  %2618 = vmatpush1.msra.mxu0 0.0
  %2619 = vmatprep.subr.mxu0 0.0
  %2620 = vmatpush1.msra.mxu0 0.0
  %2621 = vmatprep.subr.mxu0 0.0
  %2622 = vmatpush1.msra.mxu0 0.0
  %2623 = vmatprep.subr.mxu0 0.0
  %2624 = vmatpush1.msra.mxu0 0.0
  %2625 = vmatprep.mubr.f32.mxu0 0.0
  %2626 = vmatmul.mubr.f32.gmra.mrb[0].mxu0 %v2559
  %v2627 = vpop.f32.mrb[0].mxu0
  %v2628 = vadd.f32 0.0, %v2627
  %v2629 = vpop.f32.mrb[0].mxu0
  %2630 = vdwg.mxu0
  %2631 = vrot.lane.b32.xlu0 %v136, 56
  %v2632 = vpop.permute.xlu0 %2631
  %v2635 = vsel %vm145, %v2173, 0
  %2637 = vmatprep.subr.mxu0 0.0
  %2638 = vmatpush1.msra.mxu0 %v2632
  %2639 = vmatprep.subr.mxu0 0.0
  %2640 = vmatpush1.msra.mxu0 0.0
  %2641 = vmatprep.subr.mxu0 0.0
  %2642 = vmatpush1.msra.mxu0 0.0
  %2643 = vmatprep.subr.mxu0 0.0
  %2644 = vmatpush1.msra.mxu0 0.0
  %2645 = vmatprep.subr.mxu0 0.0
  %2646 = vmatpush1.msra.mxu0 0.0
  %2647 = vmatprep.subr.mxu0 0.0
  %2648 = vmatpush1.msra.mxu0 0.0
  %2649 = vmatprep.subr.mxu0 0.0
  %2650 = vmatpush1.msra.mxu0 0.0
  %2651 = vmatprep.subr.mxu0 0.0
  %2652 = vmatpush1.msra.mxu0 0.0
  %2653 = vmatprep.subr.mxu0 0.0
  %2654 = vmatpush1.msra.mxu0 0.0
  %2655 = vmatprep.subr.mxu0 0.0
  %2656 = vmatpush1.msra.mxu0 0.0
  %2657 = vmatprep.subr.mxu0 0.0
  %2658 = vmatpush1.msra.mxu0 0.0
  %2659 = vmatprep.subr.mxu0 0.0
  %2660 = vmatpush1.msra.mxu0 0.0
  %2661 = vmatprep.subr.mxu0 0.0
  %2662 = vmatpush1.msra.mxu0 0.0
  %2663 = vmatprep.subr.mxu0 0.0
  %2664 = vmatpush1.msra.mxu0 0.0
  %2665 = vmatprep.subr.mxu0 0.0
  %2666 = vmatpush1.msra.mxu0 0.0
  %2667 = vmatprep.subr.mxu0 0.0
  %2668 = vmatpush1.msra.mxu0 0.0
  %2669 = vmatprep.subr.mxu0 0.0
  %2670 = vmatpush1.msra.mxu0 0.0
  %2671 = vmatprep.subr.mxu0 0.0
  %2672 = vmatpush1.msra.mxu0 0.0
  %2673 = vmatprep.subr.mxu0 0.0
  %2674 = vmatpush1.msra.mxu0 0.0
  %2675 = vmatprep.subr.mxu0 0.0
  %2676 = vmatpush1.msra.mxu0 0.0
  %2677 = vmatprep.subr.mxu0 0.0
  %2678 = vmatpush1.msra.mxu0 0.0
  %2679 = vmatprep.subr.mxu0 0.0
  %2680 = vmatpush1.msra.mxu0 0.0
  %2681 = vmatprep.subr.mxu0 0.0
  %2682 = vmatpush1.msra.mxu0 0.0
  %2683 = vmatprep.subr.mxu0 0.0
  %2684 = vmatpush1.msra.mxu0 0.0
  %2685 = vmatprep.subr.mxu0 0.0
  %2686 = vmatpush1.msra.mxu0 0.0
  %2687 = vmatprep.subr.mxu0 0.0
  %2688 = vmatpush1.msra.mxu0 0.0
  %2689 = vmatprep.subr.mxu0 0.0
  %2690 = vmatpush1.msra.mxu0 0.0
  %2691 = vmatprep.subr.mxu0 0.0
  %2692 = vmatpush1.msra.mxu0 0.0
  %2693 = vmatprep.subr.mxu0 0.0
  %2694 = vmatpush1.msra.mxu0 0.0
  %2695 = vmatprep.subr.mxu0 0.0
  %2696 = vmatpush1.msra.mxu0 0.0
  %2697 = vmatprep.subr.mxu0 0.0
  %2698 = vmatpush1.msra.mxu0 0.0
  %2699 = vmatprep.subr.mxu0 0.0
  %2700 = vmatpush1.msra.mxu0 0.0
  %2701 = vmatprep.mubr.f32.mxu0 0.0
  %2702 = vmatmul.mubr.f32.gmra.mrb[0].mxu0 %v2635
  %v2703 = vpop.f32.mrb[0].mxu0
  %v2704 = vadd.f32 0.0, %v2703
  %v2705 = vpop.f32.mrb[0].mxu0
  %2706 = vdwg.mxu0
  %2707 = vrot.lane.b32.xlu0 %v139, 56
  %v2708 = vpop.permute.xlu0 %2707
  %v2711 = vsel %vm145, %v2174, 0
  %2713 = vmatprep.subr.mxu0 0.0
  %2714 = vmatpush1.msra.mxu0 %v2708
  %2715 = vmatprep.subr.mxu0 0.0
  %2716 = vmatpush1.msra.mxu0 0.0
  %2717 = vmatprep.subr.mxu0 0.0
  %2718 = vmatpush1.msra.mxu0 0.0
  %2719 = vmatprep.subr.mxu0 0.0
  %2720 = vmatpush1.msra.mxu0 0.0
  %2721 = vmatprep.subr.mxu0 0.0
  %2722 = vmatpush1.msra.mxu0 0.0
  %2723 = vmatprep.subr.mxu0 0.0
  %2724 = vmatpush1.msra.mxu0 0.0
  %2725 = vmatprep.subr.mxu0 0.0
  %2726 = vmatpush1.msra.mxu0 0.0
  %2727 = vmatprep.subr.mxu0 0.0
  %2728 = vmatpush1.msra.mxu0 0.0
  %2729 = vmatprep.subr.mxu0 0.0
  %2730 = vmatpush1.msra.mxu0 0.0
  %2731 = vmatprep.subr.mxu0 0.0
  %2732 = vmatpush1.msra.mxu0 0.0
  %2733 = vmatprep.subr.mxu0 0.0
  %2734 = vmatpush1.msra.mxu0 0.0
  %2735 = vmatprep.subr.mxu0 0.0
  %2736 = vmatpush1.msra.mxu0 0.0
  %2737 = vmatprep.subr.mxu0 0.0
  %2738 = vmatpush1.msra.mxu0 0.0
  %2739 = vmatprep.subr.mxu0 0.0
  %2740 = vmatpush1.msra.mxu0 0.0
  %2741 = vmatprep.subr.mxu0 0.0
  %2742 = vmatpush1.msra.mxu0 0.0
  %2743 = vmatprep.subr.mxu0 0.0
  %2744 = vmatpush1.msra.mxu0 0.0
  %2745 = vmatprep.subr.mxu0 0.0
  %2746 = vmatpush1.msra.mxu0 0.0
  %2747 = vmatprep.subr.mxu0 0.0
  %2748 = vmatpush1.msra.mxu0 0.0
  %2749 = vmatprep.subr.mxu0 0.0
  %2750 = vmatpush1.msra.mxu0 0.0
  %2751 = vmatprep.subr.mxu0 0.0
  %2752 = vmatpush1.msra.mxu0 0.0
  %2753 = vmatprep.subr.mxu0 0.0
  %2754 = vmatpush1.msra.mxu0 0.0
  %2755 = vmatprep.subr.mxu0 0.0
  %2756 = vmatpush1.msra.mxu0 0.0
  %2757 = vmatprep.subr.mxu0 0.0
  %2758 = vmatpush1.msra.mxu0 0.0
  %2759 = vmatprep.subr.mxu0 0.0
  %2760 = vmatpush1.msra.mxu0 0.0
  %2761 = vmatprep.subr.mxu0 0.0
  %2762 = vmatpush1.msra.mxu0 0.0
  %2763 = vmatprep.subr.mxu0 0.0
  %2764 = vmatpush1.msra.mxu0 0.0
  %2765 = vmatprep.subr.mxu0 0.0
  %2766 = vmatpush1.msra.mxu0 0.0
  %2767 = vmatprep.subr.mxu0 0.0
  %2768 = vmatpush1.msra.mxu0 0.0
  %2769 = vmatprep.subr.mxu0 0.0
  %2770 = vmatpush1.msra.mxu0 0.0
  %2771 = vmatprep.subr.mxu0 0.0
  %2772 = vmatpush1.msra.mxu0 0.0
  %2773 = vmatprep.subr.mxu0 0.0
  %2774 = vmatpush1.msra.mxu0 0.0
  %2775 = vmatprep.subr.mxu0 0.0
  %2776 = vmatpush1.msra.mxu0 0.0
  %2777 = vmatprep.mubr.f32.mxu0 0.0
  %2778 = vmatmul.mubr.f32.gmra.mrb[0].mxu0 %v2711
  %v2779 = vpop.f32.mrb[0].mxu0
  %v2780 = vadd.f32 0.0, %v2779
  %v2781 = vpop.f32.mrb[0].mxu0
  %2782 = vdwg.mxu0
  %2791 = vrot.lane.b32.xlu0 %v2248, 8
  %v2792 = vpop.permute.xlu0 %2791
  %2793 = vrot.lane.b32.xlu0 %v2324, 8
  %v2794 = vpop.permute.xlu0 %2793
  %2795 = vrot.lane.b32.xlu0 %v2400, 8
  %v2796 = vpop.permute.xlu0 %2795
  %2797 = vrot.lane.b32.xlu0 %v2476, 8
  %v2798 = vpop.permute.xlu0 %2797
  %2799 = vrot.lane.b32.xlu0 %v2552, 8
  %v2800 = vpop.permute.xlu0 %2799
  %2801 = vrot.lane.b32.xlu0 %v2628, 8
  %v2802 = vpop.permute.xlu0 %2801
  %2803 = vrot.lane.b32.xlu0 %v2704, 8
  %v2804 = vpop.permute.xlu0 %2803
  %2805 = vrot.lane.b32.xlu0 %v2780, 8
  %v2806 = vpop.permute.xlu0 %2805
  %vm2815 = vcmask 130112
  %2816 = vst.msk [vmem:[#allocation2] sm:$0xff] %vm2815, %v2792
  %2817 = vst.msk [vmem:[#allocation2 + $0x8] sm:$0xff] %vm2815, %v2794
  %2818 = vst.msk [vmem:[#allocation2 + $0x10] sm:$0xff] %vm2815, %v2796
  %2819 = vst.msk [vmem:[#allocation2 + $0x18] sm:$0xff] %vm2815, %v2798
  %2820 = vst.msk [vmem:[#allocation2 + $0x20] sm:$0xff] %vm2815, %v2800
  %2821 = vst.msk [vmem:[#allocation2 + $0x28] sm:$0xff] %vm2815, %v2802
  %2822 = vst.msk [vmem:[#allocation2 + $0x30] sm:$0xff] %vm2815, %v2804
  %2823 = vst.msk [vmem:[#allocation2 + $0x38] sm:$0xff] %vm2815, %v2806
  %2824 = vrot.lane.b32.xlu0 %v112, 112
  %v2825 = vpop.permute.xlu0 %2824
  %2826 = vrot.lane.b32.xlu0 %v112, 80
  %v2827 = vpop.permute.xlu0 %2826
  %v2828 = vsel %vm145, %v2825, 0
  %v2830 = vsel %vm145, %v2827, 0
  %2832 = vmatprep.subr.mxu0 0.0
  %2833 = vmatpush1.xpose.msra.mxu0 %v2830
  %2834 = vmatprep.subr.mxu0 0.0
  %2835 = vmatpush1.xpose.msra.mxu0 0.0
  %2836 = vmatprep.subr.mxu0 0.0
  %2837 = vmatpush1.xpose.msra.mxu0 0.0
  %2838 = vmatprep.subr.mxu0 0.0
  %2839 = vmatpush1.xpose.msra.mxu0 0.0
  %2840 = vmatprep.subr.mxu0 0.0
  %2841 = vmatpush1.xpose.msra.mxu0 0.0
  %2842 = vmatprep.subr.mxu0 0.0
  %2843 = vmatpush1.xpose.msra.mxu0 0.0
  %2844 = vmatprep.subr.mxu0 0.0
  %2845 = vmatpush1.xpose.msra.mxu0 0.0
  %2846 = vmatprep.subr.mxu0 0.0
  %2847 = vmatpush1.xpose.msra.mxu0 0.0
  %2848 = vmatprep.subr.mxu0 0.0
  %2849 = vmatpush1.xpose.msra.mxu0 0.0
  %2850 = vmatprep.subr.mxu0 0.0
  %2851 = vmatpush1.xpose.msra.mxu0 0.0
  %2852 = vmatprep.subr.mxu0 0.0
  %2853 = vmatpush1.xpose.msra.mxu0 0.0
  %2854 = vmatprep.subr.mxu0 0.0
  %2855 = vmatpush1.xpose.msra.mxu0 0.0
  %2856 = vmatprep.subr.mxu0 0.0
  %2857 = vmatpush1.xpose.msra.mxu0 0.0
  %2858 = vmatprep.subr.mxu0 0.0
  %2859 = vmatpush1.xpose.msra.mxu0 0.0
  %2860 = vmatprep.subr.mxu0 0.0
  %2861 = vmatpush1.xpose.msra.mxu0 0.0
  %2862 = vmatprep.subr.mxu0 0.0
  %2863 = vmatpush1.xpose.msra.mxu0 0.0
  %2864 = vmatprep.subr.mxu0 0.0
  %2865 = vmatpush1.xpose.msra.mxu0 0.0
  %2866 = vmatprep.subr.mxu0 0.0
  %2867 = vmatpush1.xpose.msra.mxu0 0.0
  %2868 = vmatprep.subr.mxu0 0.0
  %2869 = vmatpush1.xpose.msra.mxu0 0.0
  %2870 = vmatprep.subr.mxu0 0.0
  %2871 = vmatpush1.xpose.msra.mxu0 0.0
  %2872 = vmatprep.subr.mxu0 0.0
  %2873 = vmatpush1.xpose.msra.mxu0 0.0
  %2874 = vmatprep.subr.mxu0 0.0
  %2875 = vmatpush1.xpose.msra.mxu0 0.0
  %2876 = vmatprep.subr.mxu0 0.0
  %2877 = vmatpush1.xpose.msra.mxu0 0.0
  %2878 = vmatprep.subr.mxu0 0.0
  %2879 = vmatpush1.xpose.msra.mxu0 0.0
  %2880 = vmatprep.subr.mxu0 0.0
  %2881 = vmatpush1.xpose.msra.mxu0 0.0
  %2882 = vmatprep.subr.mxu0 0.0
  %2883 = vmatpush1.xpose.msra.mxu0 0.0
  %2884 = vmatprep.subr.mxu0 0.0
  %2885 = vmatpush1.xpose.msra.mxu0 0.0
  %2886 = vmatprep.subr.mxu0 0.0
  %2887 = vmatpush1.xpose.msra.mxu0 0.0
  %2888 = vmatprep.subr.mxu0 0.0
  %2889 = vmatpush1.xpose.msra.mxu0 0.0
  %2890 = vmatprep.subr.mxu0 0.0
  %2891 = vmatpush1.xpose.msra.mxu0 0.0
  %2892 = vmatprep.subr.mxu0 0.0
  %2893 = vmatpush1.xpose.msra.mxu0 0.0
  %2894 = vmatprep.subr.mxu0 0.0
  %2895 = vmatpush1.xpose.msra.mxu0 0.0
  %2896 = vmatprep.mubr.f32.mxu0 0.0
  %2897 = vmatmul.mubr.f32.gmra.mrb[0].mxu0 %v2828
  %v2898 = vpop.f32.mrb[0].mxu0
  %v2899 = vadd.f32 0.0, %v2898
  %v2900 = vpop.f32.mrb[0].mxu0
  %2901 = vdwg.mxu0
  %2902 = vrot.lane.b32.xlu0 %v115, 112
  %v2903 = vpop.permute.xlu0 %2902
  %2904 = vrot.lane.b32.xlu0 %v115, 80
  %v2905 = vpop.permute.xlu0 %2904
  %v2906 = vsel %vm145, %v2903, 0
  %v2908 = vsel %vm145, %v2905, 0
  %2910 = vmatprep.subr.mxu0 0.0
  %2911 = vmatpush1.xpose.msra.mxu0 %v2908
  %2912 = vmatprep.subr.mxu0 0.0
  %2913 = vmatpush1.xpose.msra.mxu0 0.0
  %2914 = vmatprep.subr.mxu0 0.0
  %2915 = vmatpush1.xpose.msra.mxu0 0.0
  %2916 = vmatprep.subr.mxu0 0.0
  %2917 = vmatpush1.xpose.msra.mxu0 0.0
  %2918 = vmatprep.subr.mxu0 0.0
  %2919 = vmatpush1.xpose.msra.mxu0 0.0
  %2920 = vmatprep.subr.mxu0 0.0
  %2921 = vmatpush1.xpose.msra.mxu0 0.0
  %2922 = vmatprep.subr.mxu0 0.0
  %2923 = vmatpush1.xpose.msra.mxu0 0.0
  %2924 = vmatprep.subr.mxu0 0.0
  %2925 = vmatpush1.xpose.msra.mxu0 0.0
  %2926 = vmatprep.subr.mxu0 0.0
  %2927 = vmatpush1.xpose.msra.mxu0 0.0
  %2928 = vmatprep.subr.mxu0 0.0
  %2929 = vmatpush1.xpose.msra.mxu0 0.0
  %2930 = vmatprep.subr.mxu0 0.0
  %2931 = vmatpush1.xpose.msra.mxu0 0.0
  %2932 = vmatprep.subr.mxu0 0.0
  %2933 = vmatpush1.xpose.msra.mxu0 0.0
  %2934 = vmatprep.subr.mxu0 0.0
  %2935 = vmatpush1.xpose.msra.mxu0 0.0
  %2936 = vmatprep.subr.mxu0 0.0
  %2937 = vmatpush1.xpose.msra.mxu0 0.0
  %2938 = vmatprep.subr.mxu0 0.0
  %2939 = vmatpush1.xpose.msra.mxu0 0.0
  %2940 = vmatprep.subr.mxu0 0.0
  %2941 = vmatpush1.xpose.msra.mxu0 0.0
  %2942 = vmatprep.subr.mxu0 0.0
  %2943 = vmatpush1.xpose.msra.mxu0 0.0
  %2944 = vmatprep.subr.mxu0 0.0
  %2945 = vmatpush1.xpose.msra.mxu0 0.0
  %2946 = vmatprep.subr.mxu0 0.0
  %2947 = vmatpush1.xpose.msra.mxu0 0.0
  %2948 = vmatprep.subr.mxu0 0.0
  %2949 = vmatpush1.xpose.msra.mxu0 0.0
  %2950 = vmatprep.subr.mxu0 0.0
  %2951 = vmatpush1.xpose.msra.mxu0 0.0
  %2952 = vmatprep.subr.mxu0 0.0
  %2953 = vmatpush1.xpose.msra.mxu0 0.0
  %2954 = vmatprep.subr.mxu0 0.0
  %2955 = vmatpush1.xpose.msra.mxu0 0.0
  %2956 = vmatprep.subr.mxu0 0.0
  %2957 = vmatpush1.xpose.msra.mxu0 0.0
  %2958 = vmatprep.subr.mxu0 0.0
  %2959 = vmatpush1.xpose.msra.mxu0 0.0
  %2960 = vmatprep.subr.mxu0 0.0
  %2961 = vmatpush1.xpose.msra.mxu0 0.0
  %2962 = vmatprep.subr.mxu0 0.0
  %2963 = vmatpush1.xpose.msra.mxu0 0.0
  %2964 = vmatprep.subr.mxu0 0.0
  %2965 = vmatpush1.xpose.msra.mxu0 0.0
  %2966 = vmatprep.subr.mxu0 0.0
  %2967 = vmatpush1.xpose.msra.mxu0 0.0
  %2968 = vmatprep.subr.mxu0 0.0
  %2969 = vmatpush1.xpose.msra.mxu0 0.0
  %2970 = vmatprep.subr.mxu0 0.0
  %2971 = vmatpush1.xpose.msra.mxu0 0.0
  %2972 = vmatprep.subr.mxu0 0.0
  %2973 = vmatpush1.xpose.msra.mxu0 0.0
  %2974 = vmatprep.mubr.f32.mxu0 0.0
  %2975 = vmatmul.mubr.f32.gmra.mrb[0].mxu0 %v2906
  %v2976 = vpop.f32.mrb[0].mxu0
  %v2977 = vadd.f32 0.0, %v2976
  %v2978 = vpop.f32.mrb[0].mxu0
  %2979 = vdwg.mxu0
  %2980 = vrot.lane.b32.xlu0 %v120, 112
  %v2981 = vpop.permute.xlu0 %2980
  %2982 = vrot.lane.b32.xlu0 %v120, 80
  %v2983 = vpop.permute.xlu0 %2982
  %v2984 = vsel %vm145, %v2981, 0
  %v2986 = vsel %vm145, %v2983, 0
  %2988 = vmatprep.subr.mxu0 0.0
  %2989 = vmatpush1.xpose.msra.mxu0 %v2986
  %2990 = vmatprep.subr.mxu0 0.0
  %2991 = vmatpush1.xpose.msra.mxu0 0.0
  %2992 = vmatprep.subr.mxu0 0.0
  %2993 = vmatpush1.xpose.msra.mxu0 0.0
  %2994 = vmatprep.subr.mxu0 0.0
  %2995 = vmatpush1.xpose.msra.mxu0 0.0
  %2996 = vmatprep.subr.mxu0 0.0
  %2997 = vmatpush1.xpose.msra.mxu0 0.0
  %2998 = vmatprep.subr.mxu0 0.0
  %2999 = vmatpush1.xpose.msra.mxu0 0.0
  %3000 = vmatprep.subr.mxu0 0.0
  %3001 = vmatpush1.xpose.msra.mxu0 0.0
  %3002 = vmatprep.subr.mxu0 0.0
  %3003 = vmatpush1.xpose.msra.mxu0 0.0
  %3004 = vmatprep.subr.mxu0 0.0
  %3005 = vmatpush1.xpose.msra.mxu0 0.0
  %3006 = vmatprep.subr.mxu0 0.0
  %3007 = vmatpush1.xpose.msra.mxu0 0.0
  %3008 = vmatprep.subr.mxu0 0.0
  %3009 = vmatpush1.xpose.msra.mxu0 0.0
  %3010 = vmatprep.subr.mxu0 0.0
  %3011 = vmatpush1.xpose.msra.mxu0 0.0
  %3012 = vmatprep.subr.mxu0 0.0
  %3013 = vmatpush1.xpose.msra.mxu0 0.0
  %3014 = vmatprep.subr.mxu0 0.0
  %3015 = vmatpush1.xpose.msra.mxu0 0.0
  %3016 = vmatprep.subr.mxu0 0.0
  %3017 = vmatpush1.xpose.msra.mxu0 0.0
  %3018 = vmatprep.subr.mxu0 0.0
  %3019 = vmatpush1.xpose.msra.mxu0 0.0
  %3020 = vmatprep.subr.mxu0 0.0
  %3021 = vmatpush1.xpose.msra.mxu0 0.0
  %3022 = vmatprep.subr.mxu0 0.0
  %3023 = vmatpush1.xpose.msra.mxu0 0.0
  %3024 = vmatprep.subr.mxu0 0.0
  %3025 = vmatpush1.xpose.msra.mxu0 0.0
  %3026 = vmatprep.subr.mxu0 0.0
  %3027 = vmatpush1.xpose.msra.mxu0 0.0
  %3028 = vmatprep.subr.mxu0 0.0
  %3029 = vmatpush1.xpose.msra.mxu0 0.0
  %3030 = vmatprep.subr.mxu0 0.0
  %3031 = vmatpush1.xpose.msra.mxu0 0.0
  %3032 = vmatprep.subr.mxu0 0.0
  %3033 = vmatpush1.xpose.msra.mxu0 0.0
  %3034 = vmatprep.subr.mxu0 0.0
  %3035 = vmatpush1.xpose.msra.mxu0 0.0
  %3036 = vmatprep.subr.mxu0 0.0
  %3037 = vmatpush1.xpose.msra.mxu0 0.0
  %3038 = vmatprep.subr.mxu0 0.0
  %3039 = vmatpush1.xpose.msra.mxu0 0.0
  %3040 = vmatprep.subr.mxu0 0.0
  %3041 = vmatpush1.xpose.msra.mxu0 0.0
  %3042 = vmatprep.subr.mxu0 0.0
  %3043 = vmatpush1.xpose.msra.mxu0 0.0
  %3044 = vmatprep.subr.mxu0 0.0
  %3045 = vmatpush1.xpose.msra.mxu0 0.0
  %3046 = vmatprep.subr.mxu0 0.0
  %3047 = vmatpush1.xpose.msra.mxu0 0.0
  %3048 = vmatprep.subr.mxu0 0.0
  %3049 = vmatpush1.xpose.msra.mxu0 0.0
  %3050 = vmatprep.subr.mxu0 0.0
  %3051 = vmatpush1.xpose.msra.mxu0 0.0
  %3052 = vmatprep.mubr.f32.mxu0 0.0
  %3053 = vmatmul.mubr.f32.gmra.mrb[0].mxu0 %v2984
  %v3054 = vpop.f32.mrb[0].mxu0
  %v3055 = vadd.f32 0.0, %v3054
  %v3056 = vpop.f32.mrb[0].mxu0
  %3057 = vdwg.mxu0
  %3058 = vrot.lane.b32.xlu0 %v123, 112
  %v3059 = vpop.permute.xlu0 %3058
  %3060 = vrot.lane.b32.xlu0 %v123, 80
  %v3061 = vpop.permute.xlu0 %3060
  %v3062 = vsel %vm145, %v3059, 0
  %v3064 = vsel %vm145, %v3061, 0
  %3066 = vmatprep.subr.mxu0 0.0
  %3067 = vmatpush1.xpose.msra.mxu0 %v3064
  %3068 = vmatprep.subr.mxu0 0.0
  %3069 = vmatpush1.xpose.msra.mxu0 0.0
  %3070 = vmatprep.subr.mxu0 0.0
  %3071 = vmatpush1.xpose.msra.mxu0 0.0
  %3072 = vmatprep.subr.mxu0 0.0
  %3073 = vmatpush1.xpose.msra.mxu0 0.0
  %3074 = vmatprep.subr.mxu0 0.0
  %3075 = vmatpush1.xpose.msra.mxu0 0.0
  %3076 = vmatprep.subr.mxu0 0.0
  %3077 = vmatpush1.xpose.msra.mxu0 0.0
  %3078 = vmatprep.subr.mxu0 0.0
  %3079 = vmatpush1.xpose.msra.mxu0 0.0
  %3080 = vmatprep.subr.mxu0 0.0
  %3081 = vmatpush1.xpose.msra.mxu0 0.0
  %3082 = vmatprep.subr.mxu0 0.0
  %3083 = vmatpush1.xpose.msra.mxu0 0.0
  %3084 = vmatprep.subr.mxu0 0.0
  %3085 = vmatpush1.xpose.msra.mxu0 0.0
  %3086 = vmatprep.subr.mxu0 0.0
  %3087 = vmatpush1.xpose.msra.mxu0 0.0
  %3088 = vmatprep.subr.mxu0 0.0
  %3089 = vmatpush1.xpose.msra.mxu0 0.0
  %3090 = vmatprep.subr.mxu0 0.0
  %3091 = vmatpush1.xpose.msra.mxu0 0.0
  %3092 = vmatprep.subr.mxu0 0.0
  %3093 = vmatpush1.xpose.msra.mxu0 0.0
  %3094 = vmatprep.subr.mxu0 0.0
  %3095 = vmatpush1.xpose.msra.mxu0 0.0
  %3096 = vmatprep.subr.mxu0 0.0
  %3097 = vmatpush1.xpose.msra.mxu0 0.0
  %3098 = vmatprep.subr.mxu0 0.0
  %3099 = vmatpush1.xpose.msra.mxu0 0.0
  %3100 = vmatprep.subr.mxu0 0.0
  %3101 = vmatpush1.xpose.msra.mxu0 0.0
  %3102 = vmatprep.subr.mxu0 0.0
  %3103 = vmatpush1.xpose.msra.mxu0 0.0
  %3104 = vmatprep.subr.mxu0 0.0
  %3105 = vmatpush1.xpose.msra.mxu0 0.0
  %3106 = vmatprep.subr.mxu0 0.0
  %3107 = vmatpush1.xpose.msra.mxu0 0.0
  %3108 = vmatprep.subr.mxu0 0.0
  %3109 = vmatpush1.xpose.msra.mxu0 0.0
  %3110 = vmatprep.subr.mxu0 0.0
  %3111 = vmatpush1.xpose.msra.mxu0 0.0
  %3112 = vmatprep.subr.mxu0 0.0
  %3113 = vmatpush1.xpose.msra.mxu0 0.0
  %3114 = vmatprep.subr.mxu0 0.0
  %3115 = vmatpush1.xpose.msra.mxu0 0.0
  %3116 = vmatprep.subr.mxu0 0.0
  %3117 = vmatpush1.xpose.msra.mxu0 0.0
  %3118 = vmatprep.subr.mxu0 0.0
  %3119 = vmatpush1.xpose.msra.mxu0 0.0
  %3120 = vmatprep.subr.mxu0 0.0
  %3121 = vmatpush1.xpose.msra.mxu0 0.0
  %3122 = vmatprep.subr.mxu0 0.0
  %3123 = vmatpush1.xpose.msra.mxu0 0.0
  %3124 = vmatprep.subr.mxu0 0.0
  %3125 = vmatpush1.xpose.msra.mxu0 0.0
  %3126 = vmatprep.subr.mxu0 0.0
  %3127 = vmatpush1.xpose.msra.mxu0 0.0
  %3128 = vmatprep.subr.mxu0 0.0
  %3129 = vmatpush1.xpose.msra.mxu0 0.0
  %3130 = vmatprep.mubr.f32.mxu0 0.0
  %3131 = vmatmul.mubr.f32.gmra.mrb[0].mxu0 %v3062
  %v3132 = vpop.f32.mrb[0].mxu0
  %v3133 = vadd.f32 0.0, %v3132
  %v3134 = vpop.f32.mrb[0].mxu0
  %3135 = vdwg.mxu0
  %3136 = vrot.lane.b32.xlu0 %v128, 112
  %v3137 = vpop.permute.xlu0 %3136
  %3138 = vrot.lane.b32.xlu0 %v128, 80
  %v3139 = vpop.permute.xlu0 %3138
  %v3140 = vsel %vm145, %v3137, 0
  %v3142 = vsel %vm145, %v3139, 0
  %3144 = vmatprep.subr.mxu0 0.0
  %3145 = vmatpush1.xpose.msra.mxu0 %v3142
  %3146 = vmatprep.subr.mxu0 0.0
  %3147 = vmatpush1.xpose.msra.mxu0 0.0
  %3148 = vmatprep.subr.mxu0 0.0
  %3149 = vmatpush1.xpose.msra.mxu0 0.0
  %3150 = vmatprep.subr.mxu0 0.0
  %3151 = vmatpush1.xpose.msra.mxu0 0.0
  %3152 = vmatprep.subr.mxu0 0.0
  %3153 = vmatpush1.xpose.msra.mxu0 0.0
  %3154 = vmatprep.subr.mxu0 0.0
  %3155 = vmatpush1.xpose.msra.mxu0 0.0
  %3156 = vmatprep.subr.mxu0 0.0
  %3157 = vmatpush1.xpose.msra.mxu0 0.0
  %3158 = vmatprep.subr.mxu0 0.0
  %3159 = vmatpush1.xpose.msra.mxu0 0.0
  %3160 = vmatprep.subr.mxu0 0.0
  %3161 = vmatpush1.xpose.msra.mxu0 0.0
  %3162 = vmatprep.subr.mxu0 0.0
  %3163 = vmatpush1.xpose.msra.mxu0 0.0
  %3164 = vmatprep.subr.mxu0 0.0
  %3165 = vmatpush1.xpose.msra.mxu0 0.0
  %3166 = vmatprep.subr.mxu0 0.0
  %3167 = vmatpush1.xpose.msra.mxu0 0.0
  %3168 = vmatprep.subr.mxu0 0.0
  %3169 = vmatpush1.xpose.msra.mxu0 0.0
  %3170 = vmatprep.subr.mxu0 0.0
  %3171 = vmatpush1.xpose.msra.mxu0 0.0
  %3172 = vmatprep.subr.mxu0 0.0
  %3173 = vmatpush1.xpose.msra.mxu0 0.0
  %3174 = vmatprep.subr.mxu0 0.0
  %3175 = vmatpush1.xpose.msra.mxu0 0.0
  %3176 = vmatprep.subr.mxu0 0.0
  %3177 = vmatpush1.xpose.msra.mxu0 0.0
  %3178 = vmatprep.subr.mxu0 0.0
  %3179 = vmatpush1.xpose.msra.mxu0 0.0
  %3180 = vmatprep.subr.mxu0 0.0
  %3181 = vmatpush1.xpose.msra.mxu0 0.0
  %3182 = vmatprep.subr.mxu0 0.0
  %3183 = vmatpush1.xpose.msra.mxu0 0.0
  %3184 = vmatprep.subr.mxu0 0.0
  %3185 = vmatpush1.xpose.msra.mxu0 0.0
  %3186 = vmatprep.subr.mxu0 0.0
  %3187 = vmatpush1.xpose.msra.mxu0 0.0
  %3188 = vmatprep.subr.mxu0 0.0
  %3189 = vmatpush1.xpose.msra.mxu0 0.0
  %3190 = vmatprep.subr.mxu0 0.0
  %3191 = vmatpush1.xpose.msra.mxu0 0.0
  %3192 = vmatprep.subr.mxu0 0.0
  %3193 = vmatpush1.xpose.msra.mxu0 0.0
  %3194 = vmatprep.subr.mxu0 0.0
  %3195 = vmatpush1.xpose.msra.mxu0 0.0
  %3196 = vmatprep.subr.mxu0 0.0
  %3197 = vmatpush1.xpose.msra.mxu0 0.0
  %3198 = vmatprep.subr.mxu0 0.0
  %3199 = vmatpush1.xpose.msra.mxu0 0.0
  %3200 = vmatprep.subr.mxu0 0.0
  %3201 = vmatpush1.xpose.msra.mxu0 0.0
  %3202 = vmatprep.subr.mxu0 0.0
  %3203 = vmatpush1.xpose.msra.mxu0 0.0
  %3204 = vmatprep.subr.mxu0 0.0
  %3205 = vmatpush1.xpose.msra.mxu0 0.0
  %3206 = vmatprep.subr.mxu0 0.0
  %3207 = vmatpush1.xpose.msra.mxu0 0.0
  %3208 = vmatprep.mubr.f32.mxu0 0.0
  %3209 = vmatmul.mubr.f32.gmra.mrb[0].mxu0 %v3140
  %v3210 = vpop.f32.mrb[0].mxu0
  %v3211 = vadd.f32 0.0, %v3210
  %v3212 = vpop.f32.mrb[0].mxu0
  %3213 = vdwg.mxu0
  %3214 = vrot.lane.b32.xlu0 %v131, 112
  %v3215 = vpop.permute.xlu0 %3214
  %3216 = vrot.lane.b32.xlu0 %v131, 80
  %v3217 = vpop.permute.xlu0 %3216
  %v3218 = vsel %vm145, %v3215, 0
  %v3220 = vsel %vm145, %v3217, 0
  %3222 = vmatprep.subr.mxu0 0.0
  %3223 = vmatpush1.xpose.msra.mxu0 %v3220
  %3224 = vmatprep.subr.mxu0 0.0
  %3225 = vmatpush1.xpose.msra.mxu0 0.0
  %3226 = vmatprep.subr.mxu0 0.0
  %3227 = vmatpush1.xpose.msra.mxu0 0.0
  %3228 = vmatprep.subr.mxu0 0.0
  %3229 = vmatpush1.xpose.msra.mxu0 0.0
  %3230 = vmatprep.subr.mxu0 0.0
  %3231 = vmatpush1.xpose.msra.mxu0 0.0
  %3232 = vmatprep.subr.mxu0 0.0
  %3233 = vmatpush1.xpose.msra.mxu0 0.0
  %3234 = vmatprep.subr.mxu0 0.0
  %3235 = vmatpush1.xpose.msra.mxu0 0.0
  %3236 = vmatprep.subr.mxu0 0.0
  %3237 = vmatpush1.xpose.msra.mxu0 0.0
  %3238 = vmatprep.subr.mxu0 0.0
  %3239 = vmatpush1.xpose.msra.mxu0 0.0
  %3240 = vmatprep.subr.mxu0 0.0
  %3241 = vmatpush1.xpose.msra.mxu0 0.0
  %3242 = vmatprep.subr.mxu0 0.0
  %3243 = vmatpush1.xpose.msra.mxu0 0.0
  %3244 = vmatprep.subr.mxu0 0.0
  %3245 = vmatpush1.xpose.msra.mxu0 0.0
  %3246 = vmatprep.subr.mxu0 0.0
  %3247 = vmatpush1.xpose.msra.mxu0 0.0
  %3248 = vmatprep.subr.mxu0 0.0
  %3249 = vmatpush1.xpose.msra.mxu0 0.0
  %3250 = vmatprep.subr.mxu0 0.0
  %3251 = vmatpush1.xpose.msra.mxu0 0.0
  %3252 = vmatprep.subr.mxu0 0.0
  %3253 = vmatpush1.xpose.msra.mxu0 0.0
  %3254 = vmatprep.subr.mxu0 0.0
  %3255 = vmatpush1.xpose.msra.mxu0 0.0
  %3256 = vmatprep.subr.mxu0 0.0
  %3257 = vmatpush1.xpose.msra.mxu0 0.0
  %3258 = vmatprep.subr.mxu0 0.0
  %3259 = vmatpush1.xpose.msra.mxu0 0.0
  %3260 = vmatprep.subr.mxu0 0.0
  %3261 = vmatpush1.xpose.msra.mxu0 0.0
  %3262 = vmatprep.subr.mxu0 0.0
  %3263 = vmatpush1.xpose.msra.mxu0 0.0
  %3264 = vmatprep.subr.mxu0 0.0
  %3265 = vmatpush1.xpose.msra.mxu0 0.0
  %3266 = vmatprep.subr.mxu0 0.0
  %3267 = vmatpush1.xpose.msra.mxu0 0.0
  %3268 = vmatprep.subr.mxu0 0.0
  %3269 = vmatpush1.xpose.msra.mxu0 0.0
  %3270 = vmatprep.subr.mxu0 0.0
  %3271 = vmatpush1.xpose.msra.mxu0 0.0
  %3272 = vmatprep.subr.mxu0 0.0
  %3273 = vmatpush1.xpose.msra.mxu0 0.0
  %3274 = vmatprep.subr.mxu0 0.0
  %3275 = vmatpush1.xpose.msra.mxu0 0.0
  %3276 = vmatprep.subr.mxu0 0.0
  %3277 = vmatpush1.xpose.msra.mxu0 0.0
  %3278 = vmatprep.subr.mxu0 0.0
  %3279 = vmatpush1.xpose.msra.mxu0 0.0
  %3280 = vmatprep.subr.mxu0 0.0
  %3281 = vmatpush1.xpose.msra.mxu0 0.0
  %3282 = vmatprep.subr.mxu0 0.0
  %3283 = vmatpush1.xpose.msra.mxu0 0.0
  %3284 = vmatprep.subr.mxu0 0.0
  %3285 = vmatpush1.xpose.msra.mxu0 0.0
  %3286 = vmatprep.mubr.f32.mxu0 0.0
  %3287 = vmatmul.mubr.f32.gmra.mrb[0].mxu0 %v3218
  %v3288 = vpop.f32.mrb[0].mxu0
  %v3289 = vadd.f32 0.0, %v3288
  %v3290 = vpop.f32.mrb[0].mxu0
  %3291 = vdwg.mxu0
  %3292 = vrot.lane.b32.xlu0 %v136, 112
  %v3293 = vpop.permute.xlu0 %3292
  %3294 = vrot.lane.b32.xlu0 %v136, 80
  %v3295 = vpop.permute.xlu0 %3294
  %v3296 = vsel %vm145, %v3293, 0
  %v3298 = vsel %vm145, %v3295, 0
  %3300 = vmatprep.subr.mxu0 0.0
  %3301 = vmatpush1.xpose.msra.mxu0 %v3298
  %3302 = vmatprep.subr.mxu0 0.0
  %3303 = vmatpush1.xpose.msra.mxu0 0.0
  %3304 = vmatprep.subr.mxu0 0.0
  %3305 = vmatpush1.xpose.msra.mxu0 0.0
  %3306 = vmatprep.subr.mxu0 0.0
  %3307 = vmatpush1.xpose.msra.mxu0 0.0
  %3308 = vmatprep.subr.mxu0 0.0
  %3309 = vmatpush1.xpose.msra.mxu0 0.0
  %3310 = vmatprep.subr.mxu0 0.0
  %3311 = vmatpush1.xpose.msra.mxu0 0.0
  %3312 = vmatprep.subr.mxu0 0.0
  %3313 = vmatpush1.xpose.msra.mxu0 0.0
  %3314 = vmatprep.subr.mxu0 0.0
  %3315 = vmatpush1.xpose.msra.mxu0 0.0
  %3316 = vmatprep.subr.mxu0 0.0
  %3317 = vmatpush1.xpose.msra.mxu0 0.0
  %3318 = vmatprep.subr.mxu0 0.0
  %3319 = vmatpush1.xpose.msra.mxu0 0.0
  %3320 = vmatprep.subr.mxu0 0.0
  %3321 = vmatpush1.xpose.msra.mxu0 0.0
  %3322 = vmatprep.subr.mxu0 0.0
  %3323 = vmatpush1.xpose.msra.mxu0 0.0
  %3324 = vmatprep.subr.mxu0 0.0
  %3325 = vmatpush1.xpose.msra.mxu0 0.0
  %3326 = vmatprep.subr.mxu0 0.0
  %3327 = vmatpush1.xpose.msra.mxu0 0.0
  %3328 = vmatprep.subr.mxu0 0.0
  %3329 = vmatpush1.xpose.msra.mxu0 0.0
  %3330 = vmatprep.subr.mxu0 0.0
  %3331 = vmatpush1.xpose.msra.mxu0 0.0
  %3332 = vmatprep.subr.mxu0 0.0
  %3333 = vmatpush1.xpose.msra.mxu0 0.0
  %3334 = vmatprep.subr.mxu0 0.0
  %3335 = vmatpush1.xpose.msra.mxu0 0.0
  %3336 = vmatprep.subr.mxu0 0.0
  %3337 = vmatpush1.xpose.msra.mxu0 0.0
  %3338 = vmatprep.subr.mxu0 0.0
  %3339 = vmatpush1.xpose.msra.mxu0 0.0
  %3340 = vmatprep.subr.mxu0 0.0
  %3341 = vmatpush1.xpose.msra.mxu0 0.0
  %3342 = vmatprep.subr.mxu0 0.0
  %3343 = vmatpush1.xpose.msra.mxu0 0.0
  %3344 = vmatprep.subr.mxu0 0.0
  %3345 = vmatpush1.xpose.msra.mxu0 0.0
  %3346 = vmatprep.subr.mxu0 0.0
  %3347 = vmatpush1.xpose.msra.mxu0 0.0
  %3348 = vmatprep.subr.mxu0 0.0
  %3349 = vmatpush1.xpose.msra.mxu0 0.0
  %3350 = vmatprep.subr.mxu0 0.0
  %3351 = vmatpush1.xpose.msra.mxu0 0.0
  %3352 = vmatprep.subr.mxu0 0.0
  %3353 = vmatpush1.xpose.msra.mxu0 0.0
  %3354 = vmatprep.subr.mxu0 0.0
  %3355 = vmatpush1.xpose.msra.mxu0 0.0
  %3356 = vmatprep.subr.mxu0 0.0
  %3357 = vmatpush1.xpose.msra.mxu0 0.0
  %3358 = vmatprep.subr.mxu0 0.0
  %3359 = vmatpush1.xpose.msra.mxu0 0.0
  %3360 = vmatprep.subr.mxu0 0.0
  %3361 = vmatpush1.xpose.msra.mxu0 0.0
  %3362 = vmatprep.subr.mxu0 0.0
  %3363 = vmatpush1.xpose.msra.mxu0 0.0
  %3364 = vmatprep.mubr.f32.mxu0 0.0
  %3365 = vmatmul.mubr.f32.gmra.mrb[0].mxu0 %v3296
  %v3366 = vpop.f32.mrb[0].mxu0
  %v3367 = vadd.f32 0.0, %v3366
  %v3368 = vpop.f32.mrb[0].mxu0
  %3369 = vdwg.mxu0
  %3370 = vrot.lane.b32.xlu0 %v139, 112
  %v3371 = vpop.permute.xlu0 %3370
  %3372 = vrot.lane.b32.xlu0 %v139, 80
  %v3373 = vpop.permute.xlu0 %3372
  %v3374 = vsel %vm145, %v3371, 0
  %v3376 = vsel %vm145, %v3373, 0
  %3378 = vmatprep.subr.mxu0 0.0
  %3379 = vmatpush1.xpose.msra.mxu0 %v3376
  %3380 = vmatprep.subr.mxu0 0.0
  %3381 = vmatpush1.xpose.msra.mxu0 0.0
  %3382 = vmatprep.subr.mxu0 0.0
  %3383 = vmatpush1.xpose.msra.mxu0 0.0
  %3384 = vmatprep.subr.mxu0 0.0
  %3385 = vmatpush1.xpose.msra.mxu0 0.0
  %3386 = vmatprep.subr.mxu0 0.0
  %3387 = vmatpush1.xpose.msra.mxu0 0.0
  %3388 = vmatprep.subr.mxu0 0.0
  %3389 = vmatpush1.xpose.msra.mxu0 0.0
  %3390 = vmatprep.subr.mxu0 0.0
  %3391 = vmatpush1.xpose.msra.mxu0 0.0
  %3392 = vmatprep.subr.mxu0 0.0
  %3393 = vmatpush1.xpose.msra.mxu0 0.0
  %3394 = vmatprep.subr.mxu0 0.0
  %3395 = vmatpush1.xpose.msra.mxu0 0.0
  %3396 = vmatprep.subr.mxu0 0.0
  %3397 = vmatpush1.xpose.msra.mxu0 0.0
  %3398 = vmatprep.subr.mxu0 0.0
  %3399 = vmatpush1.xpose.msra.mxu0 0.0
  %3400 = vmatprep.subr.mxu0 0.0
  %3401 = vmatpush1.xpose.msra.mxu0 0.0
  %3402 = vmatprep.subr.mxu0 0.0
  %3403 = vmatpush1.xpose.msra.mxu0 0.0
  %3404 = vmatprep.subr.mxu0 0.0
  %3405 = vmatpush1.xpose.msra.mxu0 0.0
  %3406 = vmatprep.subr.mxu0 0.0
  %3407 = vmatpush1.xpose.msra.mxu0 0.0
  %3408 = vmatprep.subr.mxu0 0.0
  %3409 = vmatpush1.xpose.msra.mxu0 0.0
  %3410 = vmatprep.subr.mxu0 0.0
  %3411 = vmatpush1.xpose.msra.mxu0 0.0
  %3412 = vmatprep.subr.mxu0 0.0
  %3413 = vmatpush1.xpose.msra.mxu0 0.0
  %3414 = vmatprep.subr.mxu0 0.0
  %3415 = vmatpush1.xpose.msra.mxu0 0.0
  %3416 = vmatprep.subr.mxu0 0.0
  %3417 = vmatpush1.xpose.msra.mxu0 0.0
  %3418 = vmatprep.subr.mxu0 0.0
  %3419 = vmatpush1.xpose.msra.mxu0 0.0
  %3420 = vmatprep.subr.mxu0 0.0
  %3421 = vmatpush1.xpose.msra.mxu0 0.0
  %3422 = vmatprep.subr.mxu0 0.0
  %3423 = vmatpush1.xpose.msra.mxu0 0.0
  %3424 = vmatprep.subr.mxu0 0.0
  %3425 = vmatpush1.xpose.msra.mxu0 0.0
  %3426 = vmatprep.subr.mxu0 0.0
  %3427 = vmatpush1.xpose.msra.mxu0 0.0
  %3428 = vmatprep.subr.mxu0 0.0
  %3429 = vmatpush1.xpose.msra.mxu0 0.0
  %3430 = vmatprep.subr.mxu0 0.0
  %3431 = vmatpush1.xpose.msra.mxu0 0.0
  %3432 = vmatprep.subr.mxu0 0.0
  %3433 = vmatpush1.xpose.msra.mxu0 0.0
  %3434 = vmatprep.subr.mxu0 0.0
  %3435 = vmatpush1.xpose.msra.mxu0 0.0
  %3436 = vmatprep.subr.mxu0 0.0
  %3437 = vmatpush1.xpose.msra.mxu0 0.0
  %3438 = vmatprep.subr.mxu0 0.0
  %3439 = vmatpush1.xpose.msra.mxu0 0.0
  %3440 = vmatprep.subr.mxu0 0.0
  %3441 = vmatpush1.xpose.msra.mxu0 0.0
  %3442 = vmatprep.mubr.f32.mxu0 0.0
  %3443 = vmatmul.mubr.f32.gmra.mrb[0].mxu0 %v3374
  %v3444 = vpop.f32.mrb[0].mxu0
  %v3445 = vadd.f32 0.0, %v3444
  %v3446 = vpop.f32.mrb[0].mxu0
  %3447 = vdwg.mxu0
  %v3448 = vsel %vm145, %v2899, -inf
  %3449 = vmax.xlane.f32.xlu0 %v3448
  %v3450 = vpop.xlane.xlu0 %3449
  %v3451 = vsel %vm145, %v2977, -inf
  %3452 = vmax.xlane.f32.xlu0 %v3451
  %v3453 = vpop.xlane.xlu0 %3452
  %v3454 = vsel %vm145, %v3055, -inf
  %3455 = vmax.xlane.f32.xlu0 %v3454
  %v3456 = vpop.xlane.xlu0 %3455
  %v3457 = vsel %vm145, %v3133, -inf
  %3458 = vmax.xlane.f32.xlu0 %v3457
  %v3459 = vpop.xlane.xlu0 %3458
  %v3460 = vsel %vm145, %v3211, -inf
  %3461 = vmax.xlane.f32.xlu0 %v3460
  %v3462 = vpop.xlane.xlu0 %3461
  %v3463 = vsel %vm145, %v3289, -inf
  %3464 = vmax.xlane.f32.xlu0 %v3463
  %v3465 = vpop.xlane.xlu0 %3464
  %v3466 = vsel %vm145, %v3367, -inf
  %3467 = vmax.xlane.f32.xlu0 %v3466
  %v3468 = vpop.xlane.xlu0 %3467
  %v3469 = vsel %vm145, %v3445, -inf
  %3470 = vmax.xlane.f32.xlu0 %v3469
  %v3471 = vpop.xlane.xlu0 %3470
  %v3472 = vsub.f32 %v2899, %v3450
  %v3473 = vsub.f32 %v2977, %v3453
  %v3474 = vsub.f32 %v3055, %v3456
  %v3475 = vsub.f32 %v3133, %v3459
  %v3476 = vsub.f32 %v3211, %v3462
  %v3477 = vsub.f32 %v3289, %v3465
  %v3478 = vsub.f32 %v3367, %v3468
  %v3479 = vsub.f32 %v3445, %v3471
  %v3480 = vmul.f32 %v3472, 1.442695
  %v3481 = vpow.pop %v3480
  %v3482 = vmul.f32 %v3473, 1.442695
  %v3483 = vpow.pop %v3482
  %v3484 = vmul.f32 %v3474, 1.442695
  %v3485 = vpow.pop %v3484
  %v3486 = vmul.f32 %v3475, 1.442695
  %v3487 = vpow.pop %v3486
  %v3488 = vmul.f32 %v3476, 1.442695
  %v3489 = vpow.pop %v3488
  %v3490 = vmul.f32 %v3477, 1.442695
  %v3491 = vpow.pop %v3490
  %v3492 = vmul.f32 %v3478, 1.442695
  %v3493 = vpow.pop %v3492
  %v3494 = vmul.f32 %v3479, 1.442695
  %v3495 = vpow.pop %v3494
  %v3496 = vsel %vm145, %v3481, 0.0
  %3497 = vadd.xlane.f32.xlu0 %v3496
  %v3498 = vpop.xlane.xlu0 %3497
  %v3499 = vsel %vm145, %v3483, 0.0
  %3500 = vadd.xlane.f32.xlu0 %v3499
  %v3501 = vpop.xlane.xlu0 %3500
  %v3502 = vsel %vm145, %v3485, 0.0
  %3503 = vadd.xlane.f32.xlu0 %v3502
  %v3504 = vpop.xlane.xlu0 %3503
  %v3505 = vsel %vm145, %v3487, 0.0
  %3506 = vadd.xlane.f32.xlu0 %v3505
  %v3507 = vpop.xlane.xlu0 %3506
  %v3508 = vsel %vm145, %v3489, 0.0
  %3509 = vadd.xlane.f32.xlu0 %v3508
  %v3510 = vpop.xlane.xlu0 %3509
  %v3511 = vsel %vm145, %v3491, 0.0
  %3512 = vadd.xlane.f32.xlu0 %v3511
  %v3513 = vpop.xlane.xlu0 %3512
  %v3514 = vsel %vm145, %v3493, 0.0
  %3515 = vadd.xlane.f32.xlu0 %v3514
  %v3516 = vpop.xlane.xlu0 %3515
  %v3517 = vsel %vm145, %v3495, 0.0
  %3518 = vadd.xlane.f32.xlu0 %v3517
  %v3519 = vpop.xlane.xlu0 %3518
  %v3520 = vrcp.pop %v3498
  %v3521 = vrcp.pop %v3501
  %v3522 = vrcp.pop %v3504
  %v3523 = vrcp.pop %v3507
  %v3524 = vrcp.pop %v3510
  %v3525 = vrcp.pop %v3513
  %v3526 = vrcp.pop %v3516
  %v3527 = vrcp.pop %v3519
  %v3528 = vmul.f32 %v3481, %v3520
  %v3529 = vmul.f32 %v3483, %v3521
  %v3530 = vmul.f32 %v3485, %v3522
  %v3531 = vmul.f32 %v3487, %v3523
  %v3532 = vmul.f32 %v3489, %v3524
  %v3533 = vmul.f32 %v3491, %v3525
  %v3534 = vmul.f32 %v3493, %v3526
  %v3535 = vmul.f32 %v3495, %v3527
  %3536 = vrot.lane.b32.xlu0 %v112, 48
  %v3537 = vpop.permute.xlu0 %3536
  %v3540 = vsel %vm145, %v3528, 0
  %3542 = vmatprep.subr.mxu0 0.0
  %3543 = vmatpush1.msra.mxu0 %v3537
  %3544 = vmatprep.subr.mxu0 0.0
  %3545 = vmatpush1.msra.mxu0 0.0
  %3546 = vmatprep.subr.mxu0 0.0
  %3547 = vmatpush1.msra.mxu0 0.0
  %3548 = vmatprep.subr.mxu0 0.0
  %3549 = vmatpush1.msra.mxu0 0.0
  %3550 = vmatprep.subr.mxu0 0.0
  %3551 = vmatpush1.msra.mxu0 0.0
  %3552 = vmatprep.subr.mxu0 0.0
  %3553 = vmatpush1.msra.mxu0 0.0
  %3554 = vmatprep.subr.mxu0 0.0
  %3555 = vmatpush1.msra.mxu0 0.0
  %3556 = vmatprep.subr.mxu0 0.0
  %3557 = vmatpush1.msra.mxu0 0.0
  %3558 = vmatprep.subr.mxu0 0.0
  %3559 = vmatpush1.msra.mxu0 0.0
  %3560 = vmatprep.subr.mxu0 0.0
  %3561 = vmatpush1.msra.mxu0 0.0
  %3562 = vmatprep.subr.mxu0 0.0
  %3563 = vmatpush1.msra.mxu0 0.0
  %3564 = vmatprep.subr.mxu0 0.0
  %3565 = vmatpush1.msra.mxu0 0.0
  %3566 = vmatprep.subr.mxu0 0.0
  %3567 = vmatpush1.msra.mxu0 0.0
  %3568 = vmatprep.subr.mxu0 0.0
  %3569 = vmatpush1.msra.mxu0 0.0
  %3570 = vmatprep.subr.mxu0 0.0
  %3571 = vmatpush1.msra.mxu0 0.0
  %3572 = vmatprep.subr.mxu0 0.0
  %3573 = vmatpush1.msra.mxu0 0.0
  %3574 = vmatprep.subr.mxu0 0.0
  %3575 = vmatpush1.msra.mxu0 0.0
  %3576 = vmatprep.subr.mxu0 0.0
  %3577 = vmatpush1.msra.mxu0 0.0
  %3578 = vmatprep.subr.mxu0 0.0
  %3579 = vmatpush1.msra.mxu0 0.0
  %3580 = vmatprep.subr.mxu0 0.0
  %3581 = vmatpush1.msra.mxu0 0.0
  %3582 = vmatprep.subr.mxu0 0.0
  %3583 = vmatpush1.msra.mxu0 0.0
  %3584 = vmatprep.subr.mxu0 0.0
  %3585 = vmatpush1.msra.mxu0 0.0
  %3586 = vmatprep.subr.mxu0 0.0
  %3587 = vmatpush1.msra.mxu0 0.0
  %3588 = vmatprep.subr.mxu0 0.0
  %3589 = vmatpush1.msra.mxu0 0.0
  %3590 = vmatprep.subr.mxu0 0.0
  %3591 = vmatpush1.msra.mxu0 0.0
  %3592 = vmatprep.subr.mxu0 0.0
  %3593 = vmatpush1.msra.mxu0 0.0
  %3594 = vmatprep.subr.mxu0 0.0
  %3595 = vmatpush1.msra.mxu0 0.0
  %3596 = vmatprep.subr.mxu0 0.0
  %3597 = vmatpush1.msra.mxu0 0.0
  %3598 = vmatprep.subr.mxu0 0.0
  %3599 = vmatpush1.msra.mxu0 0.0
  %3600 = vmatprep.subr.mxu0 0.0
  %3601 = vmatpush1.msra.mxu0 0.0
  %3602 = vmatprep.subr.mxu0 0.0
  %3603 = vmatpush1.msra.mxu0 0.0
  %3604 = vmatprep.subr.mxu0 0.0
  %3605 = vmatpush1.msra.mxu0 0.0
  %3606 = vmatprep.mubr.f32.mxu0 0.0
  %3607 = vmatmul.mubr.f32.gmra.mrb[0].mxu0 %v3540
  %v3608 = vpop.f32.mrb[0].mxu0
  %v3609 = vadd.f32 0.0, %v3608
  %v3610 = vpop.f32.mrb[0].mxu0
  %3611 = vdwg.mxu0
  %3612 = vrot.lane.b32.xlu0 %v115, 48
  %v3613 = vpop.permute.xlu0 %3612
  %v3616 = vsel %vm145, %v3529, 0
  %3618 = vmatprep.subr.mxu0 0.0
  %3619 = vmatpush1.msra.mxu0 %v3613
  %3620 = vmatprep.subr.mxu0 0.0
  %3621 = vmatpush1.msra.mxu0 0.0
  %3622 = vmatprep.subr.mxu0 0.0
  %3623 = vmatpush1.msra.mxu0 0.0
  %3624 = vmatprep.subr.mxu0 0.0
  %3625 = vmatpush1.msra.mxu0 0.0
  %3626 = vmatprep.subr.mxu0 0.0
  %3627 = vmatpush1.msra.mxu0 0.0
  %3628 = vmatprep.subr.mxu0 0.0
  %3629 = vmatpush1.msra.mxu0 0.0
  %3630 = vmatprep.subr.mxu0 0.0
  %3631 = vmatpush1.msra.mxu0 0.0
  %3632 = vmatprep.subr.mxu0 0.0
  %3633 = vmatpush1.msra.mxu0 0.0
  %3634 = vmatprep.subr.mxu0 0.0
  %3635 = vmatpush1.msra.mxu0 0.0
  %3636 = vmatprep.subr.mxu0 0.0
  %3637 = vmatpush1.msra.mxu0 0.0
  %3638 = vmatprep.subr.mxu0 0.0
  %3639 = vmatpush1.msra.mxu0 0.0
  %3640 = vmatprep.subr.mxu0 0.0
  %3641 = vmatpush1.msra.mxu0 0.0
  %3642 = vmatprep.subr.mxu0 0.0
  %3643 = vmatpush1.msra.mxu0 0.0
  %3644 = vmatprep.subr.mxu0 0.0
  %3645 = vmatpush1.msra.mxu0 0.0
  %3646 = vmatprep.subr.mxu0 0.0
  %3647 = vmatpush1.msra.mxu0 0.0
  %3648 = vmatprep.subr.mxu0 0.0
  %3649 = vmatpush1.msra.mxu0 0.0
  %3650 = vmatprep.subr.mxu0 0.0
  %3651 = vmatpush1.msra.mxu0 0.0
  %3652 = vmatprep.subr.mxu0 0.0
  %3653 = vmatpush1.msra.mxu0 0.0
  %3654 = vmatprep.subr.mxu0 0.0
  %3655 = vmatpush1.msra.mxu0 0.0
  %3656 = vmatprep.subr.mxu0 0.0
  %3657 = vmatpush1.msra.mxu0 0.0
  %3658 = vmatprep.subr.mxu0 0.0
  %3659 = vmatpush1.msra.mxu0 0.0
  %3660 = vmatprep.subr.mxu0 0.0
  %3661 = vmatpush1.msra.mxu0 0.0
  %3662 = vmatprep.subr.mxu0 0.0
  %3663 = vmatpush1.msra.mxu0 0.0
  %3664 = vmatprep.subr.mxu0 0.0
  %3665 = vmatpush1.msra.mxu0 0.0
  %3666 = vmatprep.subr.mxu0 0.0
  %3667 = vmatpush1.msra.mxu0 0.0
  %3668 = vmatprep.subr.mxu0 0.0
  %3669 = vmatpush1.msra.mxu0 0.0
  %3670 = vmatprep.subr.mxu0 0.0
  %3671 = vmatpush1.msra.mxu0 0.0
  %3672 = vmatprep.subr.mxu0 0.0
  %3673 = vmatpush1.msra.mxu0 0.0
  %3674 = vmatprep.subr.mxu0 0.0
  %3675 = vmatpush1.msra.mxu0 0.0
  %3676 = vmatprep.subr.mxu0 0.0
  %3677 = vmatpush1.msra.mxu0 0.0
  %3678 = vmatprep.subr.mxu0 0.0
  %3679 = vmatpush1.msra.mxu0 0.0
  %3680 = vmatprep.subr.mxu0 0.0
  %3681 = vmatpush1.msra.mxu0 0.0
  %3682 = vmatprep.mubr.f32.mxu0 0.0
  %3683 = vmatmul.mubr.f32.gmra.mrb[0].mxu0 %v3616
  %v3684 = vpop.f32.mrb[0].mxu0
  %v3685 = vadd.f32 0.0, %v3684
  %v3686 = vpop.f32.mrb[0].mxu0
  %3687 = vdwg.mxu0
  %3688 = vrot.lane.b32.xlu0 %v120, 48
  %v3689 = vpop.permute.xlu0 %3688
  %v3692 = vsel %vm145, %v3530, 0
  %3694 = vmatprep.subr.mxu0 0.0
  %3695 = vmatpush1.msra.mxu0 %v3689
  %3696 = vmatprep.subr.mxu0 0.0
  %3697 = vmatpush1.msra.mxu0 0.0
  %3698 = vmatprep.subr.mxu0 0.0
  %3699 = vmatpush1.msra.mxu0 0.0
  %3700 = vmatprep.subr.mxu0 0.0
  %3701 = vmatpush1.msra.mxu0 0.0
  %3702 = vmatprep.subr.mxu0 0.0
  %3703 = vmatpush1.msra.mxu0 0.0
  %3704 = vmatprep.subr.mxu0 0.0
  %3705 = vmatpush1.msra.mxu0 0.0
  %3706 = vmatprep.subr.mxu0 0.0
  %3707 = vmatpush1.msra.mxu0 0.0
  %3708 = vmatprep.subr.mxu0 0.0
  %3709 = vmatpush1.msra.mxu0 0.0
  %3710 = vmatprep.subr.mxu0 0.0
  %3711 = vmatpush1.msra.mxu0 0.0
  %3712 = vmatprep.subr.mxu0 0.0
  %3713 = vmatpush1.msra.mxu0 0.0
  %3714 = vmatprep.subr.mxu0 0.0
  %3715 = vmatpush1.msra.mxu0 0.0
  %3716 = vmatprep.subr.mxu0 0.0
  %3717 = vmatpush1.msra.mxu0 0.0
  %3718 = vmatprep.subr.mxu0 0.0
  %3719 = vmatpush1.msra.mxu0 0.0
  %3720 = vmatprep.subr.mxu0 0.0
  %3721 = vmatpush1.msra.mxu0 0.0
  %3722 = vmatprep.subr.mxu0 0.0
  %3723 = vmatpush1.msra.mxu0 0.0
  %3724 = vmatprep.subr.mxu0 0.0
  %3725 = vmatpush1.msra.mxu0 0.0
  %3726 = vmatprep.subr.mxu0 0.0
  %3727 = vmatpush1.msra.mxu0 0.0
  %3728 = vmatprep.subr.mxu0 0.0
  %3729 = vmatpush1.msra.mxu0 0.0
  %3730 = vmatprep.subr.mxu0 0.0
  %3731 = vmatpush1.msra.mxu0 0.0
  %3732 = vmatprep.subr.mxu0 0.0
  %3733 = vmatpush1.msra.mxu0 0.0
  %3734 = vmatprep.subr.mxu0 0.0
  %3735 = vmatpush1.msra.mxu0 0.0
  %3736 = vmatprep.subr.mxu0 0.0
  %3737 = vmatpush1.msra.mxu0 0.0
  %3738 = vmatprep.subr.mxu0 0.0
  %3739 = vmatpush1.msra.mxu0 0.0
  %3740 = vmatprep.subr.mxu0 0.0
  %3741 = vmatpush1.msra.mxu0 0.0
  %3742 = vmatprep.subr.mxu0 0.0
  %3743 = vmatpush1.msra.mxu0 0.0
  %3744 = vmatprep.subr.mxu0 0.0
  %3745 = vmatpush1.msra.mxu0 0.0
  %3746 = vmatprep.subr.mxu0 0.0
  %3747 = vmatpush1.msra.mxu0 0.0
  %3748 = vmatprep.subr.mxu0 0.0
  %3749 = vmatpush1.msra.mxu0 0.0
  %3750 = vmatprep.subr.mxu0 0.0
  %3751 = vmatpush1.msra.mxu0 0.0
  %3752 = vmatprep.subr.mxu0 0.0
  %3753 = vmatpush1.msra.mxu0 0.0
  %3754 = vmatprep.subr.mxu0 0.0
  %3755 = vmatpush1.msra.mxu0 0.0
  %3756 = vmatprep.subr.mxu0 0.0
  %3757 = vmatpush1.msra.mxu0 0.0
  %3758 = vmatprep.mubr.f32.mxu0 0.0
  %3759 = vmatmul.mubr.f32.gmra.mrb[0].mxu0 %v3692
  %v3760 = vpop.f32.mrb[0].mxu0
  %v3761 = vadd.f32 0.0, %v3760
  %v3762 = vpop.f32.mrb[0].mxu0
  %3763 = vdwg.mxu0
  %3764 = vrot.lane.b32.xlu0 %v123, 48
  %v3765 = vpop.permute.xlu0 %3764
  %v3768 = vsel %vm145, %v3531, 0
  %3770 = vmatprep.subr.mxu0 0.0
  %3771 = vmatpush1.msra.mxu0 %v3765
  %3772 = vmatprep.subr.mxu0 0.0
  %3773 = vmatpush1.msra.mxu0 0.0
  %3774 = vmatprep.subr.mxu0 0.0
  %3775 = vmatpush1.msra.mxu0 0.0
  %3776 = vmatprep.subr.mxu0 0.0
  %3777 = vmatpush1.msra.mxu0 0.0
  %3778 = vmatprep.subr.mxu0 0.0
  %3779 = vmatpush1.msra.mxu0 0.0
  %3780 = vmatprep.subr.mxu0 0.0
  %3781 = vmatpush1.msra.mxu0 0.0
  %3782 = vmatprep.subr.mxu0 0.0
  %3783 = vmatpush1.msra.mxu0 0.0
  %3784 = vmatprep.subr.mxu0 0.0
  %3785 = vmatpush1.msra.mxu0 0.0
  %3786 = vmatprep.subr.mxu0 0.0
  %3787 = vmatpush1.msra.mxu0 0.0
  %3788 = vmatprep.subr.mxu0 0.0
  %3789 = vmatpush1.msra.mxu0 0.0
  %3790 = vmatprep.subr.mxu0 0.0
  %3791 = vmatpush1.msra.mxu0 0.0
  %3792 = vmatprep.subr.mxu0 0.0
  %3793 = vmatpush1.msra.mxu0 0.0
  %3794 = vmatprep.subr.mxu0 0.0
  %3795 = vmatpush1.msra.mxu0 0.0
  %3796 = vmatprep.subr.mxu0 0.0
  %3797 = vmatpush1.msra.mxu0 0.0
  %3798 = vmatprep.subr.mxu0 0.0
  %3799 = vmatpush1.msra.mxu0 0.0
  %3800 = vmatprep.subr.mxu0 0.0
  %3801 = vmatpush1.msra.mxu0 0.0
  %3802 = vmatprep.subr.mxu0 0.0
  %3803 = vmatpush1.msra.mxu0 0.0
  %3804 = vmatprep.subr.mxu0 0.0
  %3805 = vmatpush1.msra.mxu0 0.0
  %3806 = vmatprep.subr.mxu0 0.0
  %3807 = vmatpush1.msra.mxu0 0.0
  %3808 = vmatprep.subr.mxu0 0.0
  %3809 = vmatpush1.msra.mxu0 0.0
  %3810 = vmatprep.subr.mxu0 0.0
  %3811 = vmatpush1.msra.mxu0 0.0
  %3812 = vmatprep.subr.mxu0 0.0
  %3813 = vmatpush1.msra.mxu0 0.0
  %3814 = vmatprep.subr.mxu0 0.0
  %3815 = vmatpush1.msra.mxu0 0.0
  %3816 = vmatprep.subr.mxu0 0.0
  %3817 = vmatpush1.msra.mxu0 0.0
  %3818 = vmatprep.subr.mxu0 0.0
  %3819 = vmatpush1.msra.mxu0 0.0
  %3820 = vmatprep.subr.mxu0 0.0
  %3821 = vmatpush1.msra.mxu0 0.0
  %3822 = vmatprep.subr.mxu0 0.0
  %3823 = vmatpush1.msra.mxu0 0.0
  %3824 = vmatprep.subr.mxu0 0.0
  %3825 = vmatpush1.msra.mxu0 0.0
  %3826 = vmatprep.subr.mxu0 0.0
  %3827 = vmatpush1.msra.mxu0 0.0
  %3828 = vmatprep.subr.mxu0 0.0
  %3829 = vmatpush1.msra.mxu0 0.0
  %3830 = vmatprep.subr.mxu0 0.0
  %3831 = vmatpush1.msra.mxu0 0.0
  %3832 = vmatprep.subr.mxu0 0.0
  %3833 = vmatpush1.msra.mxu0 0.0
  %3834 = vmatprep.mubr.f32.mxu0 0.0
  %3835 = vmatmul.mubr.f32.gmra.mrb[0].mxu0 %v3768
  %v3836 = vpop.f32.mrb[0].mxu0
  %v3837 = vadd.f32 0.0, %v3836
  %v3838 = vpop.f32.mrb[0].mxu0
  %3839 = vdwg.mxu0
  %3840 = vrot.lane.b32.xlu0 %v128, 48
  %v3841 = vpop.permute.xlu0 %3840
  %v3844 = vsel %vm145, %v3532, 0
  %3846 = vmatprep.subr.mxu0 0.0
  %3847 = vmatpush1.msra.mxu0 %v3841
  %3848 = vmatprep.subr.mxu0 0.0
  %3849 = vmatpush1.msra.mxu0 0.0
  %3850 = vmatprep.subr.mxu0 0.0
  %3851 = vmatpush1.msra.mxu0 0.0
  %3852 = vmatprep.subr.mxu0 0.0
  %3853 = vmatpush1.msra.mxu0 0.0
  %3854 = vmatprep.subr.mxu0 0.0
  %3855 = vmatpush1.msra.mxu0 0.0
  %3856 = vmatprep.subr.mxu0 0.0
  %3857 = vmatpush1.msra.mxu0 0.0
  %3858 = vmatprep.subr.mxu0 0.0
  %3859 = vmatpush1.msra.mxu0 0.0
  %3860 = vmatprep.subr.mxu0 0.0
  %3861 = vmatpush1.msra.mxu0 0.0
  %3862 = vmatprep.subr.mxu0 0.0
  %3863 = vmatpush1.msra.mxu0 0.0
  %3864 = vmatprep.subr.mxu0 0.0
  %3865 = vmatpush1.msra.mxu0 0.0
  %3866 = vmatprep.subr.mxu0 0.0
  %3867 = vmatpush1.msra.mxu0 0.0
  %3868 = vmatprep.subr.mxu0 0.0
  %3869 = vmatpush1.msra.mxu0 0.0
  %3870 = vmatprep.subr.mxu0 0.0
  %3871 = vmatpush1.msra.mxu0 0.0
  %3872 = vmatprep.subr.mxu0 0.0
  %3873 = vmatpush1.msra.mxu0 0.0
  %3874 = vmatprep.subr.mxu0 0.0
  %3875 = vmatpush1.msra.mxu0 0.0
  %3876 = vmatprep.subr.mxu0 0.0
  %3877 = vmatpush1.msra.mxu0 0.0
  %3878 = vmatprep.subr.mxu0 0.0
  %3879 = vmatpush1.msra.mxu0 0.0
  %3880 = vmatprep.subr.mxu0 0.0
  %3881 = vmatpush1.msra.mxu0 0.0
  %3882 = vmatprep.subr.mxu0 0.0
  %3883 = vmatpush1.msra.mxu0 0.0
  %3884 = vmatprep.subr.mxu0 0.0
  %3885 = vmatpush1.msra.mxu0 0.0
  %3886 = vmatprep.subr.mxu0 0.0
  %3887 = vmatpush1.msra.mxu0 0.0
  %3888 = vmatprep.subr.mxu0 0.0
  %3889 = vmatpush1.msra.mxu0 0.0
  %3890 = vmatprep.subr.mxu0 0.0
  %3891 = vmatpush1.msra.mxu0 0.0
  %3892 = vmatprep.subr.mxu0 0.0
  %3893 = vmatpush1.msra.mxu0 0.0
  %3894 = vmatprep.subr.mxu0 0.0
  %3895 = vmatpush1.msra.mxu0 0.0
  %3896 = vmatprep.subr.mxu0 0.0
  %3897 = vmatpush1.msra.mxu0 0.0
  %3898 = vmatprep.subr.mxu0 0.0
  %3899 = vmatpush1.msra.mxu0 0.0
  %3900 = vmatprep.subr.mxu0 0.0
  %3901 = vmatpush1.msra.mxu0 0.0
  %3902 = vmatprep.subr.mxu0 0.0
  %3903 = vmatpush1.msra.mxu0 0.0
  %3904 = vmatprep.subr.mxu0 0.0
  %3905 = vmatpush1.msra.mxu0 0.0
  %3906 = vmatprep.subr.mxu0 0.0
  %3907 = vmatpush1.msra.mxu0 0.0
  %3908 = vmatprep.subr.mxu0 0.0
  %3909 = vmatpush1.msra.mxu0 0.0
  %3910 = vmatprep.mubr.f32.mxu0 0.0
  %3911 = vmatmul.mubr.f32.gmra.mrb[0].mxu0 %v3844
  %v3912 = vpop.f32.mrb[0].mxu0
  %v3913 = vadd.f32 0.0, %v3912
  %v3914 = vpop.f32.mrb[0].mxu0
  %3915 = vdwg.mxu0
  %3916 = vrot.lane.b32.xlu0 %v131, 48
  %v3917 = vpop.permute.xlu0 %3916
  %v3920 = vsel %vm145, %v3533, 0
  %3922 = vmatprep.subr.mxu0 0.0
  %3923 = vmatpush1.msra.mxu0 %v3917
  %3924 = vmatprep.subr.mxu0 0.0
  %3925 = vmatpush1.msra.mxu0 0.0
  %3926 = vmatprep.subr.mxu0 0.0
  %3927 = vmatpush1.msra.mxu0 0.0
  %3928 = vmatprep.subr.mxu0 0.0
  %3929 = vmatpush1.msra.mxu0 0.0
  %3930 = vmatprep.subr.mxu0 0.0
  %3931 = vmatpush1.msra.mxu0 0.0
  %3932 = vmatprep.subr.mxu0 0.0
  %3933 = vmatpush1.msra.mxu0 0.0
  %3934 = vmatprep.subr.mxu0 0.0
  %3935 = vmatpush1.msra.mxu0 0.0
  %3936 = vmatprep.subr.mxu0 0.0
  %3937 = vmatpush1.msra.mxu0 0.0
  %3938 = vmatprep.subr.mxu0 0.0
  %3939 = vmatpush1.msra.mxu0 0.0
  %3940 = vmatprep.subr.mxu0 0.0
  %3941 = vmatpush1.msra.mxu0 0.0
  %3942 = vmatprep.subr.mxu0 0.0
  %3943 = vmatpush1.msra.mxu0 0.0
  %3944 = vmatprep.subr.mxu0 0.0
  %3945 = vmatpush1.msra.mxu0 0.0
  %3946 = vmatprep.subr.mxu0 0.0
  %3947 = vmatpush1.msra.mxu0 0.0
  %3948 = vmatprep.subr.mxu0 0.0
  %3949 = vmatpush1.msra.mxu0 0.0
  %3950 = vmatprep.subr.mxu0 0.0
  %3951 = vmatpush1.msra.mxu0 0.0
  %3952 = vmatprep.subr.mxu0 0.0
  %3953 = vmatpush1.msra.mxu0 0.0
  %3954 = vmatprep.subr.mxu0 0.0
  %3955 = vmatpush1.msra.mxu0 0.0
  %3956 = vmatprep.subr.mxu0 0.0
  %3957 = vmatpush1.msra.mxu0 0.0
  %3958 = vmatprep.subr.mxu0 0.0
  %3959 = vmatpush1.msra.mxu0 0.0
  %3960 = vmatprep.subr.mxu0 0.0
  %3961 = vmatpush1.msra.mxu0 0.0
  %3962 = vmatprep.subr.mxu0 0.0
  %3963 = vmatpush1.msra.mxu0 0.0
  %3964 = vmatprep.subr.mxu0 0.0
  %3965 = vmatpush1.msra.mxu0 0.0
  %3966 = vmatprep.subr.mxu0 0.0
  %3967 = vmatpush1.msra.mxu0 0.0
  %3968 = vmatprep.subr.mxu0 0.0
  %3969 = vmatpush1.msra.mxu0 0.0
  %3970 = vmatprep.subr.mxu0 0.0
  %3971 = vmatpush1.msra.mxu0 0.0
  %3972 = vmatprep.subr.mxu0 0.0
  %3973 = vmatpush1.msra.mxu0 0.0
  %3974 = vmatprep.subr.mxu0 0.0
  %3975 = vmatpush1.msra.mxu0 0.0
  %3976 = vmatprep.subr.mxu0 0.0
  %3977 = vmatpush1.msra.mxu0 0.0
  %3978 = vmatprep.subr.mxu0 0.0
  %3979 = vmatpush1.msra.mxu0 0.0
  %3980 = vmatprep.subr.mxu0 0.0
  %3981 = vmatpush1.msra.mxu0 0.0
  %3982 = vmatprep.subr.mxu0 0.0
  %3983 = vmatpush1.msra.mxu0 0.0
  %3984 = vmatprep.subr.mxu0 0.0
  %3985 = vmatpush1.msra.mxu0 0.0
  %3986 = vmatprep.mubr.f32.mxu0 0.0
  %3987 = vmatmul.mubr.f32.gmra.mrb[0].mxu0 %v3920
  %v3988 = vpop.f32.mrb[0].mxu0
  %v3989 = vadd.f32 0.0, %v3988
  %v3990 = vpop.f32.mrb[0].mxu0
  %3991 = vdwg.mxu0
  %3992 = vrot.lane.b32.xlu0 %v136, 48
  %v3993 = vpop.permute.xlu0 %3992
  %v3996 = vsel %vm145, %v3534, 0
  %3998 = vmatprep.subr.mxu0 0.0
  %3999 = vmatpush1.msra.mxu0 %v3993
  %4000 = vmatprep.subr.mxu0 0.0
  %4001 = vmatpush1.msra.mxu0 0.0
  %4002 = vmatprep.subr.mxu0 0.0
  %4003 = vmatpush1.msra.mxu0 0.0
  %4004 = vmatprep.subr.mxu0 0.0
  %4005 = vmatpush1.msra.mxu0 0.0
  %4006 = vmatprep.subr.mxu0 0.0
  %4007 = vmatpush1.msra.mxu0 0.0
  %4008 = vmatprep.subr.mxu0 0.0
  %4009 = vmatpush1.msra.mxu0 0.0
  %4010 = vmatprep.subr.mxu0 0.0
  %4011 = vmatpush1.msra.mxu0 0.0
  %4012 = vmatprep.subr.mxu0 0.0
  %4013 = vmatpush1.msra.mxu0 0.0
  %4014 = vmatprep.subr.mxu0 0.0
  %4015 = vmatpush1.msra.mxu0 0.0
  %4016 = vmatprep.subr.mxu0 0.0
  %4017 = vmatpush1.msra.mxu0 0.0
  %4018 = vmatprep.subr.mxu0 0.0
  %4019 = vmatpush1.msra.mxu0 0.0
  %4020 = vmatprep.subr.mxu0 0.0
  %4021 = vmatpush1.msra.mxu0 0.0
  %4022 = vmatprep.subr.mxu0 0.0
  %4023 = vmatpush1.msra.mxu0 0.0
  %4024 = vmatprep.subr.mxu0 0.0
  %4025 = vmatpush1.msra.mxu0 0.0
  %4026 = vmatprep.subr.mxu0 0.0
  %4027 = vmatpush1.msra.mxu0 0.0
  %4028 = vmatprep.subr.mxu0 0.0
  %4029 = vmatpush1.msra.mxu0 0.0
  %4030 = vmatprep.subr.mxu0 0.0
  %4031 = vmatpush1.msra.mxu0 0.0
  %4032 = vmatprep.subr.mxu0 0.0
  %4033 = vmatpush1.msra.mxu0 0.0
  %4034 = vmatprep.subr.mxu0 0.0
  %4035 = vmatpush1.msra.mxu0 0.0
  %4036 = vmatprep.subr.mxu0 0.0
  %4037 = vmatpush1.msra.mxu0 0.0
  %4038 = vmatprep.subr.mxu0 0.0
  %4039 = vmatpush1.msra.mxu0 0.0
  %4040 = vmatprep.subr.mxu0 0.0
  %4041 = vmatpush1.msra.mxu0 0.0
  %4042 = vmatprep.subr.mxu0 0.0
  %4043 = vmatpush1.msra.mxu0 0.0
  %4044 = vmatprep.subr.mxu0 0.0
  %4045 = vmatpush1.msra.mxu0 0.0
  %4046 = vmatprep.subr.mxu0 0.0
  %4047 = vmatpush1.msra.mxu0 0.0
  %4048 = vmatprep.subr.mxu0 0.0
  %4049 = vmatpush1.msra.mxu0 0.0
  %4050 = vmatprep.subr.mxu0 0.0
  %4051 = vmatpush1.msra.mxu0 0.0
  %4052 = vmatprep.subr.mxu0 0.0
  %4053 = vmatpush1.msra.mxu0 0.0
  %4054 = vmatprep.subr.mxu0 0.0
  %4055 = vmatpush1.msra.mxu0 0.0
  %4056 = vmatprep.subr.mxu0 0.0
  %4057 = vmatpush1.msra.mxu0 0.0
  %4058 = vmatprep.subr.mxu0 0.0
  %4059 = vmatpush1.msra.mxu0 0.0
  %4060 = vmatprep.subr.mxu0 0.0
  %4061 = vmatpush1.msra.mxu0 0.0
  %4062 = vmatprep.mubr.f32.mxu0 0.0
  %4063 = vmatmul.mubr.f32.gmra.mrb[0].mxu0 %v3996
  %v4064 = vpop.f32.mrb[0].mxu0
  %v4065 = vadd.f32 0.0, %v4064
  %v4066 = vpop.f32.mrb[0].mxu0
  %4067 = vdwg.mxu0
  %4068 = vrot.lane.b32.xlu0 %v139, 48
  %v4069 = vpop.permute.xlu0 %4068
  %v4072 = vsel %vm145, %v3535, 0
  %4074 = vmatprep.subr.mxu0 0.0
  %4075 = vmatpush1.msra.mxu0 %v4069
  %4076 = vmatprep.subr.mxu0 0.0
  %4077 = vmatpush1.msra.mxu0 0.0
  %4078 = vmatprep.subr.mxu0 0.0
  %4079 = vmatpush1.msra.mxu0 0.0
  %4080 = vmatprep.subr.mxu0 0.0
  %4081 = vmatpush1.msra.mxu0 0.0
  %4082 = vmatprep.subr.mxu0 0.0
  %4083 = vmatpush1.msra.mxu0 0.0
  %4084 = vmatprep.subr.mxu0 0.0
  %4085 = vmatpush1.msra.mxu0 0.0
  %4086 = vmatprep.subr.mxu0 0.0
  %4087 = vmatpush1.msra.mxu0 0.0
  %4088 = vmatprep.subr.mxu0 0.0
  %4089 = vmatpush1.msra.mxu0 0.0
  %4090 = vmatprep.subr.mxu0 0.0
  %4091 = vmatpush1.msra.mxu0 0.0
  %4092 = vmatprep.subr.mxu0 0.0
  %4093 = vmatpush1.msra.mxu0 0.0
  %4094 = vmatprep.subr.mxu0 0.0
  %4095 = vmatpush1.msra.mxu0 0.0
  %4096 = vmatprep.subr.mxu0 0.0
  %4097 = vmatpush1.msra.mxu0 0.0
  %4098 = vmatprep.subr.mxu0 0.0
  %4099 = vmatpush1.msra.mxu0 0.0
  %4100 = vmatprep.subr.mxu0 0.0
  %4101 = vmatpush1.msra.mxu0 0.0
  %4102 = vmatprep.subr.mxu0 0.0
  %4103 = vmatpush1.msra.mxu0 0.0
  %4104 = vmatprep.subr.mxu0 0.0
  %4105 = vmatpush1.msra.mxu0 0.0
  %4106 = vmatprep.subr.mxu0 0.0
  %4107 = vmatpush1.msra.mxu0 0.0
  %4108 = vmatprep.subr.mxu0 0.0
  %4109 = vmatpush1.msra.mxu0 0.0
  %4110 = vmatprep.subr.mxu0 0.0
  %4111 = vmatpush1.msra.mxu0 0.0
  %4112 = vmatprep.subr.mxu0 0.0
  %4113 = vmatpush1.msra.mxu0 0.0
  %4114 = vmatprep.subr.mxu0 0.0
  %4115 = vmatpush1.msra.mxu0 0.0
  %4116 = vmatprep.subr.mxu0 0.0
  %4117 = vmatpush1.msra.mxu0 0.0
  %4118 = vmatprep.subr.mxu0 0.0
  %4119 = vmatpush1.msra.mxu0 0.0
  %4120 = vmatprep.subr.mxu0 0.0
  %4121 = vmatpush1.msra.mxu0 0.0
  %4122 = vmatprep.subr.mxu0 0.0
  %4123 = vmatpush1.msra.mxu0 0.0
  %4124 = vmatprep.subr.mxu0 0.0
  %4125 = vmatpush1.msra.mxu0 0.0
  %4126 = vmatprep.subr.mxu0 0.0
  %4127 = vmatpush1.msra.mxu0 0.0
  %4128 = vmatprep.subr.mxu0 0.0
  %4129 = vmatpush1.msra.mxu0 0.0
  %4130 = vmatprep.subr.mxu0 0.0
  %4131 = vmatpush1.msra.mxu0 0.0
  %4132 = vmatprep.subr.mxu0 0.0
  %4133 = vmatpush1.msra.mxu0 0.0
  %4134 = vmatprep.subr.mxu0 0.0
  %4135 = vmatpush1.msra.mxu0 0.0
  %4136 = vmatprep.subr.mxu0 0.0
  %4137 = vmatpush1.msra.mxu0 0.0
  %4138 = vmatprep.mubr.f32.mxu0 0.0
  %4139 = vmatmul.mubr.f32.gmra.mrb[0].mxu0 %v4072
  %v4140 = vpop.f32.mrb[0].mxu0
  %v4141 = vadd.f32 0.0, %v4140
  %v4142 = vpop.f32.mrb[0].mxu0
  %4143 = vdwg.mxu0
  %4152 = vrot.lane.b32.xlu0 %v3609, 16
  %v4153 = vpop.permute.xlu0 %4152
  %4154 = vrot.lane.b32.xlu0 %v3685, 16
  %v4155 = vpop.permute.xlu0 %4154
  %4156 = vrot.lane.b32.xlu0 %v3761, 16
  %v4157 = vpop.permute.xlu0 %4156
  %4158 = vrot.lane.b32.xlu0 %v3837, 16
  %v4159 = vpop.permute.xlu0 %4158
  %4160 = vrot.lane.b32.xlu0 %v3913, 16
  %v4161 = vpop.permute.xlu0 %4160
  %4162 = vrot.lane.b32.xlu0 %v3989, 16
  %v4163 = vpop.permute.xlu0 %4162
  %4164 = vrot.lane.b32.xlu0 %v4065, 16
  %v4165 = vpop.permute.xlu0 %4164
  %4166 = vrot.lane.b32.xlu0 %v4141, 16
  %v4167 = vpop.permute.xlu0 %4166
  %vm4176 = vcmask 195712
  %4177 = vst.msk [vmem:[#allocation2] sm:$0xff] %vm4176, %v4153
  %4178 = vst.msk [vmem:[#allocation2 + $0x8] sm:$0xff] %vm4176, %v4155
  %4179 = vst.msk [vmem:[#allocation2 + $0x10] sm:$0xff] %vm4176, %v4157
  %4180 = vst.msk [vmem:[#allocation2 + $0x18] sm:$0xff] %vm4176, %v4159
  %4181 = vst.msk [vmem:[#allocation2 + $0x20] sm:$0xff] %vm4176, %v4161
  %4182 = vst.msk [vmem:[#allocation2 + $0x28] sm:$0xff] %vm4176, %v4163
  %4183 = vst.msk [vmem:[#allocation2 + $0x30] sm:$0xff] %vm4176, %v4165
  %4184 = vst.msk [vmem:[#allocation2 + $0x38] sm:$0xff] %vm4176, %v4167
  %4185 = vrot.lane.b32.xlu0 %v112, 104
  %v4186 = vpop.permute.xlu0 %4185
  %4187 = vrot.lane.b32.xlu0 %v112, 72
  %v4188 = vpop.permute.xlu0 %4187
  %v4189 = vsel %vm145, %v4186, 0
  %v4191 = vsel %vm145, %v4188, 0
  %4193 = vmatprep.subr.mxu0 0.0
  %4194 = vmatpush1.xpose.msra.mxu0 %v4191
  %4195 = vmatprep.subr.mxu0 0.0
  %4196 = vmatpush1.xpose.msra.mxu0 0.0
  %4197 = vmatprep.subr.mxu0 0.0
  %4198 = vmatpush1.xpose.msra.mxu0 0.0
  %4199 = vmatprep.subr.mxu0 0.0
  %4200 = vmatpush1.xpose.msra.mxu0 0.0
  %4201 = vmatprep.subr.mxu0 0.0
  %4202 = vmatpush1.xpose.msra.mxu0 0.0
  %4203 = vmatprep.subr.mxu0 0.0
  %4204 = vmatpush1.xpose.msra.mxu0 0.0
  %4205 = vmatprep.subr.mxu0 0.0
  %4206 = vmatpush1.xpose.msra.mxu0 0.0
  %4207 = vmatprep.subr.mxu0 0.0
  %4208 = vmatpush1.xpose.msra.mxu0 0.0
  %4209 = vmatprep.subr.mxu0 0.0
  %4210 = vmatpush1.xpose.msra.mxu0 0.0
  %4211 = vmatprep.subr.mxu0 0.0
  %4212 = vmatpush1.xpose.msra.mxu0 0.0
  %4213 = vmatprep.subr.mxu0 0.0
  %4214 = vmatpush1.xpose.msra.mxu0 0.0
  %4215 = vmatprep.subr.mxu0 0.0
  %4216 = vmatpush1.xpose.msra.mxu0 0.0
  %4217 = vmatprep.subr.mxu0 0.0
  %4218 = vmatpush1.xpose.msra.mxu0 0.0
  %4219 = vmatprep.subr.mxu0 0.0
  %4220 = vmatpush1.xpose.msra.mxu0 0.0
  %4221 = vmatprep.subr.mxu0 0.0
  %4222 = vmatpush1.xpose.msra.mxu0 0.0
  %4223 = vmatprep.subr.mxu0 0.0
  %4224 = vmatpush1.xpose.msra.mxu0 0.0
  %4225 = vmatprep.subr.mxu0 0.0
  %4226 = vmatpush1.xpose.msra.mxu0 0.0
  %4227 = vmatprep.subr.mxu0 0.0
  %4228 = vmatpush1.xpose.msra.mxu0 0.0
  %4229 = vmatprep.subr.mxu0 0.0
  %4230 = vmatpush1.xpose.msra.mxu0 0.0
  %4231 = vmatprep.subr.mxu0 0.0
  %4232 = vmatpush1.xpose.msra.mxu0 0.0
  %4233 = vmatprep.subr.mxu0 0.0
  %4234 = vmatpush1.xpose.msra.mxu0 0.0
  %4235 = vmatprep.subr.mxu0 0.0
  %4236 = vmatpush1.xpose.msra.mxu0 0.0
  %4237 = vmatprep.subr.mxu0 0.0
  %4238 = vmatpush1.xpose.msra.mxu0 0.0
  %4239 = vmatprep.subr.mxu0 0.0
  %4240 = vmatpush1.xpose.msra.mxu0 0.0
  %4241 = vmatprep.subr.mxu0 0.0
  %4242 = vmatpush1.xpose.msra.mxu0 0.0
  %4243 = vmatprep.subr.mxu0 0.0
  %4244 = vmatpush1.xpose.msra.mxu0 0.0
  %4245 = vmatprep.subr.mxu0 0.0
  %4246 = vmatpush1.xpose.msra.mxu0 0.0
  %4247 = vmatprep.subr.mxu0 0.0
  %4248 = vmatpush1.xpose.msra.mxu0 0.0
  %4249 = vmatprep.subr.mxu0 0.0
  %4250 = vmatpush1.xpose.msra.mxu0 0.0
  %4251 = vmatprep.subr.mxu0 0.0
  %4252 = vmatpush1.xpose.msra.mxu0 0.0
  %4253 = vmatprep.subr.mxu0 0.0
  %4254 = vmatpush1.xpose.msra.mxu0 0.0
  %4255 = vmatprep.subr.mxu0 0.0
  %4256 = vmatpush1.xpose.msra.mxu0 0.0
  %4257 = vmatprep.mubr.f32.mxu0 0.0
  %4258 = vmatmul.mubr.f32.gmra.mrb[0].mxu0 %v4189
  %v4259 = vpop.f32.mrb[0].mxu0
  %v4260 = vadd.f32 0.0, %v4259
  %v4261 = vpop.f32.mrb[0].mxu0
  %4262 = vdwg.mxu0
  %4263 = vrot.lane.b32.xlu0 %v115, 104
  %v4264 = vpop.permute.xlu0 %4263
  %4265 = vrot.lane.b32.xlu0 %v115, 72
  %v4266 = vpop.permute.xlu0 %4265
  %v4267 = vsel %vm145, %v4264, 0
  %v4269 = vsel %vm145, %v4266, 0
  %4271 = vmatprep.subr.mxu0 0.0
  %4272 = vmatpush1.xpose.msra.mxu0 %v4269
  %4273 = vmatprep.subr.mxu0 0.0
  %4274 = vmatpush1.xpose.msra.mxu0 0.0
  %4275 = vmatprep.subr.mxu0 0.0
  %4276 = vmatpush1.xpose.msra.mxu0 0.0
  %4277 = vmatprep.subr.mxu0 0.0
  %4278 = vmatpush1.xpose.msra.mxu0 0.0
  %4279 = vmatprep.subr.mxu0 0.0
  %4280 = vmatpush1.xpose.msra.mxu0 0.0
  %4281 = vmatprep.subr.mxu0 0.0
  %4282 = vmatpush1.xpose.msra.mxu0 0.0
  %4283 = vmatprep.subr.mxu0 0.0
  %4284 = vmatpush1.xpose.msra.mxu0 0.0
  %4285 = vmatprep.subr.mxu0 0.0
  %4286 = vmatpush1.xpose.msra.mxu0 0.0
  %4287 = vmatprep.subr.mxu0 0.0
  %4288 = vmatpush1.xpose.msra.mxu0 0.0
  %4289 = vmatprep.subr.mxu0 0.0
  %4290 = vmatpush1.xpose.msra.mxu0 0.0
  %4291 = vmatprep.subr.mxu0 0.0
  %4292 = vmatpush1.xpose.msra.mxu0 0.0
  %4293 = vmatprep.subr.mxu0 0.0
  %4294 = vmatpush1.xpose.msra.mxu0 0.0
  %4295 = vmatprep.subr.mxu0 0.0
  %4296 = vmatpush1.xpose.msra.mxu0 0.0
  %4297 = vmatprep.subr.mxu0 0.0
  %4298 = vmatpush1.xpose.msra.mxu0 0.0
  %4299 = vmatprep.subr.mxu0 0.0
  %4300 = vmatpush1.xpose.msra.mxu0 0.0
  %4301 = vmatprep.subr.mxu0 0.0
  %4302 = vmatpush1.xpose.msra.mxu0 0.0
  %4303 = vmatprep.subr.mxu0 0.0
  %4304 = vmatpush1.xpose.msra.mxu0 0.0
  %4305 = vmatprep.subr.mxu0 0.0
  %4306 = vmatpush1.xpose.msra.mxu0 0.0
  %4307 = vmatprep.subr.mxu0 0.0
  %4308 = vmatpush1.xpose.msra.mxu0 0.0
  %4309 = vmatprep.subr.mxu0 0.0
  %4310 = vmatpush1.xpose.msra.mxu0 0.0
  %4311 = vmatprep.subr.mxu0 0.0
  %4312 = vmatpush1.xpose.msra.mxu0 0.0
  %4313 = vmatprep.subr.mxu0 0.0
  %4314 = vmatpush1.xpose.msra.mxu0 0.0
  %4315 = vmatprep.subr.mxu0 0.0
  %4316 = vmatpush1.xpose.msra.mxu0 0.0
  %4317 = vmatprep.subr.mxu0 0.0
  %4318 = vmatpush1.xpose.msra.mxu0 0.0
  %4319 = vmatprep.subr.mxu0 0.0
  %4320 = vmatpush1.xpose.msra.mxu0 0.0
  %4321 = vmatprep.subr.mxu0 0.0
  %4322 = vmatpush1.xpose.msra.mxu0 0.0
  %4323 = vmatprep.subr.mxu0 0.0
  %4324 = vmatpush1.xpose.msra.mxu0 0.0
  %4325 = vmatprep.subr.mxu0 0.0
  %4326 = vmatpush1.xpose.msra.mxu0 0.0
  %4327 = vmatprep.subr.mxu0 0.0
  %4328 = vmatpush1.xpose.msra.mxu0 0.0
  %4329 = vmatprep.subr.mxu0 0.0
  %4330 = vmatpush1.xpose.msra.mxu0 0.0
  %4331 = vmatprep.subr.mxu0 0.0
  %4332 = vmatpush1.xpose.msra.mxu0 0.0
  %4333 = vmatprep.subr.mxu0 0.0
  %4334 = vmatpush1.xpose.msra.mxu0 0.0
  %4335 = vmatprep.mubr.f32.mxu0 0.0
  %4336 = vmatmul.mubr.f32.gmra.mrb[0].mxu0 %v4267
  %v4337 = vpop.f32.mrb[0].mxu0
  %v4338 = vadd.f32 0.0, %v4337
  %v4339 = vpop.f32.mrb[0].mxu0
  %4340 = vdwg.mxu0
  %4341 = vrot.lane.b32.xlu0 %v120, 104
  %v4342 = vpop.permute.xlu0 %4341
  %4343 = vrot.lane.b32.xlu0 %v120, 72
  %v4344 = vpop.permute.xlu0 %4343
  %v4345 = vsel %vm145, %v4342, 0
  %v4347 = vsel %vm145, %v4344, 0
  %4349 = vmatprep.subr.mxu0 0.0
  %4350 = vmatpush1.xpose.msra.mxu0 %v4347
  %4351 = vmatprep.subr.mxu0 0.0
  %4352 = vmatpush1.xpose.msra.mxu0 0.0
  %4353 = vmatprep.subr.mxu0 0.0
  %4354 = vmatpush1.xpose.msra.mxu0 0.0
  %4355 = vmatprep.subr.mxu0 0.0
  %4356 = vmatpush1.xpose.msra.mxu0 0.0
  %4357 = vmatprep.subr.mxu0 0.0
  %4358 = vmatpush1.xpose.msra.mxu0 0.0
  %4359 = vmatprep.subr.mxu0 0.0
  %4360 = vmatpush1.xpose.msra.mxu0 0.0
  %4361 = vmatprep.subr.mxu0 0.0
  %4362 = vmatpush1.xpose.msra.mxu0 0.0
  %4363 = vmatprep.subr.mxu0 0.0
  %4364 = vmatpush1.xpose.msra.mxu0 0.0
  %4365 = vmatprep.subr.mxu0 0.0
  %4366 = vmatpush1.xpose.msra.mxu0 0.0
  %4367 = vmatprep.subr.mxu0 0.0
  %4368 = vmatpush1.xpose.msra.mxu0 0.0
  %4369 = vmatprep.subr.mxu0 0.0
  %4370 = vmatpush1.xpose.msra.mxu0 0.0
  %4371 = vmatprep.subr.mxu0 0.0
  %4372 = vmatpush1.xpose.msra.mxu0 0.0
  %4373 = vmatprep.subr.mxu0 0.0
  %4374 = vmatpush1.xpose.msra.mxu0 0.0
  %4375 = vmatprep.subr.mxu0 0.0
  %4376 = vmatpush1.xpose.msra.mxu0 0.0
  %4377 = vmatprep.subr.mxu0 0.0
  %4378 = vmatpush1.xpose.msra.mxu0 0.0
  %4379 = vmatprep.subr.mxu0 0.0
  %4380 = vmatpush1.xpose.msra.mxu0 0.0
  %4381 = vmatprep.subr.mxu0 0.0
  %4382 = vmatpush1.xpose.msra.mxu0 0.0
  %4383 = vmatprep.subr.mxu0 0.0
  %4384 = vmatpush1.xpose.msra.mxu0 0.0
  %4385 = vmatprep.subr.mxu0 0.0
  %4386 = vmatpush1.xpose.msra.mxu0 0.0
  %4387 = vmatprep.subr.mxu0 0.0
  %4388 = vmatpush1.xpose.msra.mxu0 0.0
  %4389 = vmatprep.subr.mxu0 0.0
  %4390 = vmatpush1.xpose.msra.mxu0 0.0
  %4391 = vmatprep.subr.mxu0 0.0
  %4392 = vmatpush1.xpose.msra.mxu0 0.0
  %4393 = vmatprep.subr.mxu0 0.0
  %4394 = vmatpush1.xpose.msra.mxu0 0.0
  %4395 = vmatprep.subr.mxu0 0.0
  %4396 = vmatpush1.xpose.msra.mxu0 0.0
  %4397 = vmatprep.subr.mxu0 0.0
  %4398 = vmatpush1.xpose.msra.mxu0 0.0
  %4399 = vmatprep.subr.mxu0 0.0
  %4400 = vmatpush1.xpose.msra.mxu0 0.0
  %4401 = vmatprep.subr.mxu0 0.0
  %4402 = vmatpush1.xpose.msra.mxu0 0.0
  %4403 = vmatprep.subr.mxu0 0.0
  %4404 = vmatpush1.xpose.msra.mxu0 0.0
  %4405 = vmatprep.subr.mxu0 0.0
  %4406 = vmatpush1.xpose.msra.mxu0 0.0
  %4407 = vmatprep.subr.mxu0 0.0
  %4408 = vmatpush1.xpose.msra.mxu0 0.0
  %4409 = vmatprep.subr.mxu0 0.0
  %4410 = vmatpush1.xpose.msra.mxu0 0.0
  %4411 = vmatprep.subr.mxu0 0.0
  %4412 = vmatpush1.xpose.msra.mxu0 0.0
  %4413 = vmatprep.mubr.f32.mxu0 0.0
  %4414 = vmatmul.mubr.f32.gmra.mrb[0].mxu0 %v4345
  %v4415 = vpop.f32.mrb[0].mxu0
  %v4416 = vadd.f32 0.0, %v4415
  %v4417 = vpop.f32.mrb[0].mxu0
  %4418 = vdwg.mxu0
  %4419 = vrot.lane.b32.xlu0 %v123, 104
  %v4420 = vpop.permute.xlu0 %4419
  %4421 = vrot.lane.b32.xlu0 %v123, 72
  %v4422 = vpop.permute.xlu0 %4421
  %v4423 = vsel %vm145, %v4420, 0
  %v4425 = vsel %vm145, %v4422, 0
  %4427 = vmatprep.subr.mxu0 0.0
  %4428 = vmatpush1.xpose.msra.mxu0 %v4425
  %4429 = vmatprep.subr.mxu0 0.0
  %4430 = vmatpush1.xpose.msra.mxu0 0.0
  %4431 = vmatprep.subr.mxu0 0.0
  %4432 = vmatpush1.xpose.msra.mxu0 0.0
  %4433 = vmatprep.subr.mxu0 0.0
  %4434 = vmatpush1.xpose.msra.mxu0 0.0
  %4435 = vmatprep.subr.mxu0 0.0
  %4436 = vmatpush1.xpose.msra.mxu0 0.0
  %4437 = vmatprep.subr.mxu0 0.0
  %4438 = vmatpush1.xpose.msra.mxu0 0.0
  %4439 = vmatprep.subr.mxu0 0.0
  %4440 = vmatpush1.xpose.msra.mxu0 0.0
  %4441 = vmatprep.subr.mxu0 0.0
  %4442 = vmatpush1.xpose.msra.mxu0 0.0
  %4443 = vmatprep.subr.mxu0 0.0
  %4444 = vmatpush1.xpose.msra.mxu0 0.0
  %4445 = vmatprep.subr.mxu0 0.0
  %4446 = vmatpush1.xpose.msra.mxu0 0.0
  %4447 = vmatprep.subr.mxu0 0.0
  %4448 = vmatpush1.xpose.msra.mxu0 0.0
  %4449 = vmatprep.subr.mxu0 0.0
  %4450 = vmatpush1.xpose.msra.mxu0 0.0
  %4451 = vmatprep.subr.mxu0 0.0
  %4452 = vmatpush1.xpose.msra.mxu0 0.0
  %4453 = vmatprep.subr.mxu0 0.0
  %4454 = vmatpush1.xpose.msra.mxu0 0.0
  %4455 = vmatprep.subr.mxu0 0.0
  %4456 = vmatpush1.xpose.msra.mxu0 0.0
  %4457 = vmatprep.subr.mxu0 0.0
  %4458 = vmatpush1.xpose.msra.mxu0 0.0
  %4459 = vmatprep.subr.mxu0 0.0
  %4460 = vmatpush1.xpose.msra.mxu0 0.0
  %4461 = vmatprep.subr.mxu0 0.0
  %4462 = vmatpush1.xpose.msra.mxu0 0.0
  %4463 = vmatprep.subr.mxu0 0.0
  %4464 = vmatpush1.xpose.msra.mxu0 0.0
  %4465 = vmatprep.subr.mxu0 0.0
  %4466 = vmatpush1.xpose.msra.mxu0 0.0
  %4467 = vmatprep.subr.mxu0 0.0
  %4468 = vmatpush1.xpose.msra.mxu0 0.0
  %4469 = vmatprep.subr.mxu0 0.0
  %4470 = vmatpush1.xpose.msra.mxu0 0.0
  %4471 = vmatprep.subr.mxu0 0.0
  %4472 = vmatpush1.xpose.msra.mxu0 0.0
  %4473 = vmatprep.subr.mxu0 0.0
  %4474 = vmatpush1.xpose.msra.mxu0 0.0
  %4475 = vmatprep.subr.mxu0 0.0
  %4476 = vmatpush1.xpose.msra.mxu0 0.0
  %4477 = vmatprep.subr.mxu0 0.0
  %4478 = vmatpush1.xpose.msra.mxu0 0.0
  %4479 = vmatprep.subr.mxu0 0.0
  %4480 = vmatpush1.xpose.msra.mxu0 0.0
  %4481 = vmatprep.subr.mxu0 0.0
  %4482 = vmatpush1.xpose.msra.mxu0 0.0
  %4483 = vmatprep.subr.mxu0 0.0
  %4484 = vmatpush1.xpose.msra.mxu0 0.0
  %4485 = vmatprep.subr.mxu0 0.0
  %4486 = vmatpush1.xpose.msra.mxu0 0.0
  %4487 = vmatprep.subr.mxu0 0.0
  %4488 = vmatpush1.xpose.msra.mxu0 0.0
  %4489 = vmatprep.subr.mxu0 0.0
  %4490 = vmatpush1.xpose.msra.mxu0 0.0
  %4491 = vmatprep.mubr.f32.mxu0 0.0
  %4492 = vmatmul.mubr.f32.gmra.mrb[0].mxu0 %v4423
  %v4493 = vpop.f32.mrb[0].mxu0
  %v4494 = vadd.f32 0.0, %v4493
  %v4495 = vpop.f32.mrb[0].mxu0
  %4496 = vdwg.mxu0
  %4497 = vrot.lane.b32.xlu0 %v128, 104
  %v4498 = vpop.permute.xlu0 %4497
  %4499 = vrot.lane.b32.xlu0 %v128, 72
  %v4500 = vpop.permute.xlu0 %4499
  %v4501 = vsel %vm145, %v4498, 0
  %v4503 = vsel %vm145, %v4500, 0
  %4505 = vmatprep.subr.mxu0 0.0
  %4506 = vmatpush1.xpose.msra.mxu0 %v4503
  %4507 = vmatprep.subr.mxu0 0.0
  %4508 = vmatpush1.xpose.msra.mxu0 0.0
  %4509 = vmatprep.subr.mxu0 0.0
  %4510 = vmatpush1.xpose.msra.mxu0 0.0
  %4511 = vmatprep.subr.mxu0 0.0
  %4512 = vmatpush1.xpose.msra.mxu0 0.0
  %4513 = vmatprep.subr.mxu0 0.0
  %4514 = vmatpush1.xpose.msra.mxu0 0.0
  %4515 = vmatprep.subr.mxu0 0.0
  %4516 = vmatpush1.xpose.msra.mxu0 0.0
  %4517 = vmatprep.subr.mxu0 0.0
  %4518 = vmatpush1.xpose.msra.mxu0 0.0
  %4519 = vmatprep.subr.mxu0 0.0
  %4520 = vmatpush1.xpose.msra.mxu0 0.0
  %4521 = vmatprep.subr.mxu0 0.0
  %4522 = vmatpush1.xpose.msra.mxu0 0.0
  %4523 = vmatprep.subr.mxu0 0.0
  %4524 = vmatpush1.xpose.msra.mxu0 0.0
  %4525 = vmatprep.subr.mxu0 0.0
  %4526 = vmatpush1.xpose.msra.mxu0 0.0
  %4527 = vmatprep.subr.mxu0 0.0
  %4528 = vmatpush1.xpose.msra.mxu0 0.0
  %4529 = vmatprep.subr.mxu0 0.0
  %4530 = vmatpush1.xpose.msra.mxu0 0.0
  %4531 = vmatprep.subr.mxu0 0.0
  %4532 = vmatpush1.xpose.msra.mxu0 0.0
  %4533 = vmatprep.subr.mxu0 0.0
  %4534 = vmatpush1.xpose.msra.mxu0 0.0
  %4535 = vmatprep.subr.mxu0 0.0
  %4536 = vmatpush1.xpose.msra.mxu0 0.0
  %4537 = vmatprep.subr.mxu0 0.0
  %4538 = vmatpush1.xpose.msra.mxu0 0.0
  %4539 = vmatprep.subr.mxu0 0.0
  %4540 = vmatpush1.xpose.msra.mxu0 0.0
  %4541 = vmatprep.subr.mxu0 0.0
  %4542 = vmatpush1.xpose.msra.mxu0 0.0
  %4543 = vmatprep.subr.mxu0 0.0
  %4544 = vmatpush1.xpose.msra.mxu0 0.0
  %4545 = vmatprep.subr.mxu0 0.0
  %4546 = vmatpush1.xpose.msra.mxu0 0.0
  %4547 = vmatprep.subr.mxu0 0.0
  %4548 = vmatpush1.xpose.msra.mxu0 0.0
  %4549 = vmatprep.subr.mxu0 0.0
  %4550 = vmatpush1.xpose.msra.mxu0 0.0
  %4551 = vmatprep.subr.mxu0 0.0
  %4552 = vmatpush1.xpose.msra.mxu0 0.0
  %4553 = vmatprep.subr.mxu0 0.0
  %4554 = vmatpush1.xpose.msra.mxu0 0.0
  %4555 = vmatprep.subr.mxu0 0.0
  %4556 = vmatpush1.xpose.msra.mxu0 0.0
  %4557 = vmatprep.subr.mxu0 0.0
  %4558 = vmatpush1.xpose.msra.mxu0 0.0
  %4559 = vmatprep.subr.mxu0 0.0
  %4560 = vmatpush1.xpose.msra.mxu0 0.0
  %4561 = vmatprep.subr.mxu0 0.0
  %4562 = vmatpush1.xpose.msra.mxu0 0.0
  %4563 = vmatprep.subr.mxu0 0.0
  %4564 = vmatpush1.xpose.msra.mxu0 0.0
  %4565 = vmatprep.subr.mxu0 0.0
  %4566 = vmatpush1.xpose.msra.mxu0 0.0
  %4567 = vmatprep.subr.mxu0 0.0
  %4568 = vmatpush1.xpose.msra.mxu0 0.0
  %4569 = vmatprep.mubr.f32.mxu0 0.0
  %4570 = vmatmul.mubr.f32.gmra.mrb[0].mxu0 %v4501
  %v4571 = vpop.f32.mrb[0].mxu0
  %v4572 = vadd.f32 0.0, %v4571
  %v4573 = vpop.f32.mrb[0].mxu0
  %4574 = vdwg.mxu0
  %4575 = vrot.lane.b32.xlu0 %v131, 104
  %v4576 = vpop.permute.xlu0 %4575
  %4577 = vrot.lane.b32.xlu0 %v131, 72
  %v4578 = vpop.permute.xlu0 %4577
  %v4579 = vsel %vm145, %v4576, 0
  %v4581 = vsel %vm145, %v4578, 0
  %4583 = vmatprep.subr.mxu0 0.0
  %4584 = vmatpush1.xpose.msra.mxu0 %v4581
  %4585 = vmatprep.subr.mxu0 0.0
  %4586 = vmatpush1.xpose.msra.mxu0 0.0
  %4587 = vmatprep.subr.mxu0 0.0
  %4588 = vmatpush1.xpose.msra.mxu0 0.0
  %4589 = vmatprep.subr.mxu0 0.0
  %4590 = vmatpush1.xpose.msra.mxu0 0.0
  %4591 = vmatprep.subr.mxu0 0.0
  %4592 = vmatpush1.xpose.msra.mxu0 0.0
  %4593 = vmatprep.subr.mxu0 0.0
  %4594 = vmatpush1.xpose.msra.mxu0 0.0
  %4595 = vmatprep.subr.mxu0 0.0
  %4596 = vmatpush1.xpose.msra.mxu0 0.0
  %4597 = vmatprep.subr.mxu0 0.0
  %4598 = vmatpush1.xpose.msra.mxu0 0.0
  %4599 = vmatprep.subr.mxu0 0.0
  %4600 = vmatpush1.xpose.msra.mxu0 0.0
  %4601 = vmatprep.subr.mxu0 0.0
  %4602 = vmatpush1.xpose.msra.mxu0 0.0
  %4603 = vmatprep.subr.mxu0 0.0
  %4604 = vmatpush1.xpose.msra.mxu0 0.0
  %4605 = vmatprep.subr.mxu0 0.0
  %4606 = vmatpush1.xpose.msra.mxu0 0.0
  %4607 = vmatprep.subr.mxu0 0.0
  %4608 = vmatpush1.xpose.msra.mxu0 0.0
  %4609 = vmatprep.subr.mxu0 0.0
  %4610 = vmatpush1.xpose.msra.mxu0 0.0
  %4611 = vmatprep.subr.mxu0 0.0
  %4612 = vmatpush1.xpose.msra.mxu0 0.0
  %4613 = vmatprep.subr.mxu0 0.0
  %4614 = vmatpush1.xpose.msra.mxu0 0.0
  %4615 = vmatprep.subr.mxu0 0.0
  %4616 = vmatpush1.xpose.msra.mxu0 0.0
  %4617 = vmatprep.subr.mxu0 0.0
  %4618 = vmatpush1.xpose.msra.mxu0 0.0
  %4619 = vmatprep.subr.mxu0 0.0
  %4620 = vmatpush1.xpose.msra.mxu0 0.0
  %4621 = vmatprep.subr.mxu0 0.0
  %4622 = vmatpush1.xpose.msra.mxu0 0.0
  %4623 = vmatprep.subr.mxu0 0.0
  %4624 = vmatpush1.xpose.msra.mxu0 0.0
  %4625 = vmatprep.subr.mxu0 0.0
  %4626 = vmatpush1.xpose.msra.mxu0 0.0
  %4627 = vmatprep.subr.mxu0 0.0
  %4628 = vmatpush1.xpose.msra.mxu0 0.0
  %4629 = vmatprep.subr.mxu0 0.0
  %4630 = vmatpush1.xpose.msra.mxu0 0.0
  %4631 = vmatprep.subr.mxu0 0.0
  %4632 = vmatpush1.xpose.msra.mxu0 0.0
  %4633 = vmatprep.subr.mxu0 0.0
  %4634 = vmatpush1.xpose.msra.mxu0 0.0
  %4635 = vmatprep.subr.mxu0 0.0
  %4636 = vmatpush1.xpose.msra.mxu0 0.0
  %4637 = vmatprep.subr.mxu0 0.0
  %4638 = vmatpush1.xpose.msra.mxu0 0.0
  %4639 = vmatprep.subr.mxu0 0.0
  %4640 = vmatpush1.xpose.msra.mxu0 0.0
  %4641 = vmatprep.subr.mxu0 0.0
  %4642 = vmatpush1.xpose.msra.mxu0 0.0
  %4643 = vmatprep.subr.mxu0 0.0
  %4644 = vmatpush1.xpose.msra.mxu0 0.0
  %4645 = vmatprep.subr.mxu0 0.0
  %4646 = vmatpush1.xpose.msra.mxu0 0.0
  %4647 = vmatprep.mubr.f32.mxu0 0.0
  %4648 = vmatmul.mubr.f32.gmra.mrb[0].mxu0 %v4579
  %v4649 = vpop.f32.mrb[0].mxu0
  %v4650 = vadd.f32 0.0, %v4649
  %v4651 = vpop.f32.mrb[0].mxu0
  %4652 = vdwg.mxu0
  %4653 = vrot.lane.b32.xlu0 %v136, 104
  %v4654 = vpop.permute.xlu0 %4653
  %4655 = vrot.lane.b32.xlu0 %v136, 72
  %v4656 = vpop.permute.xlu0 %4655
  %v4657 = vsel %vm145, %v4654, 0
  %v4659 = vsel %vm145, %v4656, 0
  %4661 = vmatprep.subr.mxu0 0.0
  %4662 = vmatpush1.xpose.msra.mxu0 %v4659
  %4663 = vmatprep.subr.mxu0 0.0
  %4664 = vmatpush1.xpose.msra.mxu0 0.0
  %4665 = vmatprep.subr.mxu0 0.0
  %4666 = vmatpush1.xpose.msra.mxu0 0.0
  %4667 = vmatprep.subr.mxu0 0.0
  %4668 = vmatpush1.xpose.msra.mxu0 0.0
  %4669 = vmatprep.subr.mxu0 0.0
  %4670 = vmatpush1.xpose.msra.mxu0 0.0
  %4671 = vmatprep.subr.mxu0 0.0
  %4672 = vmatpush1.xpose.msra.mxu0 0.0
  %4673 = vmatprep.subr.mxu0 0.0
  %4674 = vmatpush1.xpose.msra.mxu0 0.0
  %4675 = vmatprep.subr.mxu0 0.0
  %4676 = vmatpush1.xpose.msra.mxu0 0.0
  %4677 = vmatprep.subr.mxu0 0.0
  %4678 = vmatpush1.xpose.msra.mxu0 0.0
  %4679 = vmatprep.subr.mxu0 0.0
  %4680 = vmatpush1.xpose.msra.mxu0 0.0
  %4681 = vmatprep.subr.mxu0 0.0
  %4682 = vmatpush1.xpose.msra.mxu0 0.0
  %4683 = vmatprep.subr.mxu0 0.0
  %4684 = vmatpush1.xpose.msra.mxu0 0.0
  %4685 = vmatprep.subr.mxu0 0.0
  %4686 = vmatpush1.xpose.msra.mxu0 0.0
  %4687 = vmatprep.subr.mxu0 0.0
  %4688 = vmatpush1.xpose.msra.mxu0 0.0
  %4689 = vmatprep.subr.mxu0 0.0
  %4690 = vmatpush1.xpose.msra.mxu0 0.0
  %4691 = vmatprep.subr.mxu0 0.0
  %4692 = vmatpush1.xpose.msra.mxu0 0.0
  %4693 = vmatprep.subr.mxu0 0.0
  %4694 = vmatpush1.xpose.msra.mxu0 0.0
  %4695 = vmatprep.subr.mxu0 0.0
  %4696 = vmatpush1.xpose.msra.mxu0 0.0
  %4697 = vmatprep.subr.mxu0 0.0
  %4698 = vmatpush1.xpose.msra.mxu0 0.0
  %4699 = vmatprep.subr.mxu0 0.0
  %4700 = vmatpush1.xpose.msra.mxu0 0.0
  %4701 = vmatprep.subr.mxu0 0.0
  %4702 = vmatpush1.xpose.msra.mxu0 0.0
  %4703 = vmatprep.subr.mxu0 0.0
  %4704 = vmatpush1.xpose.msra.mxu0 0.0
  %4705 = vmatprep.subr.mxu0 0.0
  %4706 = vmatpush1.xpose.msra.mxu0 0.0
  %4707 = vmatprep.subr.mxu0 0.0
  %4708 = vmatpush1.xpose.msra.mxu0 0.0
  %4709 = vmatprep.subr.mxu0 0.0
  %4710 = vmatpush1.xpose.msra.mxu0 0.0
  %4711 = vmatprep.subr.mxu0 0.0
  %4712 = vmatpush1.xpose.msra.mxu0 0.0
  %4713 = vmatprep.subr.mxu0 0.0
  %4714 = vmatpush1.xpose.msra.mxu0 0.0
  %4715 = vmatprep.subr.mxu0 0.0
  %4716 = vmatpush1.xpose.msra.mxu0 0.0
  %4717 = vmatprep.subr.mxu0 0.0
  %4718 = vmatpush1.xpose.msra.mxu0 0.0
  %4719 = vmatprep.subr.mxu0 0.0
  %4720 = vmatpush1.xpose.msra.mxu0 0.0
  %4721 = vmatprep.subr.mxu0 0.0
  %4722 = vmatpush1.xpose.msra.mxu0 0.0
  %4723 = vmatprep.subr.mxu0 0.0
  %4724 = vmatpush1.xpose.msra.mxu0 0.0
  %4725 = vmatprep.mubr.f32.mxu0 0.0
  %4726 = vmatmul.mubr.f32.gmra.mrb[0].mxu0 %v4657
  %v4727 = vpop.f32.mrb[0].mxu0
  %v4728 = vadd.f32 0.0, %v4727
  %v4729 = vpop.f32.mrb[0].mxu0
  %4730 = vdwg.mxu0
  %4731 = vrot.lane.b32.xlu0 %v139, 104
  %v4732 = vpop.permute.xlu0 %4731
  %4733 = vrot.lane.b32.xlu0 %v139, 72
  %v4734 = vpop.permute.xlu0 %4733
  %v4735 = vsel %vm145, %v4732, 0
  %v4737 = vsel %vm145, %v4734, 0
  %4739 = vmatprep.subr.mxu0 0.0
  %4740 = vmatpush1.xpose.msra.mxu0 %v4737
  %4741 = vmatprep.subr.mxu0 0.0
  %4742 = vmatpush1.xpose.msra.mxu0 0.0
  %4743 = vmatprep.subr.mxu0 0.0
  %4744 = vmatpush1.xpose.msra.mxu0 0.0
  %4745 = vmatprep.subr.mxu0 0.0
  %4746 = vmatpush1.xpose.msra.mxu0 0.0
  %4747 = vmatprep.subr.mxu0 0.0
  %4748 = vmatpush1.xpose.msra.mxu0 0.0
  %4749 = vmatprep.subr.mxu0 0.0
  %4750 = vmatpush1.xpose.msra.mxu0 0.0
  %4751 = vmatprep.subr.mxu0 0.0
  %4752 = vmatpush1.xpose.msra.mxu0 0.0
  %4753 = vmatprep.subr.mxu0 0.0
  %4754 = vmatpush1.xpose.msra.mxu0 0.0
  %4755 = vmatprep.subr.mxu0 0.0
  %4756 = vmatpush1.xpose.msra.mxu0 0.0
  %4757 = vmatprep.subr.mxu0 0.0
  %4758 = vmatpush1.xpose.msra.mxu0 0.0
  %4759 = vmatprep.subr.mxu0 0.0
  %4760 = vmatpush1.xpose.msra.mxu0 0.0
  %4761 = vmatprep.subr.mxu0 0.0
  %4762 = vmatpush1.xpose.msra.mxu0 0.0
  %4763 = vmatprep.subr.mxu0 0.0
  %4764 = vmatpush1.xpose.msra.mxu0 0.0
  %4765 = vmatprep.subr.mxu0 0.0
  %4766 = vmatpush1.xpose.msra.mxu0 0.0
  %4767 = vmatprep.subr.mxu0 0.0
  %4768 = vmatpush1.xpose.msra.mxu0 0.0
  %4769 = vmatprep.subr.mxu0 0.0
  %4770 = vmatpush1.xpose.msra.mxu0 0.0
  %4771 = vmatprep.subr.mxu0 0.0
  %4772 = vmatpush1.xpose.msra.mxu0 0.0
  %4773 = vmatprep.subr.mxu0 0.0
  %4774 = vmatpush1.xpose.msra.mxu0 0.0
  %4775 = vmatprep.subr.mxu0 0.0
  %4776 = vmatpush1.xpose.msra.mxu0 0.0
  %4777 = vmatprep.subr.mxu0 0.0
  %4778 = vmatpush1.xpose.msra.mxu0 0.0
  %4779 = vmatprep.subr.mxu0 0.0
  %4780 = vmatpush1.xpose.msra.mxu0 0.0
  %4781 = vmatprep.subr.mxu0 0.0
  %4782 = vmatpush1.xpose.msra.mxu0 0.0
  %4783 = vmatprep.subr.mxu0 0.0
  %4784 = vmatpush1.xpose.msra.mxu0 0.0
  %4785 = vmatprep.subr.mxu0 0.0
  %4786 = vmatpush1.xpose.msra.mxu0 0.0
  %4787 = vmatprep.subr.mxu0 0.0
  %4788 = vmatpush1.xpose.msra.mxu0 0.0
  %4789 = vmatprep.subr.mxu0 0.0
  %4790 = vmatpush1.xpose.msra.mxu0 0.0
  %4791 = vmatprep.subr.mxu0 0.0
  %4792 = vmatpush1.xpose.msra.mxu0 0.0
  %4793 = vmatprep.subr.mxu0 0.0
  %4794 = vmatpush1.xpose.msra.mxu0 0.0
  %4795 = vmatprep.subr.mxu0 0.0
  %4796 = vmatpush1.xpose.msra.mxu0 0.0
  %4797 = vmatprep.subr.mxu0 0.0
  %4798 = vmatpush1.xpose.msra.mxu0 0.0
  %4799 = vmatprep.subr.mxu0 0.0
  %4800 = vmatpush1.xpose.msra.mxu0 0.0
  %4801 = vmatprep.subr.mxu0 0.0
  %4802 = vmatpush1.xpose.msra.mxu0 0.0
  %4803 = vmatprep.mubr.f32.mxu0 0.0
  %4804 = vmatmul.mubr.f32.gmra.mrb[0].mxu0 %v4735
  %v4805 = vpop.f32.mrb[0].mxu0
  %v4806 = vadd.f32 0.0, %v4805
  %v4807 = vpop.f32.mrb[0].mxu0
  %4808 = vdwg.mxu0
  %v4809 = vsel %vm145, %v4260, -inf
  %4810 = vmax.xlane.f32.xlu0 %v4809
  %v4811 = vpop.xlane.xlu0 %4810
  %v4812 = vsel %vm145, %v4338, -inf
  %4813 = vmax.xlane.f32.xlu0 %v4812
  %v4814 = vpop.xlane.xlu0 %4813
  %v4815 = vsel %vm145, %v4416, -inf
  %4816 = vmax.xlane.f32.xlu0 %v4815
  %v4817 = vpop.xlane.xlu0 %4816
  %v4818 = vsel %vm145, %v4494, -inf
  %4819 = vmax.xlane.f32.xlu0 %v4818
  %v4820 = vpop.xlane.xlu0 %4819
  %v4821 = vsel %vm145, %v4572, -inf
  %4822 = vmax.xlane.f32.xlu0 %v4821
  %v4823 = vpop.xlane.xlu0 %4822
  %v4824 = vsel %vm145, %v4650, -inf
  %4825 = vmax.xlane.f32.xlu0 %v4824
  %v4826 = vpop.xlane.xlu0 %4825
  %v4827 = vsel %vm145, %v4728, -inf
  %4828 = vmax.xlane.f32.xlu0 %v4827
  %v4829 = vpop.xlane.xlu0 %4828
  %v4830 = vsel %vm145, %v4806, -inf
  %4831 = vmax.xlane.f32.xlu0 %v4830
  %v4832 = vpop.xlane.xlu0 %4831
  %v4833 = vsub.f32 %v4260, %v4811
  %v4834 = vsub.f32 %v4338, %v4814
  %v4835 = vsub.f32 %v4416, %v4817
  %v4836 = vsub.f32 %v4494, %v4820
  %v4837 = vsub.f32 %v4572, %v4823
  %v4838 = vsub.f32 %v4650, %v4826
  %v4839 = vsub.f32 %v4728, %v4829
  %v4840 = vsub.f32 %v4806, %v4832
  %v4841 = vmul.f32 %v4833, 1.442695
  %v4842 = vpow.pop %v4841
  %v4843 = vmul.f32 %v4834, 1.442695
  %v4844 = vpow.pop %v4843
  %v4845 = vmul.f32 %v4835, 1.442695
  %v4846 = vpow.pop %v4845
  %v4847 = vmul.f32 %v4836, 1.442695
  %v4848 = vpow.pop %v4847
  %v4849 = vmul.f32 %v4837, 1.442695
  %v4850 = vpow.pop %v4849
  %v4851 = vmul.f32 %v4838, 1.442695
  %v4852 = vpow.pop %v4851
  %v4853 = vmul.f32 %v4839, 1.442695
  %v4854 = vpow.pop %v4853
  %v4855 = vmul.f32 %v4840, 1.442695
  %v4856 = vpow.pop %v4855
  %v4857 = vsel %vm145, %v4842, 0.0
  %4858 = vadd.xlane.f32.xlu0 %v4857
  %v4859 = vpop.xlane.xlu0 %4858
  %v4860 = vsel %vm145, %v4844, 0.0
  %4861 = vadd.xlane.f32.xlu0 %v4860
  %v4862 = vpop.xlane.xlu0 %4861
  %v4863 = vsel %vm145, %v4846, 0.0
  %4864 = vadd.xlane.f32.xlu0 %v4863
  %v4865 = vpop.xlane.xlu0 %4864
  %v4866 = vsel %vm145, %v4848, 0.0
  %4867 = vadd.xlane.f32.xlu0 %v4866
  %v4868 = vpop.xlane.xlu0 %4867
  %v4869 = vsel %vm145, %v4850, 0.0
  %4870 = vadd.xlane.f32.xlu0 %v4869
  %v4871 = vpop.xlane.xlu0 %4870
  %v4872 = vsel %vm145, %v4852, 0.0
  %4873 = vadd.xlane.f32.xlu0 %v4872
  %v4874 = vpop.xlane.xlu0 %4873
  %v4875 = vsel %vm145, %v4854, 0.0
  %4876 = vadd.xlane.f32.xlu0 %v4875
  %v4877 = vpop.xlane.xlu0 %4876
  %v4878 = vsel %vm145, %v4856, 0.0
  %4879 = vadd.xlane.f32.xlu0 %v4878
  %v4880 = vpop.xlane.xlu0 %4879
  %v4881 = vrcp.pop %v4859
  %v4882 = vrcp.pop %v4862
  %v4883 = vrcp.pop %v4865
  %v4884 = vrcp.pop %v4868
  %v4885 = vrcp.pop %v4871
  %v4886 = vrcp.pop %v4874
  %v4887 = vrcp.pop %v4877
  %v4888 = vrcp.pop %v4880
  %v4889 = vmul.f32 %v4842, %v4881
  %v4890 = vmul.f32 %v4844, %v4882
  %v4891 = vmul.f32 %v4846, %v4883
  %v4892 = vmul.f32 %v4848, %v4884
  %v4893 = vmul.f32 %v4850, %v4885
  %v4894 = vmul.f32 %v4852, %v4886
  %v4895 = vmul.f32 %v4854, %v4887
  %v4896 = vmul.f32 %v4856, %v4888
  %4897 = vrot.lane.b32.xlu0 %v112, 40
  %v4898 = vpop.permute.xlu0 %4897
  %v4901 = vsel %vm145, %v4889, 0
  %4903 = vmatprep.subr.mxu0 0.0
  %4904 = vmatpush1.msra.mxu0 %v4898
  %4905 = vmatprep.subr.mxu0 0.0
  %4906 = vmatpush1.msra.mxu0 0.0
  %4907 = vmatprep.subr.mxu0 0.0
  %4908 = vmatpush1.msra.mxu0 0.0
  %4909 = vmatprep.subr.mxu0 0.0
  %4910 = vmatpush1.msra.mxu0 0.0
  %4911 = vmatprep.subr.mxu0 0.0
  %4912 = vmatpush1.msra.mxu0 0.0
  %4913 = vmatprep.subr.mxu0 0.0
  %4914 = vmatpush1.msra.mxu0 0.0
  %4915 = vmatprep.subr.mxu0 0.0
  %4916 = vmatpush1.msra.mxu0 0.0
  %4917 = vmatprep.subr.mxu0 0.0
  %4918 = vmatpush1.msra.mxu0 0.0
  %4919 = vmatprep.subr.mxu0 0.0
  %4920 = vmatpush1.msra.mxu0 0.0
  %4921 = vmatprep.subr.mxu0 0.0
  %4922 = vmatpush1.msra.mxu0 0.0
  %4923 = vmatprep.subr.mxu0 0.0
  %4924 = vmatpush1.msra.mxu0 0.0
  %4925 = vmatprep.subr.mxu0 0.0
  %4926 = vmatpush1.msra.mxu0 0.0
  %4927 = vmatprep.subr.mxu0 0.0
  %4928 = vmatpush1.msra.mxu0 0.0
  %4929 = vmatprep.subr.mxu0 0.0
  %4930 = vmatpush1.msra.mxu0 0.0
  %4931 = vmatprep.subr.mxu0 0.0
  %4932 = vmatpush1.msra.mxu0 0.0
  %4933 = vmatprep.subr.mxu0 0.0
  %4934 = vmatpush1.msra.mxu0 0.0
  %4935 = vmatprep.subr.mxu0 0.0
  %4936 = vmatpush1.msra.mxu0 0.0
  %4937 = vmatprep.subr.mxu0 0.0
  %4938 = vmatpush1.msra.mxu0 0.0
  %4939 = vmatprep.subr.mxu0 0.0
  %4940 = vmatpush1.msra.mxu0 0.0
  %4941 = vmatprep.subr.mxu0 0.0
  %4942 = vmatpush1.msra.mxu0 0.0
  %4943 = vmatprep.subr.mxu0 0.0
  %4944 = vmatpush1.msra.mxu0 0.0
  %4945 = vmatprep.subr.mxu0 0.0
  %4946 = vmatpush1.msra.mxu0 0.0
  %4947 = vmatprep.subr.mxu0 0.0
  %4948 = vmatpush1.msra.mxu0 0.0
  %4949 = vmatprep.subr.mxu0 0.0
  %4950 = vmatpush1.msra.mxu0 0.0
  %4951 = vmatprep.subr.mxu0 0.0
  %4952 = vmatpush1.msra.mxu0 0.0
  %4953 = vmatprep.subr.mxu0 0.0
  %4954 = vmatpush1.msra.mxu0 0.0
  %4955 = vmatprep.subr.mxu0 0.0
  %4956 = vmatpush1.msra.mxu0 0.0
  %4957 = vmatprep.subr.mxu0 0.0
  %4958 = vmatpush1.msra.mxu0 0.0
  %4959 = vmatprep.subr.mxu0 0.0
  %4960 = vmatpush1.msra.mxu0 0.0
  %4961 = vmatprep.subr.mxu0 0.0
  %4962 = vmatpush1.msra.mxu0 0.0
  %4963 = vmatprep.subr.mxu0 0.0
  %4964 = vmatpush1.msra.mxu0 0.0
  %4965 = vmatprep.subr.mxu0 0.0
  %4966 = vmatpush1.msra.mxu0 0.0
  %4967 = vmatprep.mubr.f32.mxu0 0.0
  %4968 = vmatmul.mubr.f32.gmra.mrb[0].mxu0 %v4901
  %v4969 = vpop.f32.mrb[0].mxu0
  %v4970 = vadd.f32 0.0, %v4969
  %v4971 = vpop.f32.mrb[0].mxu0
  %4972 = vdwg.mxu0
  %4973 = vrot.lane.b32.xlu0 %v115, 40
  %v4974 = vpop.permute.xlu0 %4973
  %v4977 = vsel %vm145, %v4890, 0
  %4979 = vmatprep.subr.mxu0 0.0
  %4980 = vmatpush1.msra.mxu0 %v4974
  %4981 = vmatprep.subr.mxu0 0.0
  %4982 = vmatpush1.msra.mxu0 0.0
  %4983 = vmatprep.subr.mxu0 0.0
  %4984 = vmatpush1.msra.mxu0 0.0
  %4985 = vmatprep.subr.mxu0 0.0
  %4986 = vmatpush1.msra.mxu0 0.0
  %4987 = vmatprep.subr.mxu0 0.0
  %4988 = vmatpush1.msra.mxu0 0.0
  %4989 = vmatprep.subr.mxu0 0.0
  %4990 = vmatpush1.msra.mxu0 0.0
  %4991 = vmatprep.subr.mxu0 0.0
  %4992 = vmatpush1.msra.mxu0 0.0
  %4993 = vmatprep.subr.mxu0 0.0
  %4994 = vmatpush1.msra.mxu0 0.0
  %4995 = vmatprep.subr.mxu0 0.0
  %4996 = vmatpush1.msra.mxu0 0.0
  %4997 = vmatprep.subr.mxu0 0.0
  %4998 = vmatpush1.msra.mxu0 0.0
  %4999 = vmatprep.subr.mxu0 0.0
  %5000 = vmatpush1.msra.mxu0 0.0
  %5001 = vmatprep.subr.mxu0 0.0
  %5002 = vmatpush1.msra.mxu0 0.0
  %5003 = vmatprep.subr.mxu0 0.0
  %5004 = vmatpush1.msra.mxu0 0.0
  %5005 = vmatprep.subr.mxu0 0.0
  %5006 = vmatpush1.msra.mxu0 0.0
  %5007 = vmatprep.subr.mxu0 0.0
  %5008 = vmatpush1.msra.mxu0 0.0
  %5009 = vmatprep.subr.mxu0 0.0
  %5010 = vmatpush1.msra.mxu0 0.0
  %5011 = vmatprep.subr.mxu0 0.0
  %5012 = vmatpush1.msra.mxu0 0.0
  %5013 = vmatprep.subr.mxu0 0.0
  %5014 = vmatpush1.msra.mxu0 0.0
  %5015 = vmatprep.subr.mxu0 0.0
  %5016 = vmatpush1.msra.mxu0 0.0
  %5017 = vmatprep.subr.mxu0 0.0
  %5018 = vmatpush1.msra.mxu0 0.0
  %5019 = vmatprep.subr.mxu0 0.0
  %5020 = vmatpush1.msra.mxu0 0.0
  %5021 = vmatprep.subr.mxu0 0.0
  %5022 = vmatpush1.msra.mxu0 0.0
  %5023 = vmatprep.subr.mxu0 0.0
  %5024 = vmatpush1.msra.mxu0 0.0
  %5025 = vmatprep.subr.mxu0 0.0
  %5026 = vmatpush1.msra.mxu0 0.0
  %5027 = vmatprep.subr.mxu0 0.0
  %5028 = vmatpush1.msra.mxu0 0.0
  %5029 = vmatprep.subr.mxu0 0.0
  %5030 = vmatpush1.msra.mxu0 0.0
  %5031 = vmatprep.subr.mxu0 0.0
  %5032 = vmatpush1.msra.mxu0 0.0
  %5033 = vmatprep.subr.mxu0 0.0
  %5034 = vmatpush1.msra.mxu0 0.0
  %5035 = vmatprep.subr.mxu0 0.0
  %5036 = vmatpush1.msra.mxu0 0.0
  %5037 = vmatprep.subr.mxu0 0.0
  %5038 = vmatpush1.msra.mxu0 0.0
  %5039 = vmatprep.subr.mxu0 0.0
  %5040 = vmatpush1.msra.mxu0 0.0
  %5041 = vmatprep.subr.mxu0 0.0
  %5042 = vmatpush1.msra.mxu0 0.0
  %5043 = vmatprep.mubr.f32.mxu0 0.0
  %5044 = vmatmul.mubr.f32.gmra.mrb[0].mxu0 %v4977
  %v5045 = vpop.f32.mrb[0].mxu0
  %v5046 = vadd.f32 0.0, %v5045
  %v5047 = vpop.f32.mrb[0].mxu0
  %5048 = vdwg.mxu0
  %5049 = vrot.lane.b32.xlu0 %v120, 40
  %v5050 = vpop.permute.xlu0 %5049
  %v5053 = vsel %vm145, %v4891, 0
  %5055 = vmatprep.subr.mxu0 0.0
  %5056 = vmatpush1.msra.mxu0 %v5050
  %5057 = vmatprep.subr.mxu0 0.0
  %5058 = vmatpush1.msra.mxu0 0.0
  %5059 = vmatprep.subr.mxu0 0.0
  %5060 = vmatpush1.msra.mxu0 0.0
  %5061 = vmatprep.subr.mxu0 0.0
  %5062 = vmatpush1.msra.mxu0 0.0
  %5063 = vmatprep.subr.mxu0 0.0
  %5064 = vmatpush1.msra.mxu0 0.0
  %5065 = vmatprep.subr.mxu0 0.0
  %5066 = vmatpush1.msra.mxu0 0.0
  %5067 = vmatprep.subr.mxu0 0.0
  %5068 = vmatpush1.msra.mxu0 0.0
  %5069 = vmatprep.subr.mxu0 0.0
  %5070 = vmatpush1.msra.mxu0 0.0
  %5071 = vmatprep.subr.mxu0 0.0
  %5072 = vmatpush1.msra.mxu0 0.0
  %5073 = vmatprep.subr.mxu0 0.0
  %5074 = vmatpush1.msra.mxu0 0.0
  %5075 = vmatprep.subr.mxu0 0.0
  %5076 = vmatpush1.msra.mxu0 0.0
  %5077 = vmatprep.subr.mxu0 0.0
  %5078 = vmatpush1.msra.mxu0 0.0
  %5079 = vmatprep.subr.mxu0 0.0
  %5080 = vmatpush1.msra.mxu0 0.0
  %5081 = vmatprep.subr.mxu0 0.0
  %5082 = vmatpush1.msra.mxu0 0.0
  %5083 = vmatprep.subr.mxu0 0.0
  %5084 = vmatpush1.msra.mxu0 0.0
  %5085 = vmatprep.subr.mxu0 0.0
  %5086 = vmatpush1.msra.mxu0 0.0
  %5087 = vmatprep.subr.mxu0 0.0
  %5088 = vmatpush1.msra.mxu0 0.0
  %5089 = vmatprep.subr.mxu0 0.0
  %5090 = vmatpush1.msra.mxu0 0.0
  %5091 = vmatprep.subr.mxu0 0.0
  %5092 = vmatpush1.msra.mxu0 0.0
  %5093 = vmatprep.subr.mxu0 0.0
  %5094 = vmatpush1.msra.mxu0 0.0
  %5095 = vmatprep.subr.mxu0 0.0
  %5096 = vmatpush1.msra.mxu0 0.0
  %5097 = vmatprep.subr.mxu0 0.0
  %5098 = vmatpush1.msra.mxu0 0.0
  %5099 = vmatprep.subr.mxu0 0.0
  %5100 = vmatpush1.msra.mxu0 0.0
  %5101 = vmatprep.subr.mxu0 0.0
  %5102 = vmatpush1.msra.mxu0 0.0
  %5103 = vmatprep.subr.mxu0 0.0
  %5104 = vmatpush1.msra.mxu0 0.0
  %5105 = vmatprep.subr.mxu0 0.0
  %5106 = vmatpush1.msra.mxu0 0.0
  %5107 = vmatprep.subr.mxu0 0.0
  %5108 = vmatpush1.msra.mxu0 0.0
  %5109 = vmatprep.subr.mxu0 0.0
  %5110 = vmatpush1.msra.mxu0 0.0
  %5111 = vmatprep.subr.mxu0 0.0
  %5112 = vmatpush1.msra.mxu0 0.0
  %5113 = vmatprep.subr.mxu0 0.0
  %5114 = vmatpush1.msra.mxu0 0.0
  %5115 = vmatprep.subr.mxu0 0.0
  %5116 = vmatpush1.msra.mxu0 0.0
  %5117 = vmatprep.subr.mxu0 0.0
  %5118 = vmatpush1.msra.mxu0 0.0
  %5119 = vmatprep.mubr.f32.mxu0 0.0
  %5120 = vmatmul.mubr.f32.gmra.mrb[0].mxu0 %v5053
  %v5121 = vpop.f32.mrb[0].mxu0
  %v5122 = vadd.f32 0.0, %v5121
  %v5123 = vpop.f32.mrb[0].mxu0
  %5124 = vdwg.mxu0
  %5125 = vrot.lane.b32.xlu0 %v123, 40
  %v5126 = vpop.permute.xlu0 %5125
  %v5129 = vsel %vm145, %v4892, 0
  %5131 = vmatprep.subr.mxu0 0.0
  %5132 = vmatpush1.msra.mxu0 %v5126
  %5133 = vmatprep.subr.mxu0 0.0
  %5134 = vmatpush1.msra.mxu0 0.0
  %5135 = vmatprep.subr.mxu0 0.0
  %5136 = vmatpush1.msra.mxu0 0.0
  %5137 = vmatprep.subr.mxu0 0.0
  %5138 = vmatpush1.msra.mxu0 0.0
  %5139 = vmatprep.subr.mxu0 0.0
  %5140 = vmatpush1.msra.mxu0 0.0
  %5141 = vmatprep.subr.mxu0 0.0
  %5142 = vmatpush1.msra.mxu0 0.0
  %5143 = vmatprep.subr.mxu0 0.0
  %5144 = vmatpush1.msra.mxu0 0.0
  %5145 = vmatprep.subr.mxu0 0.0
  %5146 = vmatpush1.msra.mxu0 0.0
  %5147 = vmatprep.subr.mxu0 0.0
  %5148 = vmatpush1.msra.mxu0 0.0
  %5149 = vmatprep.subr.mxu0 0.0
  %5150 = vmatpush1.msra.mxu0 0.0
  %5151 = vmatprep.subr.mxu0 0.0
  %5152 = vmatpush1.msra.mxu0 0.0
  %5153 = vmatprep.subr.mxu0 0.0
  %5154 = vmatpush1.msra.mxu0 0.0
  %5155 = vmatprep.subr.mxu0 0.0
  %5156 = vmatpush1.msra.mxu0 0.0
  %5157 = vmatprep.subr.mxu0 0.0
  %5158 = vmatpush1.msra.mxu0 0.0
  %5159 = vmatprep.subr.mxu0 0.0
  %5160 = vmatpush1.msra.mxu0 0.0
  %5161 = vmatprep.subr.mxu0 0.0
  %5162 = vmatpush1.msra.mxu0 0.0
  %5163 = vmatprep.subr.mxu0 0.0
  %5164 = vmatpush1.msra.mxu0 0.0
  %5165 = vmatprep.subr.mxu0 0.0
  %5166 = vmatpush1.msra.mxu0 0.0
  %5167 = vmatprep.subr.mxu0 0.0
  %5168 = vmatpush1.msra.mxu0 0.0
  %5169 = vmatprep.subr.mxu0 0.0
  %5170 = vmatpush1.msra.mxu0 0.0
  %5171 = vmatprep.subr.mxu0 0.0
  %5172 = vmatpush1.msra.mxu0 0.0
  %5173 = vmatprep.subr.mxu0 0.0
  %5174 = vmatpush1.msra.mxu0 0.0
  %5175 = vmatprep.subr.mxu0 0.0
  %5176 = vmatpush1.msra.mxu0 0.0
  %5177 = vmatprep.subr.mxu0 0.0
  %5178 = vmatpush1.msra.mxu0 0.0
  %5179 = vmatprep.subr.mxu0 0.0
  %5180 = vmatpush1.msra.mxu0 0.0
  %5181 = vmatprep.subr.mxu0 0.0
  %5182 = vmatpush1.msra.mxu0 0.0
  %5183 = vmatprep.subr.mxu0 0.0
  %5184 = vmatpush1.msra.mxu0 0.0
  %5185 = vmatprep.subr.mxu0 0.0
  %5186 = vmatpush1.msra.mxu0 0.0
  %5187 = vmatprep.subr.mxu0 0.0
  %5188 = vmatpush1.msra.mxu0 0.0
  %5189 = vmatprep.subr.mxu0 0.0
  %5190 = vmatpush1.msra.mxu0 0.0
  %5191 = vmatprep.subr.mxu0 0.0
  %5192 = vmatpush1.msra.mxu0 0.0
  %5193 = vmatprep.subr.mxu0 0.0
  %5194 = vmatpush1.msra.mxu0 0.0
  %5195 = vmatprep.mubr.f32.mxu0 0.0
  %5196 = vmatmul.mubr.f32.gmra.mrb[0].mxu0 %v5129
  %v5197 = vpop.f32.mrb[0].mxu0
  %v5198 = vadd.f32 0.0, %v5197
  %v5199 = vpop.f32.mrb[0].mxu0
  %5200 = vdwg.mxu0
  %5201 = vrot.lane.b32.xlu0 %v128, 40
  %v5202 = vpop.permute.xlu0 %5201
  %v5205 = vsel %vm145, %v4893, 0
  %5207 = vmatprep.subr.mxu0 0.0
  %5208 = vmatpush1.msra.mxu0 %v5202
  %5209 = vmatprep.subr.mxu0 0.0
  %5210 = vmatpush1.msra.mxu0 0.0
  %5211 = vmatprep.subr.mxu0 0.0
  %5212 = vmatpush1.msra.mxu0 0.0
  %5213 = vmatprep.subr.mxu0 0.0
  %5214 = vmatpush1.msra.mxu0 0.0
  %5215 = vmatprep.subr.mxu0 0.0
  %5216 = vmatpush1.msra.mxu0 0.0
  %5217 = vmatprep.subr.mxu0 0.0
  %5218 = vmatpush1.msra.mxu0 0.0
  %5219 = vmatprep.subr.mxu0 0.0
  %5220 = vmatpush1.msra.mxu0 0.0
  %5221 = vmatprep.subr.mxu0 0.0
  %5222 = vmatpush1.msra.mxu0 0.0
  %5223 = vmatprep.subr.mxu0 0.0
  %5224 = vmatpush1.msra.mxu0 0.0
  %5225 = vmatprep.subr.mxu0 0.0
  %5226 = vmatpush1.msra.mxu0 0.0
  %5227 = vmatprep.subr.mxu0 0.0
  %5228 = vmatpush1.msra.mxu0 0.0
  %5229 = vmatprep.subr.mxu0 0.0
  %5230 = vmatpush1.msra.mxu0 0.0
  %5231 = vmatprep.subr.mxu0 0.0
  %5232 = vmatpush1.msra.mxu0 0.0
  %5233 = vmatprep.subr.mxu0 0.0
  %5234 = vmatpush1.msra.mxu0 0.0
  %5235 = vmatprep.subr.mxu0 0.0
  %5236 = vmatpush1.msra.mxu0 0.0
  %5237 = vmatprep.subr.mxu0 0.0
  %5238 = vmatpush1.msra.mxu0 0.0
  %5239 = vmatprep.subr.mxu0 0.0
  %5240 = vmatpush1.msra.mxu0 0.0
  %5241 = vmatprep.subr.mxu0 0.0
  %5242 = vmatpush1.msra.mxu0 0.0
  %5243 = vmatprep.subr.mxu0 0.0
  %5244 = vmatpush1.msra.mxu0 0.0
  %5245 = vmatprep.subr.mxu0 0.0
  %5246 = vmatpush1.msra.mxu0 0.0
  %5247 = vmatprep.subr.mxu0 0.0
  %5248 = vmatpush1.msra.mxu0 0.0
  %5249 = vmatprep.subr.mxu0 0.0
  %5250 = vmatpush1.msra.mxu0 0.0
  %5251 = vmatprep.subr.mxu0 0.0
  %5252 = vmatpush1.msra.mxu0 0.0
  %5253 = vmatprep.subr.mxu0 0.0
  %5254 = vmatpush1.msra.mxu0 0.0
  %5255 = vmatprep.subr.mxu0 0.0
  %5256 = vmatpush1.msra.mxu0 0.0
  %5257 = vmatprep.subr.mxu0 0.0
  %5258 = vmatpush1.msra.mxu0 0.0
  %5259 = vmatprep.subr.mxu0 0.0
  %5260 = vmatpush1.msra.mxu0 0.0
  %5261 = vmatprep.subr.mxu0 0.0
  %5262 = vmatpush1.msra.mxu0 0.0
  %5263 = vmatprep.subr.mxu0 0.0
  %5264 = vmatpush1.msra.mxu0 0.0
  %5265 = vmatprep.subr.mxu0 0.0
  %5266 = vmatpush1.msra.mxu0 0.0
  %5267 = vmatprep.subr.mxu0 0.0
  %5268 = vmatpush1.msra.mxu0 0.0
  %5269 = vmatprep.subr.mxu0 0.0
  %5270 = vmatpush1.msra.mxu0 0.0
  %5271 = vmatprep.mubr.f32.mxu0 0.0
  %5272 = vmatmul.mubr.f32.gmra.mrb[0].mxu0 %v5205
  %v5273 = vpop.f32.mrb[0].mxu0
  %v5274 = vadd.f32 0.0, %v5273
  %v5275 = vpop.f32.mrb[0].mxu0
  %5276 = vdwg.mxu0
  %5277 = vrot.lane.b32.xlu0 %v131, 40
  %v5278 = vpop.permute.xlu0 %5277
  %v5281 = vsel %vm145, %v4894, 0
  %5283 = vmatprep.subr.mxu0 0.0
  %5284 = vmatpush1.msra.mxu0 %v5278
  %5285 = vmatprep.subr.mxu0 0.0
  %5286 = vmatpush1.msra.mxu0 0.0
  %5287 = vmatprep.subr.mxu0 0.0
  %5288 = vmatpush1.msra.mxu0 0.0
  %5289 = vmatprep.subr.mxu0 0.0
  %5290 = vmatpush1.msra.mxu0 0.0
  %5291 = vmatprep.subr.mxu0 0.0
  %5292 = vmatpush1.msra.mxu0 0.0
  %5293 = vmatprep.subr.mxu0 0.0
  %5294 = vmatpush1.msra.mxu0 0.0
  %5295 = vmatprep.subr.mxu0 0.0
  %5296 = vmatpush1.msra.mxu0 0.0
  %5297 = vmatprep.subr.mxu0 0.0
  %5298 = vmatpush1.msra.mxu0 0.0
  %5299 = vmatprep.subr.mxu0 0.0
  %5300 = vmatpush1.msra.mxu0 0.0
  %5301 = vmatprep.subr.mxu0 0.0
  %5302 = vmatpush1.msra.mxu0 0.0
  %5303 = vmatprep.subr.mxu0 0.0
  %5304 = vmatpush1.msra.mxu0 0.0
  %5305 = vmatprep.subr.mxu0 0.0
  %5306 = vmatpush1.msra.mxu0 0.0
  %5307 = vmatprep.subr.mxu0 0.0
  %5308 = vmatpush1.msra.mxu0 0.0
  %5309 = vmatprep.subr.mxu0 0.0
  %5310 = vmatpush1.msra.mxu0 0.0
  %5311 = vmatprep.subr.mxu0 0.0
  %5312 = vmatpush1.msra.mxu0 0.0
  %5313 = vmatprep.subr.mxu0 0.0
  %5314 = vmatpush1.msra.mxu0 0.0
  %5315 = vmatprep.subr.mxu0 0.0
  %5316 = vmatpush1.msra.mxu0 0.0
  %5317 = vmatprep.subr.mxu0 0.0
  %5318 = vmatpush1.msra.mxu0 0.0
  %5319 = vmatprep.subr.mxu0 0.0
  %5320 = vmatpush1.msra.mxu0 0.0
  %5321 = vmatprep.subr.mxu0 0.0
  %5322 = vmatpush1.msra.mxu0 0.0
  %5323 = vmatprep.subr.mxu0 0.0
  %5324 = vmatpush1.msra.mxu0 0.0
  %5325 = vmatprep.subr.mxu0 0.0
  %5326 = vmatpush1.msra.mxu0 0.0
  %5327 = vmatprep.subr.mxu0 0.0
  %5328 = vmatpush1.msra.mxu0 0.0
  %5329 = vmatprep.subr.mxu0 0.0
  %5330 = vmatpush1.msra.mxu0 0.0
  %5331 = vmatprep.subr.mxu0 0.0
  %5332 = vmatpush1.msra.mxu0 0.0
  %5333 = vmatprep.subr.mxu0 0.0
  %5334 = vmatpush1.msra.mxu0 0.0
  %5335 = vmatprep.subr.mxu0 0.0
  %5336 = vmatpush1.msra.mxu0 0.0
  %5337 = vmatprep.subr.mxu0 0.0
  %5338 = vmatpush1.msra.mxu0 0.0
  %5339 = vmatprep.subr.mxu0 0.0
  %5340 = vmatpush1.msra.mxu0 0.0
  %5341 = vmatprep.subr.mxu0 0.0
  %5342 = vmatpush1.msra.mxu0 0.0
  %5343 = vmatprep.subr.mxu0 0.0
  %5344 = vmatpush1.msra.mxu0 0.0
  %5345 = vmatprep.subr.mxu0 0.0
  %5346 = vmatpush1.msra.mxu0 0.0
  %5347 = vmatprep.mubr.f32.mxu0 0.0
  %5348 = vmatmul.mubr.f32.gmra.mrb[0].mxu0 %v5281
  %v5349 = vpop.f32.mrb[0].mxu0
  %v5350 = vadd.f32 0.0, %v5349
  %v5351 = vpop.f32.mrb[0].mxu0
  %5352 = vdwg.mxu0
  %5353 = vrot.lane.b32.xlu0 %v136, 40
  %v5354 = vpop.permute.xlu0 %5353
  %v5357 = vsel %vm145, %v4895, 0
  %5359 = vmatprep.subr.mxu0 0.0
  %5360 = vmatpush1.msra.mxu0 %v5354
  %5361 = vmatprep.subr.mxu0 0.0
  %5362 = vmatpush1.msra.mxu0 0.0
  %5363 = vmatprep.subr.mxu0 0.0
  %5364 = vmatpush1.msra.mxu0 0.0
  %5365 = vmatprep.subr.mxu0 0.0
  %5366 = vmatpush1.msra.mxu0 0.0
  %5367 = vmatprep.subr.mxu0 0.0
  %5368 = vmatpush1.msra.mxu0 0.0
  %5369 = vmatprep.subr.mxu0 0.0
  %5370 = vmatpush1.msra.mxu0 0.0
  %5371 = vmatprep.subr.mxu0 0.0
  %5372 = vmatpush1.msra.mxu0 0.0
  %5373 = vmatprep.subr.mxu0 0.0
  %5374 = vmatpush1.msra.mxu0 0.0
  %5375 = vmatprep.subr.mxu0 0.0
  %5376 = vmatpush1.msra.mxu0 0.0
  %5377 = vmatprep.subr.mxu0 0.0
  %5378 = vmatpush1.msra.mxu0 0.0
  %5379 = vmatprep.subr.mxu0 0.0
  %5380 = vmatpush1.msra.mxu0 0.0
  %5381 = vmatprep.subr.mxu0 0.0
  %5382 = vmatpush1.msra.mxu0 0.0
  %5383 = vmatprep.subr.mxu0 0.0
  %5384 = vmatpush1.msra.mxu0 0.0
  %5385 = vmatprep.subr.mxu0 0.0
  %5386 = vmatpush1.msra.mxu0 0.0
  %5387 = vmatprep.subr.mxu0 0.0
  %5388 = vmatpush1.msra.mxu0 0.0
  %5389 = vmatprep.subr.mxu0 0.0
  %5390 = vmatpush1.msra.mxu0 0.0
  %5391 = vmatprep.subr.mxu0 0.0
  %5392 = vmatpush1.msra.mxu0 0.0
  %5393 = vmatprep.subr.mxu0 0.0
  %5394 = vmatpush1.msra.mxu0 0.0
  %5395 = vmatprep.subr.mxu0 0.0
  %5396 = vmatpush1.msra.mxu0 0.0
  %5397 = vmatprep.subr.mxu0 0.0
  %5398 = vmatpush1.msra.mxu0 0.0
  %5399 = vmatprep.subr.mxu0 0.0
  %5400 = vmatpush1.msra.mxu0 0.0
  %5401 = vmatprep.subr.mxu0 0.0
  %5402 = vmatpush1.msra.mxu0 0.0
  %5403 = vmatprep.subr.mxu0 0.0
  %5404 = vmatpush1.msra.mxu0 0.0
  %5405 = vmatprep.subr.mxu0 0.0
  %5406 = vmatpush1.msra.mxu0 0.0
  %5407 = vmatprep.subr.mxu0 0.0
  %5408 = vmatpush1.msra.mxu0 0.0
  %5409 = vmatprep.subr.mxu0 0.0
  %5410 = vmatpush1.msra.mxu0 0.0
  %5411 = vmatprep.subr.mxu0 0.0
  %5412 = vmatpush1.msra.mxu0 0.0
  %5413 = vmatprep.subr.mxu0 0.0
  %5414 = vmatpush1.msra.mxu0 0.0
  %5415 = vmatprep.subr.mxu0 0.0
  %5416 = vmatpush1.msra.mxu0 0.0
  %5417 = vmatprep.subr.mxu0 0.0
  %5418 = vmatpush1.msra.mxu0 0.0
  %5419 = vmatprep.subr.mxu0 0.0
  %5420 = vmatpush1.msra.mxu0 0.0
  %5421 = vmatprep.subr.mxu0 0.0
  %5422 = vmatpush1.msra.mxu0 0.0
  %5423 = vmatprep.mubr.f32.mxu0 0.0
  %5424 = vmatmul.mubr.f32.gmra.mrb[0].mxu0 %v5357
  %v5425 = vpop.f32.mrb[0].mxu0
  %v5426 = vadd.f32 0.0, %v5425
  %v5427 = vpop.f32.mrb[0].mxu0
  %5428 = vdwg.mxu0
  %5429 = vrot.lane.b32.xlu0 %v139, 40
  %v5430 = vpop.permute.xlu0 %5429
  %v5433 = vsel %vm145, %v4896, 0
  %5435 = vmatprep.subr.mxu0 0.0
  %5436 = vmatpush1.msra.mxu0 %v5430
  %5437 = vmatprep.subr.mxu0 0.0
  %5438 = vmatpush1.msra.mxu0 0.0
  %5439 = vmatprep.subr.mxu0 0.0
  %5440 = vmatpush1.msra.mxu0 0.0
  %5441 = vmatprep.subr.mxu0 0.0
  %5442 = vmatpush1.msra.mxu0 0.0
  %5443 = vmatprep.subr.mxu0 0.0
  %5444 = vmatpush1.msra.mxu0 0.0
  %5445 = vmatprep.subr.mxu0 0.0
  %5446 = vmatpush1.msra.mxu0 0.0
  %5447 = vmatprep.subr.mxu0 0.0
  %5448 = vmatpush1.msra.mxu0 0.0
  %5449 = vmatprep.subr.mxu0 0.0
  %5450 = vmatpush1.msra.mxu0 0.0
  %5451 = vmatprep.subr.mxu0 0.0
  %5452 = vmatpush1.msra.mxu0 0.0
  %5453 = vmatprep.subr.mxu0 0.0
  %5454 = vmatpush1.msra.mxu0 0.0
  %5455 = vmatprep.subr.mxu0 0.0
  %5456 = vmatpush1.msra.mxu0 0.0
  %5457 = vmatprep.subr.mxu0 0.0
  %5458 = vmatpush1.msra.mxu0 0.0
  %5459 = vmatprep.subr.mxu0 0.0
  %5460 = vmatpush1.msra.mxu0 0.0
  %5461 = vmatprep.subr.mxu0 0.0
  %5462 = vmatpush1.msra.mxu0 0.0
  %5463 = vmatprep.subr.mxu0 0.0
  %5464 = vmatpush1.msra.mxu0 0.0
  %5465 = vmatprep.subr.mxu0 0.0
  %5466 = vmatpush1.msra.mxu0 0.0
  %5467 = vmatprep.subr.mxu0 0.0
  %5468 = vmatpush1.msra.mxu0 0.0
  %5469 = vmatprep.subr.mxu0 0.0
  %5470 = vmatpush1.msra.mxu0 0.0
  %5471 = vmatprep.subr.mxu0 0.0
  %5472 = vmatpush1.msra.mxu0 0.0
  %5473 = vmatprep.subr.mxu0 0.0
  %5474 = vmatpush1.msra.mxu0 0.0
  %5475 = vmatprep.subr.mxu0 0.0
  %5476 = vmatpush1.msra.mxu0 0.0
  %5477 = vmatprep.subr.mxu0 0.0
  %5478 = vmatpush1.msra.mxu0 0.0
  %5479 = vmatprep.subr.mxu0 0.0
  %5480 = vmatpush1.msra.mxu0 0.0
  %5481 = vmatprep.subr.mxu0 0.0
  %5482 = vmatpush1.msra.mxu0 0.0
  %5483 = vmatprep.subr.mxu0 0.0
  %5484 = vmatpush1.msra.mxu0 0.0
  %5485 = vmatprep.subr.mxu0 0.0
  %5486 = vmatpush1.msra.mxu0 0.0
  %5487 = vmatprep.subr.mxu0 0.0
  %5488 = vmatpush1.msra.mxu0 0.0
  %5489 = vmatprep.subr.mxu0 0.0
  %5490 = vmatpush1.msra.mxu0 0.0
  %5491 = vmatprep.subr.mxu0 0.0
  %5492 = vmatpush1.msra.mxu0 0.0
  %5493 = vmatprep.subr.mxu0 0.0
  %5494 = vmatpush1.msra.mxu0 0.0
  %5495 = vmatprep.subr.mxu0 0.0
  %5496 = vmatpush1.msra.mxu0 0.0
  %5497 = vmatprep.subr.mxu0 0.0
  %5498 = vmatpush1.msra.mxu0 0.0
  %5499 = vmatprep.mubr.f32.mxu0 0.0
  %5500 = vmatmul.mubr.f32.gmra.mrb[0].mxu0 %v5433
  %v5501 = vpop.f32.mrb[0].mxu0
  %v5502 = vadd.f32 0.0, %v5501
  %v5503 = vpop.f32.mrb[0].mxu0
  %5504 = vdwg.mxu0
  %5513 = vrot.lane.b32.xlu0 %v4970, 24
  %v5514 = vpop.permute.xlu0 %5513
  %5515 = vrot.lane.b32.xlu0 %v5046, 24
  %v5516 = vpop.permute.xlu0 %5515
  %5517 = vrot.lane.b32.xlu0 %v5122, 24
  %v5518 = vpop.permute.xlu0 %5517
  %5519 = vrot.lane.b32.xlu0 %v5198, 24
  %v5520 = vpop.permute.xlu0 %5519
  %5521 = vrot.lane.b32.xlu0 %v5274, 24
  %v5522 = vpop.permute.xlu0 %5521
  %5523 = vrot.lane.b32.xlu0 %v5350, 24
  %v5524 = vpop.permute.xlu0 %5523
  %5525 = vrot.lane.b32.xlu0 %v5426, 24
  %v5526 = vpop.permute.xlu0 %5525
  %5527 = vrot.lane.b32.xlu0 %v5502, 24
  %v5528 = vpop.permute.xlu0 %5527
  %vm5537 = vcmask 261312
  %5538 = vst.msk [vmem:[#allocation2] sm:$0xff] %vm5537, %v5514
  %5539 = vst.msk [vmem:[#allocation2 + $0x8] sm:$0xff] %vm5537, %v5516
  %5540 = vst.msk [vmem:[#allocation2 + $0x10] sm:$0xff] %vm5537, %v5518
  %5541 = vst.msk [vmem:[#allocation2 + $0x18] sm:$0xff] %vm5537, %v5520
  %5542 = vst.msk [vmem:[#allocation2 + $0x20] sm:$0xff] %vm5537, %v5522
  %5543 = vst.msk [vmem:[#allocation2 + $0x28] sm:$0xff] %vm5537, %v5524
  %5544 = vst.msk [vmem:[#allocation2 + $0x30] sm:$0xff] %vm5537, %v5526
  %5545 = vst.msk [vmem:[#allocation2 + $0x38] sm:$0xff] %vm5537, %v5528
  %v5546 = vld [vmem:[#allocation2] sm:$0xff]
  %v5547 = vld [vmem:[#allocation2 + $0x8] sm:$0xff]
  %v5548 = vld [vmem:[#allocation2 + $0x10] sm:$0xff]
  %v5549 = vld [vmem:[#allocation2 + $0x18] sm:$0xff]
  %v5550 = vld [vmem:[#allocation2 + $0x20] sm:$0xff]
  %v5551 = vld [vmem:[#allocation2 + $0x28] sm:$0xff]
  %v5552 = vld [vmem:[#allocation2 + $0x30] sm:$0xff]
  %v5553 = vld [vmem:[#allocation2 + $0x38] sm:$0xff]
  %v5554 = vadd.f32 %v112, %v5546
  %v5555 = vadd.f32 %v115, %v5547
  %v5556 = vadd.f32 %v120, %v5548
  %v5557 = vadd.f32 %v123, %v5549
  %v5558 = vadd.f32 %v128, %v5550
  %v5559 = vadd.f32 %v131, %v5551
  %v5560 = vadd.f32 %v136, %v5552
  %v5561 = vadd.f32 %v139, %v5553
  %v5562 = vpack.c.bf16 %v5555, %v5554
  %v5563 = vpack.c.bf16 %v5557, %v5556
  %v5564 = vpack.c.bf16 %v5559, %v5558
  %v5565 = vpack.c.bf16 %v5561, %v5560
  %v5566 = vld [vmem:[%s3] sm:$0xf]
  %v5567 = vld [vmem:[%s3 + $0x4] sm:$0xf]
  %v5568 = vld [vmem:[%s3 + $0x8] sm:$0xf]
  %v5569 = vld [vmem:[%s3 + $0xc] sm:$0xf]
  %v5570 = vld [vmem:[%s4] sm:$0x1]
  %v5572 = vlaneseq
  %v5573 = vshrl.u32 %v5572, 7
  %v5574 = vsub.s32 0, %v5573
  %v5575 = vrot.slane %v5570, %v5574
  %v5581 = vunpack.c.l.b16 %v5566
  %v5582 = vunpack.c.l.b16 %v5567
  %v5583 = vunpack.c.l.b16 %v5568
  %v5584 = vunpack.c.l.b16 %v5569
  %v5585 = vpack.c.b16 %v5582, %v5581
  %v5586 = vpack.c.b16 %v5584, %v5583
  %vm5589 = vcmask 261120
  %v5591 = vsel %vm5589, %v5562, 0
  %v5594 = vsel %vm5589, %v5563, 0
  %v5597 = vsel %vm5589, %v5564, 0
  %v5600 = vsel %vm5589, %v5565, 0
  %5602 = vmatprep.subr.bf16.mxu0 0
  %5603 = vmatpush1.bf16.msra.mxu0 %v5585
  %5604 = vmatprep.subr.bf16.mxu0 0
  %5605 = vmatpush1.bf16.msra.mxu0 %v5586
  %5606 = vmatprep.subr.bf16.mxu0 0
  %5607 = vmatpush1.bf16.msra.mxu0 0
  %5608 = vmatprep.subr.bf16.mxu0 0
  %5609 = vmatpush1.bf16.msra.mxu0 0
  %5610 = vmatprep.subr.bf16.mxu0 0
  %5611 = vmatpush1.bf16.msra.mxu0 0
  %5612 = vmatprep.subr.bf16.mxu0 0
  %5613 = vmatpush1.bf16.msra.mxu0 0
  %5614 = vmatprep.subr.bf16.mxu0 0
  %5615 = vmatpush1.bf16.msra.mxu0 0
  %5616 = vmatprep.subr.bf16.mxu0 0
  %5617 = vmatpush1.bf16.msra.mxu0 0
  %5618 = vmatprep.subr.bf16.mxu0 0
  %5619 = vmatpush1.bf16.msra.mxu0 0
  %5620 = vmatprep.subr.bf16.mxu0 0
  %5621 = vmatpush1.bf16.msra.mxu0 0
  %5622 = vmatprep.subr.bf16.mxu0 0
  %5623 = vmatpush1.bf16.msra.mxu0 0
  %5624 = vmatprep.subr.bf16.mxu0 0
  %5625 = vmatpush1.bf16.msra.mxu0 0
  %5626 = vmatprep.subr.bf16.mxu0 0
  %5627 = vmatpush1.bf16.msra.mxu0 0
  %5628 = vmatprep.subr.bf16.mxu0 0
  %5629 = vmatpush1.bf16.msra.mxu0 0
  %5630 = vmatprep.subr.bf16.mxu0 0
  %5631 = vmatpush1.bf16.msra.mxu0 0
  %5632 = vmatprep.subr.bf16.mxu0 0
  %5633 = vmatpush1.bf16.msra.mxu0 0
  %5634 = vmatprep.mubr.bf16.mxu0 0
  %5635 = vmatmul.mubr.bf16.gmra.mrb[0].mxu0 %v5591
  %v5636 = vpop.f32.mrb[0].mxu0
  %v5637 = vadd.f32 %v5575, %v5636
  %v5638 = vpop.f32.mrb[0].mxu0
  %v5639 = vpop.f32.mrb[0].mxu0
  %v5640 = vadd.f32 %v5575, %v5639
  %v5641 = vpop.f32.mrb[0].mxu0
  %5642 = vmatprep.mubr.bf16.mxu0 0
  %5643 = vmatmul.mubr.bf16.gmra.mrb[0].mxu0 %v5594
  %v5644 = vpop.f32.mrb[0].mxu0
  %v5645 = vadd.f32 %v5575, %v5644
  %v5646 = vpop.f32.mrb[0].mxu0
  %v5647 = vpop.f32.mrb[0].mxu0
  %v5648 = vadd.f32 %v5575, %v5647
  %v5649 = vpop.f32.mrb[0].mxu0
  %5650 = vmatprep.mubr.bf16.mxu0 0
  %5651 = vmatmul.mubr.bf16.gmra.mrb[0].mxu0 %v5597
  %v5652 = vpop.f32.mrb[0].mxu0
  %v5653 = vadd.f32 %v5575, %v5652
  %v5654 = vpop.f32.mrb[0].mxu0
  %v5655 = vpop.f32.mrb[0].mxu0
  %v5656 = vadd.f32 %v5575, %v5655
  %v5657 = vpop.f32.mrb[0].mxu0
  %5658 = vmatprep.mubr.bf16.mxu0 0
  %5659 = vmatmul.mubr.bf16.gmra.mrb[0].mxu0 %v5600
  %v5660 = vpop.f32.mrb[0].mxu0
  %v5661 = vadd.f32 %v5575, %v5660
  %v5662 = vpop.f32.mrb[0].mxu0
  %v5663 = vpop.f32.mrb[0].mxu0
  %v5664 = vadd.f32 %v5575, %v5663
  %v5665 = vpop.f32.mrb[0].mxu0
  %5666 = vdwg.mxu0
  %v5667 = vmax.f32 %v5637, 0.0
  %v5668 = vmax.f32 %v5640, 0.0
  %v5669 = vmax.f32 %v5645, 0.0
  %v5670 = vmax.f32 %v5648, 0.0
  %v5671 = vmax.f32 %v5653, 0.0
  %v5672 = vmax.f32 %v5656, 0.0
  %v5673 = vmax.f32 %v5661, 0.0
  %v5674 = vmax.f32 %v5664, 0.0
  %v5675 = vadd.f32 %v5554, %v5667
  %v5676 = vadd.f32 %v5555, %v5668
  %v5677 = vadd.f32 %v5556, %v5669
  %v5678 = vadd.f32 %v5557, %v5670
  %v5679 = vadd.f32 %v5558, %v5671
  %v5680 = vadd.f32 %v5559, %v5672
  %v5681 = vadd.f32 %v5560, %v5673
  %v5682 = vadd.f32 %v5561, %v5674
  %5683 = vst.msk [vmem:[%s5] sm:$0xff] %vm5589, %v5675
  %5684 = vst.msk [vmem:[%s5 + $0x8] sm:$0xff] %vm5589, %v5676
  %5685 = vst.msk [vmem:[%s5 + $0x10] sm:$0xff] %vm5589, %v5677
  %5686 = vst.msk [vmem:[%s5 + $0x18] sm:$0xff] %vm5589, %v5678
  %5687 = vst.msk [vmem:[%s5 + $0x20] sm:$0xff] %vm5589, %v5679
  %5688 = vst.msk [vmem:[%s5 + $0x28] sm:$0xff] %vm5589, %v5680
  %5689 = vst.msk [vmem:[%s5 + $0x30] sm:$0xff] %vm5589, %v5681
  %5690 = vst.msk [vmem:[%s5 + $0x38] sm:$0xff] %vm5589, %v5682
  // Predicated region
  $region22: #{tpu_custom_call.1} parent=0 // pred_check
    _
  $region23: #{tpu_custom_call.1} parent=0 // pred_check_branch
    %5692 = sbr.rel (0) target = $region25
  $region24: #{tpu_custom_call.1} parent=0 // pred_region
    _
  $region25: #{tpu_custom_call.1} parent=0 // pred_fallthru
    _
  // Predicated region
  $region26: #{tpu_custom_call.1} parent=0 // pred_check
    _
  $region27: #{tpu_custom_call.1} parent=0 // pred_check_branch
    %5694 = sbr.rel (0) target = $region29
  $region28: #{tpu_custom_call.1} parent=0 // pred_region
    _
  $region29: #{tpu_custom_call.1} parent=0 // pred_fallthru
    _

</llo_original>
